<compile_context>
chip_gen: v6e
topology: v6e:2x2x1
jax: 0.10.0
libtpu: 0.0.40
codegen_flags: <defaults>
</compile_context>

<pallas_src>
import math

import jax
import jax.numpy as jnp
from jax.experimental import pallas as pl
from jax.experimental.pallas import tpu as pltpu

# Small, module-consistent shapes.
B, S, H = 2, 8, 32           # batch, seq, hidden_dim
E, NH = 4, 4                 # num_experts, heads per ExpertAttention
HD = H // NH                 # head_dim
EH = E * NH                  # 16 (expert, head) pairs -> batched attention
BS = B * S                   # 16 tokens in the flattened batch
C1, C2 = 256, 2              # classifier hidden / output dims
OUT_PAD = 128                # lane-padded classifier output width
NEG = -1e30                  # cross-batch attention mask value


def _softmax_last(z):
    m = jnp.max(z, axis=-1, keepdims=True)
    e = jnp.exp(z - m)
    s = jnp.sum(e, axis=-1, keepdims=True)
    return e * pl.reciprocal(s, approx=True)


def sentimixture_kernel(xa_ref, aaug_ref, wvo_ref, bo_ref, rwb_ref,
                        w1_ref, w2_ref, aux_ref, out_ref):
    f32 = jnp.float32
    xa = xa_ref[...]                                               # (BS, H+1); last col == 1

    # RoutingNetwork: softmax(x @ Wr + br) — bias folded via the ones column.
    r = _softmax_last(jnp.dot(xa, rwb_ref[...],
                              preferred_element_type=f32))         # (BS, E)

    # All experts & heads at once, batched over EH. Scores (incl. QK biases and
    # the 1/sqrt(HD) scale folded into A) for all 16 tokens jointly.
    xb = jnp.broadcast_to(xa[None], (EH, BS, H + 1))                # (EH, BS, 33)
    t = jnp.einsum('bqk,bkd->bqd', xb, aaug_ref[...],
                   preferred_element_type=f32)                      # (EH, BS, 33)
    sc = jnp.einsum('bqd,bkd->bqk', t, xb,
                    preferred_element_type=f32)                     # (EH, BS, BS)
    sc = sc + aux_ref[0:BS, :][None]                                # mask cross-batch tokens
    p = _softmax_last(sc)                                           # (EH, BS, BS)
    vo = jnp.einsum('bqk,bkd->bqd', xb, wvo_ref[...],
                    preferred_element_type=f32)                     # (EH, BS, H) == V @ Wo_rows
    ho = jnp.einsum('bqk,bkd->bqd', p, vo,
                    preferred_element_type=f32)                     # (EH, BS, H)

    # Mixture: mixed = sum_e r_e * (expert_e out) ; out-proj bias term == r @ bo.
    mixed = jnp.dot(r, bo_ref[...], preferred_element_type=f32)     # (BS, H)
    for e in range(E):                                              # tiny 4-way unroll (VPU only)
        ectx = ho[NH * e] + ho[NH * e + 1] + ho[NH * e + 2] + ho[NH * e + 3]
        mixed = mixed + r[:, e:e + 1] * ectx

    # Mean-pool over the sequence via a constant pooling matrix, then classifier.
    pooled = jnp.dot(aux_ref[BS:BS + B, :], mixed,
                     preferred_element_type=f32)                    # (B, H)
    h1 = jnp.maximum(
        jnp.dot(pooled, w1_ref[0:H, :], preferred_element_type=f32)
        + w1_ref[H:H + 1, :], 0.0)                                  # (B, C1)  (Dropout == id)
    out_ref[...] = (jnp.dot(h1, w2_ref[0:C1, :], preferred_element_type=f32)
                    + w2_ref[C1:C1 + 1, :])                         # (B, OUT_PAD), unmasked store


@jax.jit
def sentimixture_forward(x, packed):
    aaug, wvo, bo_mat, rwb, w1p, w2p, aux = packed
    xa = jnp.concatenate(
        [x.reshape(BS, H).astype(jnp.float32), jnp.ones((BS, 1), jnp.float32)],
        axis=1)                                                     # (BS, H+1)
    out = pl.pallas_call(
        sentimixture_kernel,
        out_shape=jax.ShapeDtypeStruct((B, OUT_PAD), jnp.float32),
        in_specs=[pl.BlockSpec(memory_space=pltpu.MemorySpace.VMEM)
                  for _ in range(8)],
        out_specs=pl.BlockSpec(memory_space=pltpu.MemorySpace.VMEM),
        cost_estimate=pl.CostEstimate(flops=2_000_000, transcendentals=4_500,
                                      bytes_accessed=320_000),
    )(xa, aaug, wvo, bo_mat, rwb, w1p, w2p, aux)
    return out[:, :C2]


def init_params(key):
    """Raw parameters mirroring the PyTorch module (weights already in x@W layout)."""
    ks = jax.random.split(key, 14)
    w = lambda k, shape: (0.02 * jax.random.normal(k, shape)).astype(jnp.float32)
    rw = w(ks[0], (H, E)); rb = w(ks[1], (E,))                       # router Linear(H, E)
    wq = w(ks[2], (E, H, H)); bq = w(ks[3], (E, H))                  # per-expert MHA in_proj (Q)
    wk = w(ks[4], (E, H, H)); bk = w(ks[5], (E, H))                  # (K)
    wv = w(ks[6], (E, H, H)); bv = w(ks[7], (E, H))                  # (V)
    wo = w(ks[8], (E, H, H)); bo = w(ks[9], (E, H))                  # per-expert out_proj
    w1 = w(ks[10], (H, C1)); b1 = w(ks[11], (C1,))                   # classifier Linear(H, 256)
    w2 = w(ks[12], (C1, C2)); b2 = w(ks[13], (C2,))                  # classifier Linear(256, 2)
    return (rw, rb, wq, bq, wk, bk, wv, bv, wo, bo, w1, b1, w2, b2)


def pack_params(raw):
    """One-time offline packing of raw params into the kernel's 7 VMEM slabs."""
    rw, rb, wq, bq, wk, bk, wv, bv, wo, bo, w1, b1, w2, b2 = raw
    scale = 1.0 / math.sqrt(HD)
    a_blocks, vo_blocks = [], []
    for e in range(E):
        for h in range(NH):
            sl = slice(h * HD, (h + 1) * HD)
            wq_a = jnp.concatenate([wq[e][:, sl], bq[e][sl][None, :]], axis=0)   # (H+1, HD)
            wk_a = jnp.concatenate([wk[e][:, sl], bk[e][sl][None, :]], axis=0)
            wv_a = jnp.concatenate([wv[e][:, sl], bv[e][sl][None, :]], axis=0)
            a_blocks.append(scale * (wq_a @ wk_a.T))                              # (H+1, H+1)
            vo_blocks.append(wv_a @ wo[e][sl, :])                                 # (H+1, H)
    aaug = jnp.stack(a_blocks).astype(jnp.float32)                   # (EH, H+1, H+1)
    wvo = jnp.stack(vo_blocks).astype(jnp.float32)                   # (EH, H+1, H)
    rwb = jnp.concatenate([rw, rb[None, :]], axis=0)                 # (H+1, E)
    w1p = jnp.concatenate([w1, b1[None, :]], axis=0)                 # (H+1, C1)
    w2p = jnp.concatenate(
        [jnp.pad(w2, ((0, 0), (0, OUT_PAD - C2))),
         jnp.pad(b2[None, :], ((0, 0), (0, OUT_PAD - C2)))], axis=0)  # (C1+1, OUT_PAD)
    tok = jnp.arange(BS) // S
    mask = jnp.where(tok[:, None] == tok[None, :], 0.0, NEG).astype(jnp.float32)  # (BS, BS)
    pool = (jnp.arange(B)[:, None] == tok[None, :]).astype(jnp.float32) / S       # (B, BS)
    aux = jnp.concatenate([mask, pool], axis=0)                      # (BS+B, BS)
    return (aaug, wvo, bo, rwb, w1p, w2p, aux)


def reference(x, raw):
    """Pure-JAX reference mirroring the PyTorch forward (eval mode)."""
    rw, rb, wq, bq, wk, bk, wv, bv, wo, bo, w1, b1, w2, b2 = raw
    r = jax.nn.softmax(x @ rw + rb, axis=-1)                         # (B, S, E)
    mixed = jnp.zeros((B, S, H), jnp.float32)
    for e in range(E):
        q = (x @ wq[e] + bq[e]).reshape(B, S, NH, HD)
        k = (x @ wk[e] + bk[e]).reshape(B, S, NH, HD)
        v = (x @ wv[e] + bv[e]).reshape(B, S, NH, HD)
        sc = jnp.einsum('bqhd,bkhd->bhqk', q, k) / math.sqrt(HD)
        p = jax.nn.softmax(sc, axis=-1)
        ctx = jnp.einsum('bhqk,bkhd->bqhd', p, v).reshape(B, S, H)
        eo = ctx @ wo[e] + bo[e]
        mixed = mixed + eo * r[:, :, e:e + 1]
    pooled = mixed.mean(axis=1)
    h1 = jnp.maximum(pooled @ w1 + b1, 0.0)
    return h1 @ w2 + b2


if __name__ == "__main__":
    key = jax.random.PRNGKey(0)
    kx, kp = jax.random.split(key)
    # Stand-in for the encoder's last_hidden_state.
    x = jax.random.normal(kx, (B, S, H), dtype=jnp.float32)
    raw = init_params(kp)
    packed = pack_params(raw)

    out = sentimixture_forward(x, packed)
    out = jax.block_until_ready(out)

    ref = reference(x, raw)
    assert out.shape == (B, C2)
    # Tolerance loosened slightly for pl.reciprocal(approx=True) in the softmaxes.
    assert jnp.allclose(out, ref, atol=1e-3, rtol=1e-3), (out, ref)
    print("KERNEL_OK")
</pallas_src>

<mosaic_0001>
module attributes {stable_mosaic.version = 11 : i64} {
  func.func @sentimixture_kernel(%arg0: memref<16x33xf32, #tpu.memory_space<vmem>>, %arg1: memref<16x33x33xf32, #tpu.memory_space<vmem>>, %arg2: memref<16x33x32xf32, #tpu.memory_space<vmem>>, %arg3: memref<4x32xf32, #tpu.memory_space<vmem>>, %arg4: memref<33x4xf32, #tpu.memory_space<vmem>>, %arg5: memref<33x256xf32, #tpu.memory_space<vmem>>, %arg6: memref<257x128xf32, #tpu.memory_space<vmem>>, %arg7: memref<18x16xf32, #tpu.memory_space<vmem>>, %arg8: memref<2x128xf32, #tpu.memory_space<vmem>>) attributes {dimension_semantics = [], scalar_prefetch = 0 : i64, scratch_operands = 0 : i64, tpu.core_type = #tpu.core_type<tc>} {
    %c0 = arith.constant 0 : index
    %c0_0 = arith.constant 0 : index
    %0 = vector.load %arg0[%c0, %c0_0] : memref<16x33xf32, #tpu.memory_space<vmem>>, vector<16x33xf32>
    %c0_1 = arith.constant 0 : index
    %c0_2 = arith.constant 0 : index
    %1 = vector.load %arg4[%c0_1, %c0_2] : memref<33x4xf32, #tpu.memory_space<vmem>>, vector<33x4xf32>
    %cst = arith.constant dense<0.000000e+00> : vector<16x4xf32>
    %2 = tpu.matmul %0, %1, %cst {dimension_numbers = #tpu.dot_dimension_numbers<[1], [0], [0], [1], [0, 0, 1, 1], [], []>} : vector<16x33xf32>, vector<33x4xf32>, vector<16x4xf32> -> vector<16x4xf32>
    %cst_3 = arith.constant dense<0xFF800000> : vector<16xf32>
    %3 = vector.multi_reduction <maximumf>, %2, %cst_3 [1] : vector<16x4xf32> to vector<16xf32>
    %4 = vector.shape_cast %3 : vector<16xf32> to vector<16x1xf32>
    %5 = vector.broadcast %4 : vector<16x1xf32> to vector<16x4xf32>
    %6 = arith.subf %2, %5 : vector<16x4xf32>
    %7 = math.exp %6 : vector<16x4xf32>
    %cst_4 = arith.constant dense<0.000000e+00> : vector<16xf32>
    %8 = vector.multi_reduction <add>, %7, %cst_4 [1] : vector<16x4xf32> to vector<16xf32>
    %9 = vector.shape_cast %8 : vector<16xf32> to vector<16x1xf32>
    %10 = tpu.reciprocal %9 {approx = true} : vector<16x1xf32> -> vector<16x1xf32>
    %11 = vector.broadcast %10 : vector<16x1xf32> to vector<16x4xf32>
    %12 = arith.mulf %7, %11 : vector<16x4xf32>
    %13 = vector.shape_cast %0 : vector<16x33xf32> to vector<1x16x33xf32>
    %14 = vector.shape_cast %13 : vector<1x16x33xf32> to vector<1x16x33xf32>
    %15 = vector.broadcast %14 : vector<1x16x33xf32> to vector<16x16x33xf32>
    %c0_5 = arith.constant 0 : index
    %c0_6 = arith.constant 0 : index
    %c0_7 = arith.constant 0 : index
    %16 = vector.load %arg1[%c0_5, %c0_6, %c0_7] : memref<16x33x33xf32, #tpu.memory_space<vmem>>, vector<16x33x33xf32>
    "tpu.trace_start"() <{level = 10 : i32, message = "bqk,bkd->bqd"}> : () -> ()
    %cst_8 = arith.constant dense<0.000000e+00> : vector<16x16x33xf32>
    %17 = tpu.matmul %15, %16, %cst_8 {dimension_numbers = #tpu.dot_dimension_numbers<[2], [1], [1], [2], [0, 0, 0, 1, 1, 2], [0], [0]>} : vector<16x16x33xf32>, vector<16x33x33xf32>, vector<16x16x33xf32> -> vector<16x16x33xf32>
    "tpu.trace_stop"() : () -> ()
    "tpu.trace_start"() <{level = 10 : i32, message = "bqd,bkd->bqk"}> : () -> ()
    %cst_9 = arith.constant dense<0.000000e+00> : vector<16x16x16xf32>
    %18 = tpu.matmul %17, %15, %cst_9 {dimension_numbers = #tpu.dot_dimension_numbers<[2], [2], [1], [1], [0, 0, 0, 1, 1, 1], [0], [0]>} : vector<16x16x33xf32>, vector<16x16x33xf32>, vector<16x16x16xf32> -> vector<16x16x16xf32>
    "tpu.trace_stop"() : () -> ()
    %c0_10 = arith.constant 0 : index
    %c0_11 = arith.constant 0 : index
    %19 = vector.load %arg7[%c0_10, %c0_11] : memref<18x16xf32, #tpu.memory_space<vmem>>, vector<16x16xf32>
    %20 = vector.shape_cast %19 : vector<16x16xf32> to vector<1x16x16xf32>
    %21 = vector.broadcast %20 : vector<1x16x16xf32> to vector<16x16x16xf32>
    %22 = arith.addf %18, %21 : vector<16x16x16xf32>
    %cst_12 = arith.constant dense<0xFF800000> : vector<16x16xf32>
    %23 = vector.multi_reduction <maximumf>, %22, %cst_12 [2] : vector<16x16x16xf32> to vector<16x16xf32>
    %24 = vector.shape_cast %23 : vector<16x16xf32> to vector<16x16x1xf32>
    %25 = vector.broadcast %24 : vector<16x16x1xf32> to vector<16x16x16xf32>
    %26 = arith.subf %22, %25 : vector<16x16x16xf32>
    %27 = math.exp %26 : vector<16x16x16xf32>
    %cst_13 = arith.constant dense<0.000000e+00> : vector<16x16xf32>
    %28 = vector.multi_reduction <add>, %27, %cst_13 [2] : vector<16x16x16xf32> to vector<16x16xf32>
    %29 = vector.shape_cast %28 : vector<16x16xf32> to vector<16x16x1xf32>
    %30 = tpu.reciprocal %29 {approx = true} : vector<16x16x1xf32> -> vector<16x16x1xf32>
    %31 = vector.broadcast %30 : vector<16x16x1xf32> to vector<16x16x16xf32>
    %32 = arith.mulf %27, %31 : vector<16x16x16xf32>
    %c0_14 = arith.constant 0 : index
    %c0_15 = arith.constant 0 : index
    %c0_16 = arith.constant 0 : index
    %33 = vector.load %arg2[%c0_14, %c0_15, %c0_16] : memref<16x33x32xf32, #tpu.memory_space<vmem>>, vector<16x33x32xf32>
    "tpu.trace_start"() <{level = 10 : i32, message = "bqk,bkd->bqd"}> : () -> ()
    %cst_17 = arith.constant dense<0.000000e+00> : vector<16x16x32xf32>
    %34 = tpu.matmul %15, %33, %cst_17 {dimension_numbers = #tpu.dot_dimension_numbers<[2], [1], [1], [2], [0, 0, 0, 1, 1, 2], [0], [0]>} : vector<16x16x33xf32>, vector<16x33x32xf32>, vector<16x16x32xf32> -> vector<16x16x32xf32>
    %cst_18 = arith.constant dense<0.000000e+00> : vector<16x16x32xf32>
    %35 = tpu.matmul %32, %34, %cst_18 {dimension_numbers = #tpu.dot_dimension_numbers<[2], [1], [1], [2], [0, 0, 0, 1, 1, 2], [0], [0]>} : vector<16x16x16xf32>, vector<16x16x32xf32>, vector<16x16x32xf32> -> vector<16x16x32xf32>
    "tpu.trace_stop"() : () -> ()
    %c0_19 = arith.constant 0 : index
    %c0_20 = arith.constant 0 : index
    %36 = vector.load %arg3[%c0_19, %c0_20] : memref<4x32xf32, #tpu.memory_space<vmem>>, vector<4x32xf32>
    %cst_21 = arith.constant dense<0.000000e+00> : vector<16x32xf32>
    %37 = tpu.matmul %12, %36, %cst_21 {dimension_numbers = #tpu.dot_dimension_numbers<[1], [0], [0], [1], [0, 0, 1, 1], [], []>} : vector<16x4xf32>, vector<4x32xf32>, vector<16x32xf32> -> vector<16x32xf32>
    %38 = vector.extract_strided_slice %35 {offsets = [0, 0, 0], sizes = [1, 16, 32], strides = [1, 1, 1]} : vector<16x16x32xf32> to vector<1x16x32xf32>
    %39 = vector.shape_cast %38 : vector<1x16x32xf32> to vector<16x32xf32>
    %40 = vector.extract_strided_slice %35 {offsets = [1, 0, 0], sizes = [1, 16, 32], strides = [1, 1, 1]} : vector<16x16x32xf32> to vector<1x16x32xf32>
    %41 = vector.shape_cast %40 : vector<1x16x32xf32> to vector<16x32xf32>
    %42 = arith.addf %39, %41 : vector<16x32xf32>
    %43 = vector.extract_strided_slice %35 {offsets = [2, 0, 0], sizes = [1, 16, 32], strides = [1, 1, 1]} : vector<16x16x32xf32> to vector<1x16x32xf32>
    %44 = vector.shape_cast %43 : vector<1x16x32xf32> to vector<16x32xf32>
    %45 = arith.addf %42, %44 : vector<16x32xf32>
    %46 = vector.extract_strided_slice %35 {offsets = [3, 0, 0], sizes = [1, 16, 32], strides = [1, 1, 1]} : vector<16x16x32xf32> to vector<1x16x32xf32>
    %47 = vector.shape_cast %46 : vector<1x16x32xf32> to vector<16x32xf32>
    %48 = arith.addf %45, %47 : vector<16x32xf32>
    %49 = vector.extract_strided_slice %12 {offsets = [0, 0], sizes = [16, 1], strides = [1, 1]} : vector<16x4xf32> to vector<16x1xf32>
    %50 = vector.broadcast %49 : vector<16x1xf32> to vector<16x32xf32>
    %51 = arith.mulf %50, %48 : vector<16x32xf32>
    %52 = arith.addf %37, %51 : vector<16x32xf32>
    %53 = vector.extract_strided_slice %35 {offsets = [4, 0, 0], sizes = [1, 16, 32], strides = [1, 1, 1]} : vector<16x16x32xf32> to vector<1x16x32xf32>
    %54 = vector.shape_cast %53 : vector<1x16x32xf32> to vector<16x32xf32>
    %55 = vector.extract_strided_slice %35 {offsets = [5, 0, 0], sizes = [1, 16, 32], strides = [1, 1, 1]} : vector<16x16x32xf32> to vector<1x16x32xf32>
    %56 = vector.shape_cast %55 : vector<1x16x32xf32> to vector<16x32xf32>
    %57 = arith.addf %54, %56 : vector<16x32xf32>
    %58 = vector.extract_strided_slice %35 {offsets = [6, 0, 0], sizes = [1, 16, 32], strides = [1, 1, 1]} : vector<16x16x32xf32> to vector<1x16x32xf32>
    %59 = vector.shape_cast %58 : vector<1x16x32xf32> to vector<16x32xf32>
    %60 = arith.addf %57, %59 : vector<16x32xf32>
    %61 = vector.extract_strided_slice %35 {offsets = [7, 0, 0], sizes = [1, 16, 32], strides = [1, 1, 1]} : vector<16x16x32xf32> to vector<1x16x32xf32>
    %62 = vector.shape_cast %61 : vector<1x16x32xf32> to vector<16x32xf32>
    %63 = arith.addf %60, %62 : vector<16x32xf32>
    %64 = vector.extract_strided_slice %12 {offsets = [0, 1], sizes = [16, 1], strides = [1, 1]} : vector<16x4xf32> to vector<16x1xf32>
    %65 = vector.broadcast %64 : vector<16x1xf32> to vector<16x32xf32>
    %66 = arith.mulf %65, %63 : vector<16x32xf32>
    %67 = arith.addf %52, %66 : vector<16x32xf32>
    %68 = vector.extract_strided_slice %35 {offsets = [8, 0, 0], sizes = [1, 16, 32], strides = [1, 1, 1]} : vector<16x16x32xf32> to vector<1x16x32xf32>
    %69 = vector.shape_cast %68 : vector<1x16x32xf32> to vector<16x32xf32>
    %70 = vector.extract_strided_slice %35 {offsets = [9, 0, 0], sizes = [1, 16, 32], strides = [1, 1, 1]} : vector<16x16x32xf32> to vector<1x16x32xf32>
    %71 = vector.shape_cast %70 : vector<1x16x32xf32> to vector<16x32xf32>
    %72 = arith.addf %69, %71 : vector<16x32xf32>
    %73 = vector.extract_strided_slice %35 {offsets = [10, 0, 0], sizes = [1, 16, 32], strides = [1, 1, 1]} : vector<16x16x32xf32> to vector<1x16x32xf32>
    %74 = vector.shape_cast %73 : vector<1x16x32xf32> to vector<16x32xf32>
    %75 = arith.addf %72, %74 : vector<16x32xf32>
    %76 = vector.extract_strided_slice %35 {offsets = [11, 0, 0], sizes = [1, 16, 32], strides = [1, 1, 1]} : vector<16x16x32xf32> to vector<1x16x32xf32>
    %77 = vector.shape_cast %76 : vector<1x16x32xf32> to vector<16x32xf32>
    %78 = arith.addf %75, %77 : vector<16x32xf32>
    %79 = vector.extract_strided_slice %12 {offsets = [0, 2], sizes = [16, 1], strides = [1, 1]} : vector<16x4xf32> to vector<16x1xf32>
    %80 = vector.broadcast %79 : vector<16x1xf32> to vector<16x32xf32>
    %81 = arith.mulf %80, %78 : vector<16x32xf32>
    %82 = arith.addf %67, %81 : vector<16x32xf32>
    %83 = vector.extract_strided_slice %35 {offsets = [12, 0, 0], sizes = [1, 16, 32], strides = [1, 1, 1]} : vector<16x16x32xf32> to vector<1x16x32xf32>
    %84 = vector.shape_cast %83 : vector<1x16x32xf32> to vector<16x32xf32>
    %85 = vector.extract_strided_slice %35 {offsets = [13, 0, 0], sizes = [1, 16, 32], strides = [1, 1, 1]} : vector<16x16x32xf32> to vector<1x16x32xf32>
    %86 = vector.shape_cast %85 : vector<1x16x32xf32> to vector<16x32xf32>
    %87 = arith.addf %84, %86 : vector<16x32xf32>
    %88 = vector.extract_strided_slice %35 {offsets = [14, 0, 0], sizes = [1, 16, 32], strides = [1, 1, 1]} : vector<16x16x32xf32> to vector<1x16x32xf32>
    %89 = vector.shape_cast %88 : vector<1x16x32xf32> to vector<16x32xf32>
    %90 = arith.addf %87, %89 : vector<16x32xf32>
    %91 = vector.extract_strided_slice %35 {offsets = [15, 0, 0], sizes = [1, 16, 32], strides = [1, 1, 1]} : vector<16x16x32xf32> to vector<1x16x32xf32>
    %92 = vector.shape_cast %91 : vector<1x16x32xf32> to vector<16x32xf32>
    %93 = arith.addf %90, %92 : vector<16x32xf32>
    %94 = vector.extract_strided_slice %12 {offsets = [0, 3], sizes = [16, 1], strides = [1, 1]} : vector<16x4xf32> to vector<16x1xf32>
    %95 = vector.broadcast %94 : vector<16x1xf32> to vector<16x32xf32>
    %96 = arith.mulf %95, %93 : vector<16x32xf32>
    %97 = arith.addf %82, %96 : vector<16x32xf32>
    %c16 = arith.constant 16 : index
    %c0_22 = arith.constant 0 : index
    %98 = vector.load %arg7[%c16, %c0_22] : memref<18x16xf32, #tpu.memory_space<vmem>>, vector<2x16xf32>
    %cst_23 = arith.constant dense<0.000000e+00> : vector<2x32xf32>
    %99 = tpu.matmul %98, %97, %cst_23 {dimension_numbers = #tpu.dot_dimension_numbers<[1], [0], [0], [1], [0, 0, 1, 1], [], []>} : vector<2x16xf32>, vector<16x32xf32>, vector<2x32xf32> -> vector<2x32xf32>
    %c0_24 = arith.constant 0 : index
    %c0_25 = arith.constant 0 : index
    %100 = vector.load %arg5[%c0_24, %c0_25] : memref<33x256xf32, #tpu.memory_space<vmem>>, vector<32x256xf32>
    %cst_26 = arith.constant dense<0.000000e+00> : vector<2x256xf32>
    %101 = tpu.matmul %99, %100, %cst_26 {dimension_numbers = #tpu.dot_dimension_numbers<[1], [0], [0], [1], [0, 0, 1, 1], [], []>} : vector<2x32xf32>, vector<32x256xf32>, vector<2x256xf32> -> vector<2x256xf32>
    %c32 = arith.constant 32 : index
    %c0_27 = arith.constant 0 : index
    %102 = vector.load %arg5[%c32, %c0_27] : memref<33x256xf32, #tpu.memory_space<vmem>>, vector<1x256xf32>
    %103 = vector.broadcast %102 : vector<1x256xf32> to vector<2x256xf32>
    %104 = arith.addf %101, %103 : vector<2x256xf32>
    %cst_28 = arith.constant 0.000000e+00 : f32
    %105 = vector.broadcast %cst_28 : f32 to vector<2x256xf32>
    %106 = arith.maximumf %104, %105 : vector<2x256xf32>
    %c0_29 = arith.constant 0 : index
    %c0_30 = arith.constant 0 : index
    %107 = vector.load %arg6[%c0_29, %c0_30] : memref<257x128xf32, #tpu.memory_space<vmem>>, vector<256x128xf32>
    %cst_31 = arith.constant dense<0.000000e+00> : vector<2x128xf32>
    %108 = tpu.matmul %106, %107, %cst_31 {dimension_numbers = #tpu.dot_dimension_numbers<[1], [0], [0], [1], [0, 0, 1, 1], [], []>} : vector<2x256xf32>, vector<256x128xf32>, vector<2x128xf32> -> vector<2x128xf32>
    %c256 = arith.constant 256 : index
    %c0_32 = arith.constant 0 : index
    %109 = vector.load %arg6[%c256, %c0_32] : memref<257x128xf32, #tpu.memory_space<vmem>>, vector<1x128xf32>
    %110 = vector.broadcast %109 : vector<1x128xf32> to vector<2x128xf32>
    %111 = arith.addf %108, %110 : vector<2x128xf32>
    %c0_33 = arith.constant 0 : index
    %c0_34 = arith.constant 0 : index
    %112 = vector.load %arg8[%c0_33, %c0_34] : memref<2x128xf32, #tpu.memory_space<vmem>>, vector<2x128xf32>
    tpu.vector_store %arg8[%c0_33, %c0_34], %111 {strides = array<i32>} : memref<2x128xf32, #tpu.memory_space<vmem>>, vector<2x128xf32>,
    return
  }
}

</mosaic_0001>

<llo_original>
// kernel: sentimixture_forward.1
$region0: #{sentimixture_forward.1}
  #allocation0 [shape = 'u32[]', space=smem, size = 0x4, offset = 0x4, fixed_abs, tag = 'smem constant byte address 0x4 - core index']
  #allocation1 [shape = 'u32[144,128]{1,0:T(1,128)}', space=vmem, size = 0x12000, scoped, tag = 'internal scratch']
  %s0 = inlined_call_operand.vmem [shape: f32[16,33], index: 0, kind: input, shape index: {}]
  %s1 = inlined_call_operand.vmem [shape: f32[16,33,33], index: 1, kind: input, shape index: {}]
  %s2 = inlined_call_operand.vmem [shape: f32[16,33,32], index: 2, kind: input, shape index: {}]
  %s3 = inlined_call_operand.vmem [shape: f32[4,32], index: 3, kind: input, shape index: {}]
  %s4 = inlined_call_operand.vmem [shape: f32[33,4], index: 4, kind: input, shape index: {}]
  %s5 = inlined_call_operand.vmem [shape: f32[33,256], index: 5, kind: input, shape index: {}]
  %s6 = inlined_call_operand.vmem [shape: f32[257,128], index: 6, kind: input, shape index: {}]
  %s7 = inlined_call_operand.vmem [shape: f32[18,16], index: 7, kind: input, shape index: {}]
  %s8 = inlined_call_operand.hbm [shape: f32[2,128], index: 8, kind: output, shape index: {}]
  %s9 = sld [smem:[#allocation0]]
  $region42: #{sentimixture_forward.1} parent=0
    _
  %s11 = ssub.s32 1, %s9
  %s12 = scalar_select 0, %s11, %s9
  $region1: #{sentimixture_forward.1} parent=0
    #allocation2 [shape = 'u8[1024]{0}', space=vmem, size = 0x400, scoped, tag = 'output window, operand 0, single buffered']
    #allocation3 [shape = 's32[1]{0}', space=sflag, size = 0x4, scoped, tag = 'scoped memory for sentimixture_forward.1']
    %13 = vsyncpa [#allocation3], 0
    // Predicated region
    $region2: #{sentimixture_forward.1} parent=1 // pred_check
      _
    $region3: #{sentimixture_forward.1} parent=1 // pred_check_branch
      %15 = sbr.rel (0) target = $region5
    $region4: #{sentimixture_forward.1} parent=1 // pred_region
      _
    $region5: #{sentimixture_forward.1} parent=1 // pred_fallthru
      _
    // Predicated region
    $region6: #{sentimixture_forward.1} parent=1 // pred_check
      _
    $region7: #{sentimixture_forward.1} parent=1 // pred_check_branch
      %17 = sbr.rel (0) target = $region9
    $region8: #{sentimixture_forward.1} parent=1 // pred_region
      _
    $region9: #{sentimixture_forward.1} parent=1 // pred_fallthru
      _
    // Predicated region
    $region10: #{sentimixture_forward.1} parent=1 // pred_check
      _
    $region11: #{sentimixture_forward.1} parent=1 // pred_check_branch
      %19 = sbr.rel (0) target = $region13
    $region12: #{sentimixture_forward.1} parent=1 // pred_region
      _
    $region13: #{sentimixture_forward.1} parent=1 // pred_fallthru
      _
    // Predicated region
    $region14: #{sentimixture_forward.1} parent=1 // pred_check
      _
    $region15: #{sentimixture_forward.1} parent=1 // pred_check_branch
      %21 = sbr.rel (0) target = $region17
    $region16: #{sentimixture_forward.1} parent=1 // pred_region
      _
    $region17: #{sentimixture_forward.1} parent=1 // pred_fallthru
      _
    // Predicated region
    $region18: #{sentimixture_forward.1} parent=1 // pred_check
      _
    $region19: #{sentimixture_forward.1} parent=1 // pred_check_branch
      %23 = sbr.rel (0) target = $region21
    $region20: #{sentimixture_forward.1} parent=1 // pred_region
      _
    $region21: #{sentimixture_forward.1} parent=1 // pred_fallthru
      _
    // Predicated region
    $region22: #{sentimixture_forward.1} parent=1 // pred_check
      _
    $region23: #{sentimixture_forward.1} parent=1 // pred_check_branch
      %25 = sbr.rel (0) target = $region25
    $region24: #{sentimixture_forward.1} parent=1 // pred_region
      _
    $region25: #{sentimixture_forward.1} parent=1 // pred_fallthru
      _
    // Predicated region
    $region26: #{sentimixture_forward.1} parent=1 // pred_check
      _
    $region27: #{sentimixture_forward.1} parent=1 // pred_check_branch
      %27 = sbr.rel (0) target = $region29
    $region28: #{sentimixture_forward.1} parent=1 // pred_region
      _
    $region29: #{sentimixture_forward.1} parent=1 // pred_fallthru
      _
    // Predicated region
    $region30: #{sentimixture_forward.1} parent=1 // pred_check
      _
    $region31: #{sentimixture_forward.1} parent=1 // pred_check_branch
      %29 = sbr.rel (0) target = $region33
    $region32: #{sentimixture_forward.1} parent=1 // pred_region
      _
    $region33: #{sentimixture_forward.1} parent=1 // pred_fallthru
      _
    %v30 = vld [vmem:[%s0] sm:$0xff]
    %v31 = vld [vmem:[%s0 + $0x8] sm:$0xff]
    %v32 = vld [vmem:[%s4] sm:$0xff]
    %v33 = vld [vmem:[%s4 + $0x8] sm:$0xff]
    %v34 = vld [vmem:[%s4 + $0x10] sm:$0xff]
    %v35 = vld [vmem:[%s4 + $0x18] sm:$0xff]
    %v36 = vld [vmem:[%s4 + $0x20] sm:$0x1]
    %vm37 = vcmask 269312
    %v39 = vsel %vm37, %v30, 0
    %v42 = vsel %vm37, %v31, 0
    %vm44 = vcmask 1040384
    %v46 = vsel %vm44, %v36, 0
    %48 = vmatprep.subr.mxu0 0.0
    %49 = vmatpush1.msra.mxu0 0.0
    %50 = vmatprep.subr.mxu0 0.0
    %51 = vmatpush1.msra.mxu0 0.0
    %52 = vmatprep.subr.mxu0 0.0
    %53 = vmatpush1.msra.mxu0 0.0
    %54 = vmatprep.subr.mxu0 0.0
    %55 = vmatpush1.msra.mxu0 0.0
    %56 = vmatprep.subr.mxu0 0.0
    %57 = vmatpush1.msra.mxu0 0.0
    %58 = vmatprep.subr.mxu0 0.0
    %59 = vmatpush1.msra.mxu0 0.0
    %60 = vmatprep.subr.mxu0 0.0
    %61 = vmatpush1.msra.mxu0 0.0
    %62 = vmatprep.subr.mxu0 0.0
    %63 = vmatpush1.msra.mxu0 0.0
    %64 = vmatprep.subr.mxu0 0.0
    %65 = vmatpush1.msra.mxu0 0.0
    %66 = vmatprep.subr.mxu0 0.0
    %67 = vmatpush1.msra.mxu0 0.0
    %68 = vmatprep.subr.mxu0 0.0
    %69 = vmatpush1.msra.mxu0 0.0
    %70 = vmatprep.subr.mxu0 0.0
    %71 = vmatpush1.msra.mxu0 %v46
    %72 = vmatprep.subr.mxu0 0.0
    %73 = vmatpush1.msra.mxu0 %v35
    %74 = vmatprep.subr.mxu0 0.0
    %75 = vmatpush1.msra.mxu0 %v34
    %76 = vmatprep.subr.mxu0 0.0
    %77 = vmatpush1.msra.mxu0 %v33
    %78 = vmatprep.subr.mxu0 0.0
    %79 = vmatpush1.msra.mxu0 %v32
    %80 = vmatprep.subr.mxu0 0.0
    %81 = vmatpush2.msra.mxu0 0.0
    %82 = vmatprep.subr.mxu0 0.0
    %83 = vmatpush2.msra.mxu0 0.0
    %84 = vmatprep.subr.mxu0 0.0
    %85 = vmatpush2.msra.mxu0 0.0
    %86 = vmatprep.subr.mxu0 0.0
    %87 = vmatpush2.msra.mxu0 0.0
    %88 = vmatprep.subr.mxu0 0.0
    %89 = vmatpush2.msra.mxu0 0.0
    %90 = vmatprep.subr.mxu0 0.0
    %91 = vmatpush2.msra.mxu0 0.0
    %92 = vmatprep.subr.mxu0 0.0
    %93 = vmatpush2.msra.mxu0 0.0
    %94 = vmatprep.subr.mxu0 0.0
    %95 = vmatpush2.msra.mxu0 0.0
    %96 = vmatprep.subr.mxu0 0.0
    %97 = vmatpush2.msra.mxu0 0.0
    %98 = vmatprep.subr.mxu0 0.0
    %99 = vmatpush2.msra.mxu0 0.0
    %100 = vmatprep.subr.mxu0 0.0
    %101 = vmatpush2.msra.mxu0 0.0
    %102 = vmatprep.subr.mxu0 0.0
    %103 = vmatpush2.msra.mxu0 0.0
    %104 = vmatprep.subr.mxu0 0.0
    %105 = vmatpush2.msra.mxu0 0.0
    %106 = vmatprep.subr.mxu0 0.0
    %107 = vmatpush2.msra.mxu0 0.0
    %108 = vmatprep.subr.mxu0 0.0
    %109 = vmatpush2.msra.mxu0 0.0
    %110 = vmatprep.subr.mxu0 0.0
    %111 = vmatpush2.msra.mxu0 0.0
    %112 = vmatprep.mubr.f32.mxu0 0.0
    %113 = vmatmul.mubr.f32.gmra.mxu0 %v39
    %v114 = vpop.f32.mrf.mxu0
    %v115 = vadd.f32 0.0, %v114
    %v116 = vpop.f32.mrf.mxu0
    %117 = vmatprep.mubr.f32.mxu0 0.0
    %118 = vmatmul.mubr.f32.gmra.mxu0 %v42
    %v119 = vpop.f32.mrf.mxu0
    %v120 = vadd.f32 0.0, %v119
    %v121 = vpop.f32.mrf.mxu0
    %122 = vdwg.mxu0
    %vm123 = vcmask 31744
    %v124 = vsel %vm123, %v115, -inf
    %125 = vmax.xlane.f32.xlu0 %v124
    %v126 = vpop.xlane.xlu0 %125
    %v127 = vsel %vm123, %v120, -inf
    %128 = vmax.xlane.f32.xlu0 %v127
    %v129 = vpop.xlane.xlu0 %128
    %v130 = vsub.f32 %v115, %v126
    %v131 = vsub.f32 %v120, %v129
    %v132 = vmul.f32 %v130, 1.442695
    %v133 = vpow.pop %v132
    %v134 = vmul.f32 %v131, 1.442695
    %v135 = vpow.pop %v134
    %v136 = vsel %vm123, %v133, 0.0
    %137 = vadd.xlane.f32.xlu0 %v136
    %v138 = vpop.xlane.xlu0 %137
    %v139 = vsel %vm123, %v135, 0.0
    %140 = vadd.xlane.f32.xlu0 %v139
    %v141 = vpop.xlane.xlu0 %140
    %v142 = vrcp.pop %v138
    %v143 = vrcp.pop %v141
    %v144 = vmul.f32 %v133, %v142
    %v145 = vmul.f32 %v135, %v143
    %v146 = vld [vmem:[%s1] sm:$0xff]
    %v147 = vld [vmem:[%s1 + $0x8] sm:$0xff]
    %v148 = vld [vmem:[%s1 + $0x10] sm:$0xff]
    %v149 = vld [vmem:[%s1 + $0x18] sm:$0xff]
    %v150 = vld [vmem:[%s1 + $0x20] sm:$0x1]
    %v151 = vld [vmem:[%s1 + $0x28] sm:$0xff]
    %v152 = vld [vmem:[%s1 + $0x30] sm:$0xff]
    %v153 = vld [vmem:[%s1 + $0x38] sm:$0xff]
    %v154 = vld [vmem:[%s1 + $0x40] sm:$0xff]
    %v155 = vld [vmem:[%s1 + $0x48] sm:$0x1]
    %v156 = vld [vmem:[%s1 + $0x50] sm:$0xff]
    %v157 = vld [vmem:[%s1 + $0x58] sm:$0xff]
    %v158 = vld [vmem:[%s1 + $0x60] sm:$0xff]
    %v159 = vld [vmem:[%s1 + $0x68] sm:$0xff]
    %v160 = vld [vmem:[%s1 + $0x70] sm:$0x1]
    %v161 = vld [vmem:[%s1 + $0x78] sm:$0xff]
    %v162 = vld [vmem:[%s1 + $0x80] sm:$0xff]
    %v163 = vld [vmem:[%s1 + $0x88] sm:$0xff]
    %v164 = vld [vmem:[%s1 + $0x90] sm:$0xff]
    %v165 = vld [vmem:[%s1 + $0x98] sm:$0x1]
    %v166 = vld [vmem:[%s1 + $0xa0] sm:$0xff]
    %v167 = vld [vmem:[%s1 + $0xa8] sm:$0xff]
    %v168 = vld [vmem:[%s1 + $0xb0] sm:$0xff]
    %v169 = vld [vmem:[%s1 + $0xb8] sm:$0xff]
    %v170 = vld [vmem:[%s1 + $0xc0] sm:$0x1]
    %v171 = vld [vmem:[%s1 + $0xc8] sm:$0xff]
    %v172 = vld [vmem:[%s1 + $0xd0] sm:$0xff]
    %v173 = vld [vmem:[%s1 + $0xd8] sm:$0xff]
    %v174 = vld [vmem:[%s1 + $0xe0] sm:$0xff]
    %v175 = vld [vmem:[%s1 + $0xe8] sm:$0x1]
    %v176 = vld [vmem:[%s1 + $0xf0] sm:$0xff]
    %v177 = vld [vmem:[%s1 + $0xf8] sm:$0xff]
    %v178 = vld [vmem:[%s1 + $0x100] sm:$0xff]
    %v179 = vld [vmem:[%s1 + $0x108] sm:$0xff]
    %v180 = vld [vmem:[%s1 + $0x110] sm:$0x1]
    %v181 = vld [vmem:[%s1 + $0x118] sm:$0xff]
    %v182 = vld [vmem:[%s1 + $0x120] sm:$0xff]
    %v183 = vld [vmem:[%s1 + $0x128] sm:$0xff]
    %v184 = vld [vmem:[%s1 + $0x130] sm:$0xff]
    %v185 = vld [vmem:[%s1 + $0x138] sm:$0x1]
    %v186 = vld [vmem:[%s1 + $0x140] sm:$0xff]
    %v187 = vld [vmem:[%s1 + $0x148] sm:$0xff]
    %v188 = vld [vmem:[%s1 + $0x150] sm:$0xff]
    %v189 = vld [vmem:[%s1 + $0x158] sm:$0xff]
    %v190 = vld [vmem:[%s1 + $0x160] sm:$0x1]
    %v191 = vld [vmem:[%s1 + $0x168] sm:$0xff]
    %v192 = vld [vmem:[%s1 + $0x170] sm:$0xff]
    %v193 = vld [vmem:[%s1 + $0x178] sm:$0xff]
    %v194 = vld [vmem:[%s1 + $0x180] sm:$0xff]
    %v195 = vld [vmem:[%s1 + $0x188] sm:$0x1]
    %v196 = vld [vmem:[%s1 + $0x190] sm:$0xff]
    %v197 = vld [vmem:[%s1 + $0x198] sm:$0xff]
    %v198 = vld [vmem:[%s1 + $0x1a0] sm:$0xff]
    %v199 = vld [vmem:[%s1 + $0x1a8] sm:$0xff]
    %v200 = vld [vmem:[%s1 + $0x1b0] sm:$0x1]
    %v201 = vld [vmem:[%s1 + $0x1b8] sm:$0xff]
    %v202 = vld [vmem:[%s1 + $0x1c0] sm:$0xff]
    %v203 = vld [vmem:[%s1 + $0x1c8] sm:$0xff]
    %v204 = vld [vmem:[%s1 + $0x1d0] sm:$0xff]
    %v205 = vld [vmem:[%s1 + $0x1d8] sm:$0x1]
    %v206 = vld [vmem:[%s1 + $0x1e0] sm:$0xff]
    %v207 = vld [vmem:[%s1 + $0x1e8] sm:$0xff]
    %v208 = vld [vmem:[%s1 + $0x1f0] sm:$0xff]
    %v209 = vld [vmem:[%s1 + $0x1f8] sm:$0xff]
    %v210 = vld [vmem:[%s1 + $0x200] sm:$0x1]
    %v211 = vld [vmem:[%s1 + $0x208] sm:$0xff]
    %v212 = vld [vmem:[%s1 + $0x210] sm:$0xff]
    %v213 = vld [vmem:[%s1 + $0x218] sm:$0xff]
    %v214 = vld [vmem:[%s1 + $0x220] sm:$0xff]
    %v215 = vld [vmem:[%s1 + $0x228] sm:$0x1]
    %v216 = vld [vmem:[%s1 + $0x230] sm:$0xff]
    %v217 = vld [vmem:[%s1 + $0x238] sm:$0xff]
    %v218 = vld [vmem:[%s1 + $0x240] sm:$0xff]
    %v219 = vld [vmem:[%s1 + $0x248] sm:$0xff]
    %v220 = vld [vmem:[%s1 + $0x250] sm:$0x1]
    %v221 = vld [vmem:[%s1 + $0x258] sm:$0xff]
    %v222 = vld [vmem:[%s1 + $0x260] sm:$0xff]
    %v223 = vld [vmem:[%s1 + $0x268] sm:$0xff]
    %v224 = vld [vmem:[%s1 + $0x270] sm:$0xff]
    %v225 = vld [vmem:[%s1 + $0x278] sm:$0x1]
    %v227 = vsel %vm44, %v150, 0
    %229 = vmatprep.subr.mxu0 0.0
    %230 = vmatpush1.msra.mxu0 0.0
    %231 = vmatprep.subr.mxu0 0.0
    %232 = vmatpush1.msra.mxu0 0.0
    %233 = vmatprep.subr.mxu0 0.0
    %234 = vmatpush1.msra.mxu0 0.0
    %235 = vmatprep.subr.mxu0 0.0
    %236 = vmatpush1.msra.mxu0 0.0
    %237 = vmatprep.subr.mxu0 0.0
    %238 = vmatpush1.msra.mxu0 0.0
    %239 = vmatprep.subr.mxu0 0.0
    %240 = vmatpush1.msra.mxu0 0.0
    %241 = vmatprep.subr.mxu0 0.0
    %242 = vmatpush1.msra.mxu0 0.0
    %243 = vmatprep.subr.mxu0 0.0
    %244 = vmatpush1.msra.mxu0 0.0
    %245 = vmatprep.subr.mxu0 0.0
    %246 = vmatpush1.msra.mxu0 0.0
    %247 = vmatprep.subr.mxu0 0.0
    %248 = vmatpush1.msra.mxu0 0.0
    %249 = vmatprep.subr.mxu0 0.0
    %250 = vmatpush1.msra.mxu0 0.0
    %251 = vmatprep.subr.mxu0 0.0
    %252 = vmatpush1.msra.mxu0 %v227
    %253 = vmatprep.subr.mxu0 0.0
    %254 = vmatpush1.msra.mxu0 %v149
    %255 = vmatprep.subr.mxu0 0.0
    %256 = vmatpush1.msra.mxu0 %v148
    %257 = vmatprep.subr.mxu0 0.0
    %258 = vmatpush1.msra.mxu0 %v147
    %259 = vmatprep.subr.mxu0 0.0
    %260 = vmatpush1.msra.mxu0 %v146
    %261 = vmatprep.subr.mxu0 0.0
    %262 = vmatpush2.msra.mxu0 0.0
    %263 = vmatprep.subr.mxu0 0.0
    %264 = vmatpush2.msra.mxu0 0.0
    %265 = vmatprep.subr.mxu0 0.0
    %266 = vmatpush2.msra.mxu0 0.0
    %267 = vmatprep.subr.mxu0 0.0
    %268 = vmatpush2.msra.mxu0 0.0
    %269 = vmatprep.subr.mxu0 0.0
    %270 = vmatpush2.msra.mxu0 0.0
    %271 = vmatprep.subr.mxu0 0.0
    %272 = vmatpush2.msra.mxu0 0.0
    %273 = vmatprep.subr.mxu0 0.0
    %274 = vmatpush2.msra.mxu0 0.0
    %275 = vmatprep.subr.mxu0 0.0
    %276 = vmatpush2.msra.mxu0 0.0
    %277 = vmatprep.subr.mxu0 0.0
    %278 = vmatpush2.msra.mxu0 0.0
    %279 = vmatprep.subr.mxu0 0.0
    %280 = vmatpush2.msra.mxu0 0.0
    %281 = vmatprep.subr.mxu0 0.0
    %282 = vmatpush2.msra.mxu0 0.0
    %283 = vmatprep.subr.mxu0 0.0
    %284 = vmatpush2.msra.mxu0 0.0
    %285 = vmatprep.subr.mxu0 0.0
    %286 = vmatpush2.msra.mxu0 0.0
    %287 = vmatprep.subr.mxu0 0.0
    %288 = vmatpush2.msra.mxu0 0.0
    %289 = vmatprep.subr.mxu0 0.0
    %290 = vmatpush2.msra.mxu0 0.0
    %291 = vmatprep.subr.mxu0 0.0
    %292 = vmatpush2.msra.mxu0 0.0
    %293 = vmatprep.mubr.f32.mxu0 0.0
    %294 = vmatmul.mubr.f32.gmra.mxu0 %v39
    %v295 = vpop.f32.mrf.mxu0
    %v296 = vadd.f32 0.0, %v295
    %v297 = vpop.f32.mrf.mxu0
    %298 = vmatprep.mubr.f32.mxu0 0.0
    %299 = vmatmul.mubr.f32.gmra.mxu0 %v42
    %v300 = vpop.f32.mrf.mxu0
    %v301 = vadd.f32 0.0, %v300
    %v302 = vpop.f32.mrf.mxu0
    %303 = vdwg.mxu0
    %v305 = vsel %vm44, %v155, 0
    %307 = vmatprep.subr.mxu0 0.0
    %308 = vmatpush1.msra.mxu0 0.0
    %309 = vmatprep.subr.mxu0 0.0
    %310 = vmatpush1.msra.mxu0 0.0
    %311 = vmatprep.subr.mxu0 0.0
    %312 = vmatpush1.msra.mxu0 0.0
    %313 = vmatprep.subr.mxu0 0.0
    %314 = vmatpush1.msra.mxu0 0.0
    %315 = vmatprep.subr.mxu0 0.0
    %316 = vmatpush1.msra.mxu0 0.0
    %317 = vmatprep.subr.mxu0 0.0
    %318 = vmatpush1.msra.mxu0 0.0
    %319 = vmatprep.subr.mxu0 0.0
    %320 = vmatpush1.msra.mxu0 0.0
    %321 = vmatprep.subr.mxu0 0.0
    %322 = vmatpush1.msra.mxu0 0.0
    %323 = vmatprep.subr.mxu0 0.0
    %324 = vmatpush1.msra.mxu0 0.0
    %325 = vmatprep.subr.mxu0 0.0
    %326 = vmatpush1.msra.mxu0 0.0
    %327 = vmatprep.subr.mxu0 0.0
    %328 = vmatpush1.msra.mxu0 0.0
    %329 = vmatprep.subr.mxu0 0.0
    %330 = vmatpush1.msra.mxu0 %v305
    %331 = vmatprep.subr.mxu0 0.0
    %332 = vmatpush1.msra.mxu0 %v154
    %333 = vmatprep.subr.mxu0 0.0
    %334 = vmatpush1.msra.mxu0 %v153
    %335 = vmatprep.subr.mxu0 0.0
    %336 = vmatpush1.msra.mxu0 %v152
    %337 = vmatprep.subr.mxu0 0.0
    %338 = vmatpush1.msra.mxu0 %v151
    %339 = vmatprep.subr.mxu0 0.0
    %340 = vmatpush2.msra.mxu0 0.0
    %341 = vmatprep.subr.mxu0 0.0
    %342 = vmatpush2.msra.mxu0 0.0
    %343 = vmatprep.subr.mxu0 0.0
    %344 = vmatpush2.msra.mxu0 0.0
    %345 = vmatprep.subr.mxu0 0.0
    %346 = vmatpush2.msra.mxu0 0.0
    %347 = vmatprep.subr.mxu0 0.0
    %348 = vmatpush2.msra.mxu0 0.0
    %349 = vmatprep.subr.mxu0 0.0
    %350 = vmatpush2.msra.mxu0 0.0
    %351 = vmatprep.subr.mxu0 0.0
    %352 = vmatpush2.msra.mxu0 0.0
    %353 = vmatprep.subr.mxu0 0.0
    %354 = vmatpush2.msra.mxu0 0.0
    %355 = vmatprep.subr.mxu0 0.0
    %356 = vmatpush2.msra.mxu0 0.0
    %357 = vmatprep.subr.mxu0 0.0
    %358 = vmatpush2.msra.mxu0 0.0
    %359 = vmatprep.subr.mxu0 0.0
    %360 = vmatpush2.msra.mxu0 0.0
    %361 = vmatprep.subr.mxu0 0.0
    %362 = vmatpush2.msra.mxu0 0.0
    %363 = vmatprep.subr.mxu0 0.0
    %364 = vmatpush2.msra.mxu0 0.0
    %365 = vmatprep.subr.mxu0 0.0
    %366 = vmatpush2.msra.mxu0 0.0
    %367 = vmatprep.subr.mxu0 0.0
    %368 = vmatpush2.msra.mxu0 0.0
    %369 = vmatprep.subr.mxu0 0.0
    %370 = vmatpush2.msra.mxu0 0.0
    %371 = vmatprep.mubr.f32.mxu0 0.0
    %372 = vmatmul.mubr.f32.gmra.mxu0 %v39
    %v373 = vpop.f32.mrf.mxu0
    %v374 = vadd.f32 0.0, %v373
    %v375 = vpop.f32.mrf.mxu0
    %376 = vmatprep.mubr.f32.mxu0 0.0
    %377 = vmatmul.mubr.f32.gmra.mxu0 %v42
    %v378 = vpop.f32.mrf.mxu0
    %v379 = vadd.f32 0.0, %v378
    %v380 = vpop.f32.mrf.mxu0
    %381 = vdwg.mxu0
    %v383 = vsel %vm44, %v160, 0
    %385 = vmatprep.subr.mxu0 0.0
    %386 = vmatpush1.msra.mxu0 0.0
    %387 = vmatprep.subr.mxu0 0.0
    %388 = vmatpush1.msra.mxu0 0.0
    %389 = vmatprep.subr.mxu0 0.0
    %390 = vmatpush1.msra.mxu0 0.0
    %391 = vmatprep.subr.mxu0 0.0
    %392 = vmatpush1.msra.mxu0 0.0
    %393 = vmatprep.subr.mxu0 0.0
    %394 = vmatpush1.msra.mxu0 0.0
    %395 = vmatprep.subr.mxu0 0.0
    %396 = vmatpush1.msra.mxu0 0.0
    %397 = vmatprep.subr.mxu0 0.0
    %398 = vmatpush1.msra.mxu0 0.0
    %399 = vmatprep.subr.mxu0 0.0
    %400 = vmatpush1.msra.mxu0 0.0
    %401 = vmatprep.subr.mxu0 0.0
    %402 = vmatpush1.msra.mxu0 0.0
    %403 = vmatprep.subr.mxu0 0.0
    %404 = vmatpush1.msra.mxu0 0.0
    %405 = vmatprep.subr.mxu0 0.0
    %406 = vmatpush1.msra.mxu0 0.0
    %407 = vmatprep.subr.mxu0 0.0
    %408 = vmatpush1.msra.mxu0 %v383
    %409 = vmatprep.subr.mxu0 0.0
    %410 = vmatpush1.msra.mxu0 %v159
    %411 = vmatprep.subr.mxu0 0.0
    %412 = vmatpush1.msra.mxu0 %v158
    %413 = vmatprep.subr.mxu0 0.0
    %414 = vmatpush1.msra.mxu0 %v157
    %415 = vmatprep.subr.mxu0 0.0
    %416 = vmatpush1.msra.mxu0 %v156
    %417 = vmatprep.subr.mxu0 0.0
    %418 = vmatpush2.msra.mxu0 0.0
    %419 = vmatprep.subr.mxu0 0.0
    %420 = vmatpush2.msra.mxu0 0.0
    %421 = vmatprep.subr.mxu0 0.0
    %422 = vmatpush2.msra.mxu0 0.0
    %423 = vmatprep.subr.mxu0 0.0
    %424 = vmatpush2.msra.mxu0 0.0
    %425 = vmatprep.subr.mxu0 0.0
    %426 = vmatpush2.msra.mxu0 0.0
    %427 = vmatprep.subr.mxu0 0.0
    %428 = vmatpush2.msra.mxu0 0.0
    %429 = vmatprep.subr.mxu0 0.0
    %430 = vmatpush2.msra.mxu0 0.0
    %431 = vmatprep.subr.mxu0 0.0
    %432 = vmatpush2.msra.mxu0 0.0
    %433 = vmatprep.subr.mxu0 0.0
    %434 = vmatpush2.msra.mxu0 0.0
    %435 = vmatprep.subr.mxu0 0.0
    %436 = vmatpush2.msra.mxu0 0.0
    %437 = vmatprep.subr.mxu0 0.0
    %438 = vmatpush2.msra.mxu0 0.0
    %439 = vmatprep.subr.mxu0 0.0
    %440 = vmatpush2.msra.mxu0 0.0
    %441 = vmatprep.subr.mxu0 0.0
    %442 = vmatpush2.msra.mxu0 0.0
    %443 = vmatprep.subr.mxu0 0.0
    %444 = vmatpush2.msra.mxu0 0.0
    %445 = vmatprep.subr.mxu0 0.0
    %446 = vmatpush2.msra.mxu0 0.0
    %447 = vmatprep.subr.mxu0 0.0
    %448 = vmatpush2.msra.mxu0 0.0
    %449 = vmatprep.mubr.f32.mxu0 0.0
    %450 = vmatmul.mubr.f32.gmra.mxu0 %v39
    %v451 = vpop.f32.mrf.mxu0
    %v452 = vadd.f32 0.0, %v451
    %v453 = vpop.f32.mrf.mxu0
    %454 = vmatprep.mubr.f32.mxu0 0.0
    %455 = vmatmul.mubr.f32.gmra.mxu0 %v42
    %v456 = vpop.f32.mrf.mxu0
    %v457 = vadd.f32 0.0, %v456
    %v458 = vpop.f32.mrf.mxu0
    %459 = vdwg.mxu0
    %v461 = vsel %vm44, %v165, 0
    %463 = vmatprep.subr.mxu0 0.0
    %464 = vmatpush1.msra.mxu0 0.0
    %465 = vmatprep.subr.mxu0 0.0
    %466 = vmatpush1.msra.mxu0 0.0
    %467 = vmatprep.subr.mxu0 0.0
    %468 = vmatpush1.msra.mxu0 0.0
    %469 = vmatprep.subr.mxu0 0.0
    %470 = vmatpush1.msra.mxu0 0.0
    %471 = vmatprep.subr.mxu0 0.0
    %472 = vmatpush1.msra.mxu0 0.0
    %473 = vmatprep.subr.mxu0 0.0
    %474 = vmatpush1.msra.mxu0 0.0
    %475 = vmatprep.subr.mxu0 0.0
    %476 = vmatpush1.msra.mxu0 0.0
    %477 = vmatprep.subr.mxu0 0.0
    %478 = vmatpush1.msra.mxu0 0.0
    %479 = vmatprep.subr.mxu0 0.0
    %480 = vmatpush1.msra.mxu0 0.0
    %481 = vmatprep.subr.mxu0 0.0
    %482 = vmatpush1.msra.mxu0 0.0
    %483 = vmatprep.subr.mxu0 0.0
    %484 = vmatpush1.msra.mxu0 0.0
    %485 = vmatprep.subr.mxu0 0.0
    %486 = vmatpush1.msra.mxu0 %v461
    %487 = vmatprep.subr.mxu0 0.0
    %488 = vmatpush1.msra.mxu0 %v164
    %489 = vmatprep.subr.mxu0 0.0
    %490 = vmatpush1.msra.mxu0 %v163
    %491 = vmatprep.subr.mxu0 0.0
    %492 = vmatpush1.msra.mxu0 %v162
    %493 = vmatprep.subr.mxu0 0.0
    %494 = vmatpush1.msra.mxu0 %v161
    %495 = vmatprep.subr.mxu0 0.0
    %496 = vmatpush2.msra.mxu0 0.0
    %497 = vmatprep.subr.mxu0 0.0
    %498 = vmatpush2.msra.mxu0 0.0
    %499 = vmatprep.subr.mxu0 0.0
    %500 = vmatpush2.msra.mxu0 0.0
    %501 = vmatprep.subr.mxu0 0.0
    %502 = vmatpush2.msra.mxu0 0.0
    %503 = vmatprep.subr.mxu0 0.0
    %504 = vmatpush2.msra.mxu0 0.0
    %505 = vmatprep.subr.mxu0 0.0
    %506 = vmatpush2.msra.mxu0 0.0
    %507 = vmatprep.subr.mxu0 0.0
    %508 = vmatpush2.msra.mxu0 0.0
    %509 = vmatprep.subr.mxu0 0.0
    %510 = vmatpush2.msra.mxu0 0.0
    %511 = vmatprep.subr.mxu0 0.0
    %512 = vmatpush2.msra.mxu0 0.0
    %513 = vmatprep.subr.mxu0 0.0
    %514 = vmatpush2.msra.mxu0 0.0
    %515 = vmatprep.subr.mxu0 0.0
    %516 = vmatpush2.msra.mxu0 0.0
    %517 = vmatprep.subr.mxu0 0.0
    %518 = vmatpush2.msra.mxu0 0.0
    %519 = vmatprep.subr.mxu0 0.0
    %520 = vmatpush2.msra.mxu0 0.0
    %521 = vmatprep.subr.mxu0 0.0
    %522 = vmatpush2.msra.mxu0 0.0
    %523 = vmatprep.subr.mxu0 0.0
    %524 = vmatpush2.msra.mxu0 0.0
    %525 = vmatprep.subr.mxu0 0.0
    %526 = vmatpush2.msra.mxu0 0.0
    %527 = vmatprep.mubr.f32.mxu0 0.0
    %528 = vmatmul.mubr.f32.gmra.mxu0 %v39
    %v529 = vpop.f32.mrf.mxu0
    %v530 = vadd.f32 0.0, %v529
    %v531 = vpop.f32.mrf.mxu0
    %532 = vmatprep.mubr.f32.mxu0 0.0
    %533 = vmatmul.mubr.f32.gmra.mxu0 %v42
    %v534 = vpop.f32.mrf.mxu0
    %v535 = vadd.f32 0.0, %v534
    %v536 = vpop.f32.mrf.mxu0
    %537 = vdwg.mxu0
    %v539 = vsel %vm44, %v170, 0
    %541 = vmatprep.subr.mxu0 0.0
    %542 = vmatpush1.msra.mxu0 0.0
    %543 = vmatprep.subr.mxu0 0.0
    %544 = vmatpush1.msra.mxu0 0.0
    %545 = vmatprep.subr.mxu0 0.0
    %546 = vmatpush1.msra.mxu0 0.0
    %547 = vmatprep.subr.mxu0 0.0
    %548 = vmatpush1.msra.mxu0 0.0
    %549 = vmatprep.subr.mxu0 0.0
    %550 = vmatpush1.msra.mxu0 0.0
    %551 = vmatprep.subr.mxu0 0.0
    %552 = vmatpush1.msra.mxu0 0.0
    %553 = vmatprep.subr.mxu0 0.0
    %554 = vmatpush1.msra.mxu0 0.0
    %555 = vmatprep.subr.mxu0 0.0
    %556 = vmatpush1.msra.mxu0 0.0
    %557 = vmatprep.subr.mxu0 0.0
    %558 = vmatpush1.msra.mxu0 0.0
    %559 = vmatprep.subr.mxu0 0.0
    %560 = vmatpush1.msra.mxu0 0.0
    %561 = vmatprep.subr.mxu0 0.0
    %562 = vmatpush1.msra.mxu0 0.0
    %563 = vmatprep.subr.mxu0 0.0
    %564 = vmatpush1.msra.mxu0 %v539
    %565 = vmatprep.subr.mxu0 0.0
    %566 = vmatpush1.msra.mxu0 %v169
    %567 = vmatprep.subr.mxu0 0.0
    %568 = vmatpush1.msra.mxu0 %v168
    %569 = vmatprep.subr.mxu0 0.0
    %570 = vmatpush1.msra.mxu0 %v167
    %571 = vmatprep.subr.mxu0 0.0
    %572 = vmatpush1.msra.mxu0 %v166
    %573 = vmatprep.subr.mxu0 0.0
    %574 = vmatpush2.msra.mxu0 0.0
    %575 = vmatprep.subr.mxu0 0.0
    %576 = vmatpush2.msra.mxu0 0.0
    %577 = vmatprep.subr.mxu0 0.0
    %578 = vmatpush2.msra.mxu0 0.0
    %579 = vmatprep.subr.mxu0 0.0
    %580 = vmatpush2.msra.mxu0 0.0
    %581 = vmatprep.subr.mxu0 0.0
    %582 = vmatpush2.msra.mxu0 0.0
    %583 = vmatprep.subr.mxu0 0.0
    %584 = vmatpush2.msra.mxu0 0.0
    %585 = vmatprep.subr.mxu0 0.0
    %586 = vmatpush2.msra.mxu0 0.0
    %587 = vmatprep.subr.mxu0 0.0
    %588 = vmatpush2.msra.mxu0 0.0
    %589 = vmatprep.subr.mxu0 0.0
    %590 = vmatpush2.msra.mxu0 0.0
    %591 = vmatprep.subr.mxu0 0.0
    %592 = vmatpush2.msra.mxu0 0.0
    %593 = vmatprep.subr.mxu0 0.0
    %594 = vmatpush2.msra.mxu0 0.0
    %595 = vmatprep.subr.mxu0 0.0
    %596 = vmatpush2.msra.mxu0 0.0
    %597 = vmatprep.subr.mxu0 0.0
    %598 = vmatpush2.msra.mxu0 0.0
    %599 = vmatprep.subr.mxu0 0.0
    %600 = vmatpush2.msra.mxu0 0.0
    %601 = vmatprep.subr.mxu0 0.0
    %602 = vmatpush2.msra.mxu0 0.0
    %603 = vmatprep.subr.mxu0 0.0
    %604 = vmatpush2.msra.mxu0 0.0
    %605 = vmatprep.mubr.f32.mxu0 0.0
    %606 = vmatmul.mubr.f32.gmra.mxu0 %v39
    %v607 = vpop.f32.mrf.mxu0
    %v608 = vadd.f32 0.0, %v607
    %v609 = vpop.f32.mrf.mxu0
    %610 = vmatprep.mubr.f32.mxu0 0.0
    %611 = vmatmul.mubr.f32.gmra.mxu0 %v42
    %v612 = vpop.f32.mrf.mxu0
    %v613 = vadd.f32 0.0, %v612
    %v614 = vpop.f32.mrf.mxu0
    %615 = vdwg.mxu0
    %v617 = vsel %vm44, %v175, 0
    %619 = vmatprep.subr.mxu0 0.0
    %620 = vmatpush1.msra.mxu0 0.0
    %621 = vmatprep.subr.mxu0 0.0
    %622 = vmatpush1.msra.mxu0 0.0
    %623 = vmatprep.subr.mxu0 0.0
    %624 = vmatpush1.msra.mxu0 0.0
    %625 = vmatprep.subr.mxu0 0.0
    %626 = vmatpush1.msra.mxu0 0.0
    %627 = vmatprep.subr.mxu0 0.0
    %628 = vmatpush1.msra.mxu0 0.0
    %629 = vmatprep.subr.mxu0 0.0
    %630 = vmatpush1.msra.mxu0 0.0
    %631 = vmatprep.subr.mxu0 0.0
    %632 = vmatpush1.msra.mxu0 0.0
    %633 = vmatprep.subr.mxu0 0.0
    %634 = vmatpush1.msra.mxu0 0.0
    %635 = vmatprep.subr.mxu0 0.0
    %636 = vmatpush1.msra.mxu0 0.0
    %637 = vmatprep.subr.mxu0 0.0
    %638 = vmatpush1.msra.mxu0 0.0
    %639 = vmatprep.subr.mxu0 0.0
    %640 = vmatpush1.msra.mxu0 0.0
    %641 = vmatprep.subr.mxu0 0.0
    %642 = vmatpush1.msra.mxu0 %v617
    %643 = vmatprep.subr.mxu0 0.0
    %644 = vmatpush1.msra.mxu0 %v174
    %645 = vmatprep.subr.mxu0 0.0
    %646 = vmatpush1.msra.mxu0 %v173
    %647 = vmatprep.subr.mxu0 0.0
    %648 = vmatpush1.msra.mxu0 %v172
    %649 = vmatprep.subr.mxu0 0.0
    %650 = vmatpush1.msra.mxu0 %v171
    %651 = vmatprep.subr.mxu0 0.0
    %652 = vmatpush2.msra.mxu0 0.0
    %653 = vmatprep.subr.mxu0 0.0
    %654 = vmatpush2.msra.mxu0 0.0
    %655 = vmatprep.subr.mxu0 0.0
    %656 = vmatpush2.msra.mxu0 0.0
    %657 = vmatprep.subr.mxu0 0.0
    %658 = vmatpush2.msra.mxu0 0.0
    %659 = vmatprep.subr.mxu0 0.0
    %660 = vmatpush2.msra.mxu0 0.0
    %661 = vmatprep.subr.mxu0 0.0
    %662 = vmatpush2.msra.mxu0 0.0
    %663 = vmatprep.subr.mxu0 0.0
    %664 = vmatpush2.msra.mxu0 0.0
    %665 = vmatprep.subr.mxu0 0.0
    %666 = vmatpush2.msra.mxu0 0.0
    %667 = vmatprep.subr.mxu0 0.0
    %668 = vmatpush2.msra.mxu0 0.0
    %669 = vmatprep.subr.mxu0 0.0
    %670 = vmatpush2.msra.mxu0 0.0
    %671 = vmatprep.subr.mxu0 0.0
    %672 = vmatpush2.msra.mxu0 0.0
    %673 = vmatprep.subr.mxu0 0.0
    %674 = vmatpush2.msra.mxu0 0.0
    %675 = vmatprep.subr.mxu0 0.0
    %676 = vmatpush2.msra.mxu0 0.0
    %677 = vmatprep.subr.mxu0 0.0
    %678 = vmatpush2.msra.mxu0 0.0
    %679 = vmatprep.subr.mxu0 0.0
    %680 = vmatpush2.msra.mxu0 0.0
    %681 = vmatprep.subr.mxu0 0.0
    %682 = vmatpush2.msra.mxu0 0.0
    %683 = vmatprep.mubr.f32.mxu0 0.0
    %684 = vmatmul.mubr.f32.gmra.mxu0 %v39
    %v685 = vpop.f32.mrf.mxu0
    %v686 = vadd.f32 0.0, %v685
    %v687 = vpop.f32.mrf.mxu0
    %688 = vmatprep.mubr.f32.mxu0 0.0
    %689 = vmatmul.mubr.f32.gmra.mxu0 %v42
    %v690 = vpop.f32.mrf.mxu0
    %v691 = vadd.f32 0.0, %v690
    %v692 = vpop.f32.mrf.mxu0
    %693 = vdwg.mxu0
    %v695 = vsel %vm44, %v180, 0
    %697 = vmatprep.subr.mxu0 0.0
    %698 = vmatpush1.msra.mxu0 0.0
    %699 = vmatprep.subr.mxu0 0.0
    %700 = vmatpush1.msra.mxu0 0.0
    %701 = vmatprep.subr.mxu0 0.0
    %702 = vmatpush1.msra.mxu0 0.0
    %703 = vmatprep.subr.mxu0 0.0
    %704 = vmatpush1.msra.mxu0 0.0
    %705 = vmatprep.subr.mxu0 0.0
    %706 = vmatpush1.msra.mxu0 0.0
    %707 = vmatprep.subr.mxu0 0.0
    %708 = vmatpush1.msra.mxu0 0.0
    %709 = vmatprep.subr.mxu0 0.0
    %710 = vmatpush1.msra.mxu0 0.0
    %711 = vmatprep.subr.mxu0 0.0
    %712 = vmatpush1.msra.mxu0 0.0
    %713 = vmatprep.subr.mxu0 0.0
    %714 = vmatpush1.msra.mxu0 0.0
    %715 = vmatprep.subr.mxu0 0.0
    %716 = vmatpush1.msra.mxu0 0.0
    %717 = vmatprep.subr.mxu0 0.0
    %718 = vmatpush1.msra.mxu0 0.0
    %719 = vmatprep.subr.mxu0 0.0
    %720 = vmatpush1.msra.mxu0 %v695
    %721 = vmatprep.subr.mxu0 0.0
    %722 = vmatpush1.msra.mxu0 %v179
    %723 = vmatprep.subr.mxu0 0.0
    %724 = vmatpush1.msra.mxu0 %v178
    %725 = vmatprep.subr.mxu0 0.0
    %726 = vmatpush1.msra.mxu0 %v177
    %727 = vmatprep.subr.mxu0 0.0
    %728 = vmatpush1.msra.mxu0 %v176
    %729 = vmatprep.subr.mxu0 0.0
    %730 = vmatpush2.msra.mxu0 0.0
    %731 = vmatprep.subr.mxu0 0.0
    %732 = vmatpush2.msra.mxu0 0.0
    %733 = vmatprep.subr.mxu0 0.0
    %734 = vmatpush2.msra.mxu0 0.0
    %735 = vmatprep.subr.mxu0 0.0
    %736 = vmatpush2.msra.mxu0 0.0
    %737 = vmatprep.subr.mxu0 0.0
    %738 = vmatpush2.msra.mxu0 0.0
    %739 = vmatprep.subr.mxu0 0.0
    %740 = vmatpush2.msra.mxu0 0.0
    %741 = vmatprep.subr.mxu0 0.0
    %742 = vmatpush2.msra.mxu0 0.0
    %743 = vmatprep.subr.mxu0 0.0
    %744 = vmatpush2.msra.mxu0 0.0
    %745 = vmatprep.subr.mxu0 0.0
    %746 = vmatpush2.msra.mxu0 0.0
    %747 = vmatprep.subr.mxu0 0.0
    %748 = vmatpush2.msra.mxu0 0.0
    %749 = vmatprep.subr.mxu0 0.0
    %750 = vmatpush2.msra.mxu0 0.0
    %751 = vmatprep.subr.mxu0 0.0
    %752 = vmatpush2.msra.mxu0 0.0
    %753 = vmatprep.subr.mxu0 0.0
    %754 = vmatpush2.msra.mxu0 0.0
    %755 = vmatprep.subr.mxu0 0.0
    %756 = vmatpush2.msra.mxu0 0.0
    %757 = vmatprep.subr.mxu0 0.0
    %758 = vmatpush2.msra.mxu0 0.0
    %759 = vmatprep.subr.mxu0 0.0
    %760 = vmatpush2.msra.mxu0 0.0
    %761 = vmatprep.mubr.f32.mxu0 0.0
    %762 = vmatmul.mubr.f32.gmra.mxu0 %v39
    %v763 = vpop.f32.mrf.mxu0
    %v764 = vadd.f32 0.0, %v763
    %v765 = vpop.f32.mrf.mxu0
    %766 = vmatprep.mubr.f32.mxu0 0.0
    %767 = vmatmul.mubr.f32.gmra.mxu0 %v42
    %v768 = vpop.f32.mrf.mxu0
    %v769 = vadd.f32 0.0, %v768
    %v770 = vpop.f32.mrf.mxu0
    %771 = vdwg.mxu0
    %v773 = vsel %vm44, %v185, 0
    %775 = vmatprep.subr.mxu0 0.0
    %776 = vmatpush1.msra.mxu0 0.0
    %777 = vmatprep.subr.mxu0 0.0
    %778 = vmatpush1.msra.mxu0 0.0
    %779 = vmatprep.subr.mxu0 0.0
    %780 = vmatpush1.msra.mxu0 0.0
    %781 = vmatprep.subr.mxu0 0.0
    %782 = vmatpush1.msra.mxu0 0.0
    %783 = vmatprep.subr.mxu0 0.0
    %784 = vmatpush1.msra.mxu0 0.0
    %785 = vmatprep.subr.mxu0 0.0
    %786 = vmatpush1.msra.mxu0 0.0
    %787 = vmatprep.subr.mxu0 0.0
    %788 = vmatpush1.msra.mxu0 0.0
    %789 = vmatprep.subr.mxu0 0.0
    %790 = vmatpush1.msra.mxu0 0.0
    %791 = vmatprep.subr.mxu0 0.0
    %792 = vmatpush1.msra.mxu0 0.0
    %793 = vmatprep.subr.mxu0 0.0
    %794 = vmatpush1.msra.mxu0 0.0
    %795 = vmatprep.subr.mxu0 0.0
    %796 = vmatpush1.msra.mxu0 0.0
    %797 = vmatprep.subr.mxu0 0.0
    %798 = vmatpush1.msra.mxu0 %v773
    %799 = vmatprep.subr.mxu0 0.0
    %800 = vmatpush1.msra.mxu0 %v184
    %801 = vmatprep.subr.mxu0 0.0
    %802 = vmatpush1.msra.mxu0 %v183
    %803 = vmatprep.subr.mxu0 0.0
    %804 = vmatpush1.msra.mxu0 %v182
    %805 = vmatprep.subr.mxu0 0.0
    %806 = vmatpush1.msra.mxu0 %v181
    %807 = vmatprep.subr.mxu0 0.0
    %808 = vmatpush2.msra.mxu0 0.0
    %809 = vmatprep.subr.mxu0 0.0
    %810 = vmatpush2.msra.mxu0 0.0
    %811 = vmatprep.subr.mxu0 0.0
    %812 = vmatpush2.msra.mxu0 0.0
    %813 = vmatprep.subr.mxu0 0.0
    %814 = vmatpush2.msra.mxu0 0.0
    %815 = vmatprep.subr.mxu0 0.0
    %816 = vmatpush2.msra.mxu0 0.0
    %817 = vmatprep.subr.mxu0 0.0
    %818 = vmatpush2.msra.mxu0 0.0
    %819 = vmatprep.subr.mxu0 0.0
    %820 = vmatpush2.msra.mxu0 0.0
    %821 = vmatprep.subr.mxu0 0.0
    %822 = vmatpush2.msra.mxu0 0.0
    %823 = vmatprep.subr.mxu0 0.0
    %824 = vmatpush2.msra.mxu0 0.0
    %825 = vmatprep.subr.mxu0 0.0
    %826 = vmatpush2.msra.mxu0 0.0
    %827 = vmatprep.subr.mxu0 0.0
    %828 = vmatpush2.msra.mxu0 0.0
    %829 = vmatprep.subr.mxu0 0.0
    %830 = vmatpush2.msra.mxu0 0.0
    %831 = vmatprep.subr.mxu0 0.0
    %832 = vmatpush2.msra.mxu0 0.0
    %833 = vmatprep.subr.mxu0 0.0
    %834 = vmatpush2.msra.mxu0 0.0
    %835 = vmatprep.subr.mxu0 0.0
    %836 = vmatpush2.msra.mxu0 0.0
    %837 = vmatprep.subr.mxu0 0.0
    %838 = vmatpush2.msra.mxu0 0.0
    %839 = vmatprep.mubr.f32.mxu0 0.0
    %840 = vmatmul.mubr.f32.gmra.mxu0 %v39
    %v841 = vpop.f32.mrf.mxu0
    %v842 = vadd.f32 0.0, %v841
    %v843 = vpop.f32.mrf.mxu0
    %844 = vmatprep.mubr.f32.mxu0 0.0
    %845 = vmatmul.mubr.f32.gmra.mxu0 %v42
    %v846 = vpop.f32.mrf.mxu0
    %v847 = vadd.f32 0.0, %v846
    %v848 = vpop.f32.mrf.mxu0
    %849 = vdwg.mxu0
    %v851 = vsel %vm44, %v190, 0
    %853 = vmatprep.subr.mxu0 0.0
    %854 = vmatpush1.msra.mxu0 0.0
    %855 = vmatprep.subr.mxu0 0.0
    %856 = vmatpush1.msra.mxu0 0.0
    %857 = vmatprep.subr.mxu0 0.0
    %858 = vmatpush1.msra.mxu0 0.0
    %859 = vmatprep.subr.mxu0 0.0
    %860 = vmatpush1.msra.mxu0 0.0
    %861 = vmatprep.subr.mxu0 0.0
    %862 = vmatpush1.msra.mxu0 0.0
    %863 = vmatprep.subr.mxu0 0.0
    %864 = vmatpush1.msra.mxu0 0.0
    %865 = vmatprep.subr.mxu0 0.0
    %866 = vmatpush1.msra.mxu0 0.0
    %867 = vmatprep.subr.mxu0 0.0
    %868 = vmatpush1.msra.mxu0 0.0
    %869 = vmatprep.subr.mxu0 0.0
    %870 = vmatpush1.msra.mxu0 0.0
    %871 = vmatprep.subr.mxu0 0.0
    %872 = vmatpush1.msra.mxu0 0.0
    %873 = vmatprep.subr.mxu0 0.0
    %874 = vmatpush1.msra.mxu0 0.0
    %875 = vmatprep.subr.mxu0 0.0
    %876 = vmatpush1.msra.mxu0 %v851
    %877 = vmatprep.subr.mxu0 0.0
    %878 = vmatpush1.msra.mxu0 %v189
    %879 = vmatprep.subr.mxu0 0.0
    %880 = vmatpush1.msra.mxu0 %v188
    %881 = vmatprep.subr.mxu0 0.0
    %882 = vmatpush1.msra.mxu0 %v187
    %883 = vmatprep.subr.mxu0 0.0
    %884 = vmatpush1.msra.mxu0 %v186
    %885 = vmatprep.subr.mxu0 0.0
    %886 = vmatpush2.msra.mxu0 0.0
    %887 = vmatprep.subr.mxu0 0.0
    %888 = vmatpush2.msra.mxu0 0.0
    %889 = vmatprep.subr.mxu0 0.0
    %890 = vmatpush2.msra.mxu0 0.0
    %891 = vmatprep.subr.mxu0 0.0
    %892 = vmatpush2.msra.mxu0 0.0
    %893 = vmatprep.subr.mxu0 0.0
    %894 = vmatpush2.msra.mxu0 0.0
    %895 = vmatprep.subr.mxu0 0.0
    %896 = vmatpush2.msra.mxu0 0.0
    %897 = vmatprep.subr.mxu0 0.0
    %898 = vmatpush2.msra.mxu0 0.0
    %899 = vmatprep.subr.mxu0 0.0
    %900 = vmatpush2.msra.mxu0 0.0
    %901 = vmatprep.subr.mxu0 0.0
    %902 = vmatpush2.msra.mxu0 0.0
    %903 = vmatprep.subr.mxu0 0.0
    %904 = vmatpush2.msra.mxu0 0.0
    %905 = vmatprep.subr.mxu0 0.0
    %906 = vmatpush2.msra.mxu0 0.0
    %907 = vmatprep.subr.mxu0 0.0
    %908 = vmatpush2.msra.mxu0 0.0
    %909 = vmatprep.subr.mxu0 0.0
    %910 = vmatpush2.msra.mxu0 0.0
    %911 = vmatprep.subr.mxu0 0.0
    %912 = vmatpush2.msra.mxu0 0.0
    %913 = vmatprep.subr.mxu0 0.0
    %914 = vmatpush2.msra.mxu0 0.0
    %915 = vmatprep.subr.mxu0 0.0
    %916 = vmatpush2.msra.mxu0 0.0
    %917 = vmatprep.mubr.f32.mxu0 0.0
    %918 = vmatmul.mubr.f32.gmra.mxu0 %v39
    %v919 = vpop.f32.mrf.mxu0
    %v920 = vadd.f32 0.0, %v919
    %v921 = vpop.f32.mrf.mxu0
    %922 = vmatprep.mubr.f32.mxu0 0.0
    %923 = vmatmul.mubr.f32.gmra.mxu0 %v42
    %v924 = vpop.f32.mrf.mxu0
    %v925 = vadd.f32 0.0, %v924
    %v926 = vpop.f32.mrf.mxu0
    %927 = vdwg.mxu0
    %v929 = vsel %vm44, %v195, 0
    %931 = vmatprep.subr.mxu0 0.0
    %932 = vmatpush1.msra.mxu0 0.0
    %933 = vmatprep.subr.mxu0 0.0
    %934 = vmatpush1.msra.mxu0 0.0
    %935 = vmatprep.subr.mxu0 0.0
    %936 = vmatpush1.msra.mxu0 0.0
    %937 = vmatprep.subr.mxu0 0.0
    %938 = vmatpush1.msra.mxu0 0.0
    %939 = vmatprep.subr.mxu0 0.0
    %940 = vmatpush1.msra.mxu0 0.0
    %941 = vmatprep.subr.mxu0 0.0
    %942 = vmatpush1.msra.mxu0 0.0
    %943 = vmatprep.subr.mxu0 0.0
    %944 = vmatpush1.msra.mxu0 0.0
    %945 = vmatprep.subr.mxu0 0.0
    %946 = vmatpush1.msra.mxu0 0.0
    %947 = vmatprep.subr.mxu0 0.0
    %948 = vmatpush1.msra.mxu0 0.0
    %949 = vmatprep.subr.mxu0 0.0
    %950 = vmatpush1.msra.mxu0 0.0
    %951 = vmatprep.subr.mxu0 0.0
    %952 = vmatpush1.msra.mxu0 0.0
    %953 = vmatprep.subr.mxu0 0.0
    %954 = vmatpush1.msra.mxu0 %v929
    %955 = vmatprep.subr.mxu0 0.0
    %956 = vmatpush1.msra.mxu0 %v194
    %957 = vmatprep.subr.mxu0 0.0
    %958 = vmatpush1.msra.mxu0 %v193
    %959 = vmatprep.subr.mxu0 0.0
    %960 = vmatpush1.msra.mxu0 %v192
    %961 = vmatprep.subr.mxu0 0.0
    %962 = vmatpush1.msra.mxu0 %v191
    %963 = vmatprep.subr.mxu0 0.0
    %964 = vmatpush2.msra.mxu0 0.0
    %965 = vmatprep.subr.mxu0 0.0
    %966 = vmatpush2.msra.mxu0 0.0
    %967 = vmatprep.subr.mxu0 0.0
    %968 = vmatpush2.msra.mxu0 0.0
    %969 = vmatprep.subr.mxu0 0.0
    %970 = vmatpush2.msra.mxu0 0.0
    %971 = vmatprep.subr.mxu0 0.0
    %972 = vmatpush2.msra.mxu0 0.0
    %973 = vmatprep.subr.mxu0 0.0
    %974 = vmatpush2.msra.mxu0 0.0
    %975 = vmatprep.subr.mxu0 0.0
    %976 = vmatpush2.msra.mxu0 0.0
    %977 = vmatprep.subr.mxu0 0.0
    %978 = vmatpush2.msra.mxu0 0.0
    %979 = vmatprep.subr.mxu0 0.0
    %980 = vmatpush2.msra.mxu0 0.0
    %981 = vmatprep.subr.mxu0 0.0
    %982 = vmatpush2.msra.mxu0 0.0
    %983 = vmatprep.subr.mxu0 0.0
    %984 = vmatpush2.msra.mxu0 0.0
    %985 = vmatprep.subr.mxu0 0.0
    %986 = vmatpush2.msra.mxu0 0.0
    %987 = vmatprep.subr.mxu0 0.0
    %988 = vmatpush2.msra.mxu0 0.0
    %989 = vmatprep.subr.mxu0 0.0
    %990 = vmatpush2.msra.mxu0 0.0
    %991 = vmatprep.subr.mxu0 0.0
    %992 = vmatpush2.msra.mxu0 0.0
    %993 = vmatprep.subr.mxu0 0.0
    %994 = vmatpush2.msra.mxu0 0.0
    %995 = vmatprep.mubr.f32.mxu0 0.0
    %996 = vmatmul.mubr.f32.gmra.mxu0 %v39
    %v997 = vpop.f32.mrf.mxu0
    %v998 = vadd.f32 0.0, %v997
    %v999 = vpop.f32.mrf.mxu0
    %1000 = vmatprep.mubr.f32.mxu0 0.0
    %1001 = vmatmul.mubr.f32.gmra.mxu0 %v42
    %v1002 = vpop.f32.mrf.mxu0
    %v1003 = vadd.f32 0.0, %v1002
    %v1004 = vpop.f32.mrf.mxu0
    %1005 = vdwg.mxu0
    %v1007 = vsel %vm44, %v200, 0
    %1009 = vmatprep.subr.mxu0 0.0
    %1010 = vmatpush1.msra.mxu0 0.0
    %1011 = vmatprep.subr.mxu0 0.0
    %1012 = vmatpush1.msra.mxu0 0.0
    %1013 = vmatprep.subr.mxu0 0.0
    %1014 = vmatpush1.msra.mxu0 0.0
    %1015 = vmatprep.subr.mxu0 0.0
    %1016 = vmatpush1.msra.mxu0 0.0
    %1017 = vmatprep.subr.mxu0 0.0
    %1018 = vmatpush1.msra.mxu0 0.0
    %1019 = vmatprep.subr.mxu0 0.0
    %1020 = vmatpush1.msra.mxu0 0.0
    %1021 = vmatprep.subr.mxu0 0.0
    %1022 = vmatpush1.msra.mxu0 0.0
    %1023 = vmatprep.subr.mxu0 0.0
    %1024 = vmatpush1.msra.mxu0 0.0
    %1025 = vmatprep.subr.mxu0 0.0
    %1026 = vmatpush1.msra.mxu0 0.0
    %1027 = vmatprep.subr.mxu0 0.0
    %1028 = vmatpush1.msra.mxu0 0.0
    %1029 = vmatprep.subr.mxu0 0.0
    %1030 = vmatpush1.msra.mxu0 0.0
    %1031 = vmatprep.subr.mxu0 0.0
    %1032 = vmatpush1.msra.mxu0 %v1007
    %1033 = vmatprep.subr.mxu0 0.0
    %1034 = vmatpush1.msra.mxu0 %v199
    %1035 = vmatprep.subr.mxu0 0.0
    %1036 = vmatpush1.msra.mxu0 %v198
    %1037 = vmatprep.subr.mxu0 0.0
    %1038 = vmatpush1.msra.mxu0 %v197
    %1039 = vmatprep.subr.mxu0 0.0
    %1040 = vmatpush1.msra.mxu0 %v196
    %1041 = vmatprep.subr.mxu0 0.0
    %1042 = vmatpush2.msra.mxu0 0.0
    %1043 = vmatprep.subr.mxu0 0.0
    %1044 = vmatpush2.msra.mxu0 0.0
    %1045 = vmatprep.subr.mxu0 0.0
    %1046 = vmatpush2.msra.mxu0 0.0
    %1047 = vmatprep.subr.mxu0 0.0
    %1048 = vmatpush2.msra.mxu0 0.0
    %1049 = vmatprep.subr.mxu0 0.0
    %1050 = vmatpush2.msra.mxu0 0.0
    %1051 = vmatprep.subr.mxu0 0.0
    %1052 = vmatpush2.msra.mxu0 0.0
    %1053 = vmatprep.subr.mxu0 0.0
    %1054 = vmatpush2.msra.mxu0 0.0
    %1055 = vmatprep.subr.mxu0 0.0
    %1056 = vmatpush2.msra.mxu0 0.0
    %1057 = vmatprep.subr.mxu0 0.0
    %1058 = vmatpush2.msra.mxu0 0.0
    %1059 = vmatprep.subr.mxu0 0.0
    %1060 = vmatpush2.msra.mxu0 0.0
    %1061 = vmatprep.subr.mxu0 0.0
    %1062 = vmatpush2.msra.mxu0 0.0
    %1063 = vmatprep.subr.mxu0 0.0
    %1064 = vmatpush2.msra.mxu0 0.0
    %1065 = vmatprep.subr.mxu0 0.0
    %1066 = vmatpush2.msra.mxu0 0.0
    %1067 = vmatprep.subr.mxu0 0.0
    %1068 = vmatpush2.msra.mxu0 0.0
    %1069 = vmatprep.subr.mxu0 0.0
    %1070 = vmatpush2.msra.mxu0 0.0
    %1071 = vmatprep.subr.mxu0 0.0
    %1072 = vmatpush2.msra.mxu0 0.0
    %1073 = vmatprep.mubr.f32.mxu0 0.0
    %1074 = vmatmul.mubr.f32.gmra.mxu0 %v39
    %v1075 = vpop.f32.mrf.mxu0
    %v1076 = vadd.f32 0.0, %v1075
    %v1077 = vpop.f32.mrf.mxu0
    %1078 = vmatprep.mubr.f32.mxu0 0.0
    %1079 = vmatmul.mubr.f32.gmra.mxu0 %v42
    %v1080 = vpop.f32.mrf.mxu0
    %v1081 = vadd.f32 0.0, %v1080
    %v1082 = vpop.f32.mrf.mxu0
    %1083 = vdwg.mxu0
    %v1085 = vsel %vm44, %v205, 0
    %1087 = vmatprep.subr.mxu0 0.0
    %1088 = vmatpush1.msra.mxu0 0.0
    %1089 = vmatprep.subr.mxu0 0.0
    %1090 = vmatpush1.msra.mxu0 0.0
    %1091 = vmatprep.subr.mxu0 0.0
    %1092 = vmatpush1.msra.mxu0 0.0
    %1093 = vmatprep.subr.mxu0 0.0
    %1094 = vmatpush1.msra.mxu0 0.0
    %1095 = vmatprep.subr.mxu0 0.0
    %1096 = vmatpush1.msra.mxu0 0.0
    %1097 = vmatprep.subr.mxu0 0.0
    %1098 = vmatpush1.msra.mxu0 0.0
    %1099 = vmatprep.subr.mxu0 0.0
    %1100 = vmatpush1.msra.mxu0 0.0
    %1101 = vmatprep.subr.mxu0 0.0
    %1102 = vmatpush1.msra.mxu0 0.0
    %1103 = vmatprep.subr.mxu0 0.0
    %1104 = vmatpush1.msra.mxu0 0.0
    %1105 = vmatprep.subr.mxu0 0.0
    %1106 = vmatpush1.msra.mxu0 0.0
    %1107 = vmatprep.subr.mxu0 0.0
    %1108 = vmatpush1.msra.mxu0 0.0
    %1109 = vmatprep.subr.mxu0 0.0
    %1110 = vmatpush1.msra.mxu0 %v1085
    %1111 = vmatprep.subr.mxu0 0.0
    %1112 = vmatpush1.msra.mxu0 %v204
    %1113 = vmatprep.subr.mxu0 0.0
    %1114 = vmatpush1.msra.mxu0 %v203
    %1115 = vmatprep.subr.mxu0 0.0
    %1116 = vmatpush1.msra.mxu0 %v202
    %1117 = vmatprep.subr.mxu0 0.0
    %1118 = vmatpush1.msra.mxu0 %v201
    %1119 = vmatprep.subr.mxu0 0.0
    %1120 = vmatpush2.msra.mxu0 0.0
    %1121 = vmatprep.subr.mxu0 0.0
    %1122 = vmatpush2.msra.mxu0 0.0
    %1123 = vmatprep.subr.mxu0 0.0
    %1124 = vmatpush2.msra.mxu0 0.0
    %1125 = vmatprep.subr.mxu0 0.0
    %1126 = vmatpush2.msra.mxu0 0.0
    %1127 = vmatprep.subr.mxu0 0.0
    %1128 = vmatpush2.msra.mxu0 0.0
    %1129 = vmatprep.subr.mxu0 0.0
    %1130 = vmatpush2.msra.mxu0 0.0
    %1131 = vmatprep.subr.mxu0 0.0
    %1132 = vmatpush2.msra.mxu0 0.0
    %1133 = vmatprep.subr.mxu0 0.0
    %1134 = vmatpush2.msra.mxu0 0.0
    %1135 = vmatprep.subr.mxu0 0.0
    %1136 = vmatpush2.msra.mxu0 0.0
    %1137 = vmatprep.subr.mxu0 0.0
    %1138 = vmatpush2.msra.mxu0 0.0
    %1139 = vmatprep.subr.mxu0 0.0
    %1140 = vmatpush2.msra.mxu0 0.0
    %1141 = vmatprep.subr.mxu0 0.0
    %1142 = vmatpush2.msra.mxu0 0.0
    %1143 = vmatprep.subr.mxu0 0.0
    %1144 = vmatpush2.msra.mxu0 0.0
    %1145 = vmatprep.subr.mxu0 0.0
    %1146 = vmatpush2.msra.mxu0 0.0
    %1147 = vmatprep.subr.mxu0 0.0
    %1148 = vmatpush2.msra.mxu0 0.0
    %1149 = vmatprep.subr.mxu0 0.0
    %1150 = vmatpush2.msra.mxu0 0.0
    %1151 = vmatprep.mubr.f32.mxu0 0.0
    %1152 = vmatmul.mubr.f32.gmra.mxu0 %v39
    %v1153 = vpop.f32.mrf.mxu0
    %v1154 = vadd.f32 0.0, %v1153
    %v1155 = vpop.f32.mrf.mxu0
    %1156 = vmatprep.mubr.f32.mxu0 0.0
    %1157 = vmatmul.mubr.f32.gmra.mxu0 %v42
    %v1158 = vpop.f32.mrf.mxu0
    %v1159 = vadd.f32 0.0, %v1158
    %v1160 = vpop.f32.mrf.mxu0
    %1161 = vdwg.mxu0
    %v1163 = vsel %vm44, %v210, 0
    %1165 = vmatprep.subr.mxu0 0.0
    %1166 = vmatpush1.msra.mxu0 0.0
    %1167 = vmatprep.subr.mxu0 0.0
    %1168 = vmatpush1.msra.mxu0 0.0
    %1169 = vmatprep.subr.mxu0 0.0
    %1170 = vmatpush1.msra.mxu0 0.0
    %1171 = vmatprep.subr.mxu0 0.0
    %1172 = vmatpush1.msra.mxu0 0.0
    %1173 = vmatprep.subr.mxu0 0.0
    %1174 = vmatpush1.msra.mxu0 0.0
    %1175 = vmatprep.subr.mxu0 0.0
    %1176 = vmatpush1.msra.mxu0 0.0
    %1177 = vmatprep.subr.mxu0 0.0
    %1178 = vmatpush1.msra.mxu0 0.0
    %1179 = vmatprep.subr.mxu0 0.0
    %1180 = vmatpush1.msra.mxu0 0.0
    %1181 = vmatprep.subr.mxu0 0.0
    %1182 = vmatpush1.msra.mxu0 0.0
    %1183 = vmatprep.subr.mxu0 0.0
    %1184 = vmatpush1.msra.mxu0 0.0
    %1185 = vmatprep.subr.mxu0 0.0
    %1186 = vmatpush1.msra.mxu0 0.0
    %1187 = vmatprep.subr.mxu0 0.0
    %1188 = vmatpush1.msra.mxu0 %v1163
    %1189 = vmatprep.subr.mxu0 0.0
    %1190 = vmatpush1.msra.mxu0 %v209
    %1191 = vmatprep.subr.mxu0 0.0
    %1192 = vmatpush1.msra.mxu0 %v208
    %1193 = vmatprep.subr.mxu0 0.0
    %1194 = vmatpush1.msra.mxu0 %v207
    %1195 = vmatprep.subr.mxu0 0.0
    %1196 = vmatpush1.msra.mxu0 %v206
    %1197 = vmatprep.subr.mxu0 0.0
    %1198 = vmatpush2.msra.mxu0 0.0
    %1199 = vmatprep.subr.mxu0 0.0
    %1200 = vmatpush2.msra.mxu0 0.0
    %1201 = vmatprep.subr.mxu0 0.0
    %1202 = vmatpush2.msra.mxu0 0.0
    %1203 = vmatprep.subr.mxu0 0.0
    %1204 = vmatpush2.msra.mxu0 0.0
    %1205 = vmatprep.subr.mxu0 0.0
    %1206 = vmatpush2.msra.mxu0 0.0
    %1207 = vmatprep.subr.mxu0 0.0
    %1208 = vmatpush2.msra.mxu0 0.0
    %1209 = vmatprep.subr.mxu0 0.0
    %1210 = vmatpush2.msra.mxu0 0.0
    %1211 = vmatprep.subr.mxu0 0.0
    %1212 = vmatpush2.msra.mxu0 0.0
    %1213 = vmatprep.subr.mxu0 0.0
    %1214 = vmatpush2.msra.mxu0 0.0
    %1215 = vmatprep.subr.mxu0 0.0
    %1216 = vmatpush2.msra.mxu0 0.0
    %1217 = vmatprep.subr.mxu0 0.0
    %1218 = vmatpush2.msra.mxu0 0.0
    %1219 = vmatprep.subr.mxu0 0.0
    %1220 = vmatpush2.msra.mxu0 0.0
    %1221 = vmatprep.subr.mxu0 0.0
    %1222 = vmatpush2.msra.mxu0 0.0
    %1223 = vmatprep.subr.mxu0 0.0
    %1224 = vmatpush2.msra.mxu0 0.0
    %1225 = vmatprep.subr.mxu0 0.0
    %1226 = vmatpush2.msra.mxu0 0.0
    %1227 = vmatprep.subr.mxu0 0.0
    %1228 = vmatpush2.msra.mxu0 0.0
    %1229 = vmatprep.mubr.f32.mxu0 0.0
    %1230 = vmatmul.mubr.f32.gmra.mxu0 %v39
    %v1231 = vpop.f32.mrf.mxu0
    %v1232 = vadd.f32 0.0, %v1231
    %v1233 = vpop.f32.mrf.mxu0
    %1234 = vmatprep.mubr.f32.mxu0 0.0
    %1235 = vmatmul.mubr.f32.gmra.mxu0 %v42
    %v1236 = vpop.f32.mrf.mxu0
    %v1237 = vadd.f32 0.0, %v1236
    %v1238 = vpop.f32.mrf.mxu0
    %1239 = vdwg.mxu0
    %v1241 = vsel %vm44, %v215, 0
    %1243 = vmatprep.subr.mxu0 0.0
    %1244 = vmatpush1.msra.mxu0 0.0
    %1245 = vmatprep.subr.mxu0 0.0
    %1246 = vmatpush1.msra.mxu0 0.0
    %1247 = vmatprep.subr.mxu0 0.0
    %1248 = vmatpush1.msra.mxu0 0.0
    %1249 = vmatprep.subr.mxu0 0.0
    %1250 = vmatpush1.msra.mxu0 0.0
    %1251 = vmatprep.subr.mxu0 0.0
    %1252 = vmatpush1.msra.mxu0 0.0
    %1253 = vmatprep.subr.mxu0 0.0
    %1254 = vmatpush1.msra.mxu0 0.0
    %1255 = vmatprep.subr.mxu0 0.0
    %1256 = vmatpush1.msra.mxu0 0.0
    %1257 = vmatprep.subr.mxu0 0.0
    %1258 = vmatpush1.msra.mxu0 0.0
    %1259 = vmatprep.subr.mxu0 0.0
    %1260 = vmatpush1.msra.mxu0 0.0
    %1261 = vmatprep.subr.mxu0 0.0
    %1262 = vmatpush1.msra.mxu0 0.0
    %1263 = vmatprep.subr.mxu0 0.0
    %1264 = vmatpush1.msra.mxu0 0.0
    %1265 = vmatprep.subr.mxu0 0.0
    %1266 = vmatpush1.msra.mxu0 %v1241
    %1267 = vmatprep.subr.mxu0 0.0
    %1268 = vmatpush1.msra.mxu0 %v214
    %1269 = vmatprep.subr.mxu0 0.0
    %1270 = vmatpush1.msra.mxu0 %v213
    %1271 = vmatprep.subr.mxu0 0.0
    %1272 = vmatpush1.msra.mxu0 %v212
    %1273 = vmatprep.subr.mxu0 0.0
    %1274 = vmatpush1.msra.mxu0 %v211
    %1275 = vmatprep.subr.mxu0 0.0
    %1276 = vmatpush2.msra.mxu0 0.0
    %1277 = vmatprep.subr.mxu0 0.0
    %1278 = vmatpush2.msra.mxu0 0.0
    %1279 = vmatprep.subr.mxu0 0.0
    %1280 = vmatpush2.msra.mxu0 0.0
    %1281 = vmatprep.subr.mxu0 0.0
    %1282 = vmatpush2.msra.mxu0 0.0
    %1283 = vmatprep.subr.mxu0 0.0
    %1284 = vmatpush2.msra.mxu0 0.0
    %1285 = vmatprep.subr.mxu0 0.0
    %1286 = vmatpush2.msra.mxu0 0.0
    %1287 = vmatprep.subr.mxu0 0.0
    %1288 = vmatpush2.msra.mxu0 0.0
    %1289 = vmatprep.subr.mxu0 0.0
    %1290 = vmatpush2.msra.mxu0 0.0
    %1291 = vmatprep.subr.mxu0 0.0
    %1292 = vmatpush2.msra.mxu0 0.0
    %1293 = vmatprep.subr.mxu0 0.0
    %1294 = vmatpush2.msra.mxu0 0.0
    %1295 = vmatprep.subr.mxu0 0.0
    %1296 = vmatpush2.msra.mxu0 0.0
    %1297 = vmatprep.subr.mxu0 0.0
    %1298 = vmatpush2.msra.mxu0 0.0
    %1299 = vmatprep.subr.mxu0 0.0
    %1300 = vmatpush2.msra.mxu0 0.0
    %1301 = vmatprep.subr.mxu0 0.0
    %1302 = vmatpush2.msra.mxu0 0.0
    %1303 = vmatprep.subr.mxu0 0.0
    %1304 = vmatpush2.msra.mxu0 0.0
    %1305 = vmatprep.subr.mxu0 0.0
    %1306 = vmatpush2.msra.mxu0 0.0
    %1307 = vmatprep.mubr.f32.mxu0 0.0
    %1308 = vmatmul.mubr.f32.gmra.mxu0 %v39
    %v1309 = vpop.f32.mrf.mxu0
    %v1310 = vadd.f32 0.0, %v1309
    %v1311 = vpop.f32.mrf.mxu0
    %1312 = vmatprep.mubr.f32.mxu0 0.0
    %1313 = vmatmul.mubr.f32.gmra.mxu0 %v42
    %v1314 = vpop.f32.mrf.mxu0
    %v1315 = vadd.f32 0.0, %v1314
    %v1316 = vpop.f32.mrf.mxu0
    %1317 = vdwg.mxu0
    %v1319 = vsel %vm44, %v220, 0
    %1321 = vmatprep.subr.mxu0 0.0
    %1322 = vmatpush1.msra.mxu0 0.0
    %1323 = vmatprep.subr.mxu0 0.0
    %1324 = vmatpush1.msra.mxu0 0.0
    %1325 = vmatprep.subr.mxu0 0.0
    %1326 = vmatpush1.msra.mxu0 0.0
    %1327 = vmatprep.subr.mxu0 0.0
    %1328 = vmatpush1.msra.mxu0 0.0
    %1329 = vmatprep.subr.mxu0 0.0
    %1330 = vmatpush1.msra.mxu0 0.0
    %1331 = vmatprep.subr.mxu0 0.0
    %1332 = vmatpush1.msra.mxu0 0.0
    %1333 = vmatprep.subr.mxu0 0.0
    %1334 = vmatpush1.msra.mxu0 0.0
    %1335 = vmatprep.subr.mxu0 0.0
    %1336 = vmatpush1.msra.mxu0 0.0
    %1337 = vmatprep.subr.mxu0 0.0
    %1338 = vmatpush1.msra.mxu0 0.0
    %1339 = vmatprep.subr.mxu0 0.0
    %1340 = vmatpush1.msra.mxu0 0.0
    %1341 = vmatprep.subr.mxu0 0.0
    %1342 = vmatpush1.msra.mxu0 0.0
    %1343 = vmatprep.subr.mxu0 0.0
    %1344 = vmatpush1.msra.mxu0 %v1319
    %1345 = vmatprep.subr.mxu0 0.0
    %1346 = vmatpush1.msra.mxu0 %v219
    %1347 = vmatprep.subr.mxu0 0.0
    %1348 = vmatpush1.msra.mxu0 %v218
    %1349 = vmatprep.subr.mxu0 0.0
    %1350 = vmatpush1.msra.mxu0 %v217
    %1351 = vmatprep.subr.mxu0 0.0
    %1352 = vmatpush1.msra.mxu0 %v216
    %1353 = vmatprep.subr.mxu0 0.0
    %1354 = vmatpush2.msra.mxu0 0.0
    %1355 = vmatprep.subr.mxu0 0.0
    %1356 = vmatpush2.msra.mxu0 0.0
    %1357 = vmatprep.subr.mxu0 0.0
    %1358 = vmatpush2.msra.mxu0 0.0
    %1359 = vmatprep.subr.mxu0 0.0
    %1360 = vmatpush2.msra.mxu0 0.0
    %1361 = vmatprep.subr.mxu0 0.0
    %1362 = vmatpush2.msra.mxu0 0.0
    %1363 = vmatprep.subr.mxu0 0.0
    %1364 = vmatpush2.msra.mxu0 0.0
    %1365 = vmatprep.subr.mxu0 0.0
    %1366 = vmatpush2.msra.mxu0 0.0
    %1367 = vmatprep.subr.mxu0 0.0
    %1368 = vmatpush2.msra.mxu0 0.0
    %1369 = vmatprep.subr.mxu0 0.0
    %1370 = vmatpush2.msra.mxu0 0.0
    %1371 = vmatprep.subr.mxu0 0.0
    %1372 = vmatpush2.msra.mxu0 0.0
    %1373 = vmatprep.subr.mxu0 0.0
    %1374 = vmatpush2.msra.mxu0 0.0
    %1375 = vmatprep.subr.mxu0 0.0
    %1376 = vmatpush2.msra.mxu0 0.0
    %1377 = vmatprep.subr.mxu0 0.0
    %1378 = vmatpush2.msra.mxu0 0.0
    %1379 = vmatprep.subr.mxu0 0.0
    %1380 = vmatpush2.msra.mxu0 0.0
    %1381 = vmatprep.subr.mxu0 0.0
    %1382 = vmatpush2.msra.mxu0 0.0
    %1383 = vmatprep.subr.mxu0 0.0
    %1384 = vmatpush2.msra.mxu0 0.0
    %1385 = vmatprep.mubr.f32.mxu0 0.0
    %1386 = vmatmul.mubr.f32.gmra.mxu0 %v39
    %v1387 = vpop.f32.mrf.mxu0
    %v1388 = vadd.f32 0.0, %v1387
    %v1389 = vpop.f32.mrf.mxu0
    %1390 = vmatprep.mubr.f32.mxu0 0.0
    %1391 = vmatmul.mubr.f32.gmra.mxu0 %v42
    %v1392 = vpop.f32.mrf.mxu0
    %v1393 = vadd.f32 0.0, %v1392
    %v1394 = vpop.f32.mrf.mxu0
    %1395 = vdwg.mxu0
    %v1397 = vsel %vm44, %v225, 0
    %1399 = vmatprep.subr.mxu0 0.0
    %1400 = vmatpush1.msra.mxu0 0.0
    %1401 = vmatprep.subr.mxu0 0.0
    %1402 = vmatpush1.msra.mxu0 0.0
    %1403 = vmatprep.subr.mxu0 0.0
    %1404 = vmatpush1.msra.mxu0 0.0
    %1405 = vmatprep.subr.mxu0 0.0
    %1406 = vmatpush1.msra.mxu0 0.0
    %1407 = vmatprep.subr.mxu0 0.0
    %1408 = vmatpush1.msra.mxu0 0.0
    %1409 = vmatprep.subr.mxu0 0.0
    %1410 = vmatpush1.msra.mxu0 0.0
    %1411 = vmatprep.subr.mxu0 0.0
    %1412 = vmatpush1.msra.mxu0 0.0
    %1413 = vmatprep.subr.mxu0 0.0
    %1414 = vmatpush1.msra.mxu0 0.0
    %1415 = vmatprep.subr.mxu0 0.0
    %1416 = vmatpush1.msra.mxu0 0.0
    %1417 = vmatprep.subr.mxu0 0.0
    %1418 = vmatpush1.msra.mxu0 0.0
    %1419 = vmatprep.subr.mxu0 0.0
    %1420 = vmatpush1.msra.mxu0 0.0
    %1421 = vmatprep.subr.mxu0 0.0
    %1422 = vmatpush1.msra.mxu0 %v1397
    %1423 = vmatprep.subr.mxu0 0.0
    %1424 = vmatpush1.msra.mxu0 %v224
    %1425 = vmatprep.subr.mxu0 0.0
    %1426 = vmatpush1.msra.mxu0 %v223
    %1427 = vmatprep.subr.mxu0 0.0
    %1428 = vmatpush1.msra.mxu0 %v222
    %1429 = vmatprep.subr.mxu0 0.0
    %1430 = vmatpush1.msra.mxu0 %v221
    %1431 = vmatprep.subr.mxu0 0.0
    %1432 = vmatpush2.msra.mxu0 0.0
    %1433 = vmatprep.subr.mxu0 0.0
    %1434 = vmatpush2.msra.mxu0 0.0
    %1435 = vmatprep.subr.mxu0 0.0
    %1436 = vmatpush2.msra.mxu0 0.0
    %1437 = vmatprep.subr.mxu0 0.0
    %1438 = vmatpush2.msra.mxu0 0.0
    %1439 = vmatprep.subr.mxu0 0.0
    %1440 = vmatpush2.msra.mxu0 0.0
    %1441 = vmatprep.subr.mxu0 0.0
    %1442 = vmatpush2.msra.mxu0 0.0
    %1443 = vmatprep.subr.mxu0 0.0
    %1444 = vmatpush2.msra.mxu0 0.0
    %1445 = vmatprep.subr.mxu0 0.0
    %1446 = vmatpush2.msra.mxu0 0.0
    %1447 = vmatprep.subr.mxu0 0.0
    %1448 = vmatpush2.msra.mxu0 0.0
    %1449 = vmatprep.subr.mxu0 0.0
    %1450 = vmatpush2.msra.mxu0 0.0
    %1451 = vmatprep.subr.mxu0 0.0
    %1452 = vmatpush2.msra.mxu0 0.0
    %1453 = vmatprep.subr.mxu0 0.0
    %1454 = vmatpush2.msra.mxu0 0.0
    %1455 = vmatprep.subr.mxu0 0.0
    %1456 = vmatpush2.msra.mxu0 0.0
    %1457 = vmatprep.subr.mxu0 0.0
    %1458 = vmatpush2.msra.mxu0 0.0
    %1459 = vmatprep.subr.mxu0 0.0
    %1460 = vmatpush2.msra.mxu0 0.0
    %1461 = vmatprep.subr.mxu0 0.0
    %1462 = vmatpush2.msra.mxu0 0.0
    %1463 = vmatprep.mubr.f32.mxu0 0.0
    %1464 = vmatmul.mubr.f32.gmra.mxu0 %v39
    %v1465 = vpop.f32.mrf.mxu0
    %v1466 = vadd.f32 0.0, %v1465
    %v1467 = vpop.f32.mrf.mxu0
    %1468 = vmatprep.mubr.f32.mxu0 0.0
    %1469 = vmatmul.mubr.f32.gmra.mxu0 %v42
    %v1470 = vpop.f32.mrf.mxu0
    %v1471 = vadd.f32 0.0, %v1470
    %v1472 = vpop.f32.mrf.mxu0
    %1473 = vdwg.mxu0
    %v1474 = vld [vmem:[%s7] sm:$0xff]
    %v1475 = vld [vmem:[%s7 + $0x8] sm:$0xff]
    %v1477 = vsel %vm37, %v296, 0
    %v1480 = vsel %vm37, %v301, 0
    %1482 = vmatprep.subr.mxu0 0.0
    %1483 = vmatpush1.xpose.msra.mxu0 0.0
    %1484 = vmatprep.subr.mxu0 0.0
    %1485 = vmatpush1.xpose.msra.mxu0 0.0
    %1486 = vmatprep.subr.mxu0 0.0
    %1487 = vmatpush1.xpose.msra.mxu0 0.0
    %1488 = vmatprep.subr.mxu0 0.0
    %1489 = vmatpush1.xpose.msra.mxu0 0.0
    %1490 = vmatprep.subr.mxu0 0.0
    %1491 = vmatpush1.xpose.msra.mxu0 0.0
    %1492 = vmatprep.subr.mxu0 0.0
    %1493 = vmatpush1.xpose.msra.mxu0 0.0
    %1494 = vmatprep.subr.mxu0 0.0
    %1495 = vmatpush1.xpose.msra.mxu0 0.0
    %1496 = vmatprep.subr.mxu0 0.0
    %1497 = vmatpush1.xpose.msra.mxu0 0.0
    %1498 = vmatprep.subr.mxu0 0.0
    %1499 = vmatpush1.xpose.msra.mxu0 0.0
    %1500 = vmatprep.subr.mxu0 0.0
    %1501 = vmatpush1.xpose.msra.mxu0 0.0
    %1502 = vmatprep.subr.mxu0 0.0
    %1503 = vmatpush1.xpose.msra.mxu0 0.0
    %1504 = vmatprep.subr.mxu0 0.0
    %1505 = vmatpush1.xpose.msra.mxu0 0.0
    %1506 = vmatprep.subr.mxu0 0.0
    %1507 = vmatpush1.xpose.msra.mxu0 0.0
    %1508 = vmatprep.subr.mxu0 0.0
    %1509 = vmatpush1.xpose.msra.mxu0 0.0
    %1510 = vmatprep.subr.mxu0 0.0
    %1511 = vmatpush1.xpose.msra.mxu0 %v42
    %1512 = vmatprep.subr.mxu0 0.0
    %1513 = vmatpush1.xpose.msra.mxu0 %v39
    %1514 = vmatprep.subr.mxu0 0.0
    %1515 = vmatpush2.xpose.msra.mxu0 0.0
    %1516 = vmatprep.subr.mxu0 0.0
    %1517 = vmatpush2.xpose.msra.mxu0 0.0
    %1518 = vmatprep.subr.mxu0 0.0
    %1519 = vmatpush2.xpose.msra.mxu0 0.0
    %1520 = vmatprep.subr.mxu0 0.0
    %1521 = vmatpush2.xpose.msra.mxu0 0.0
    %1522 = vmatprep.subr.mxu0 0.0
    %1523 = vmatpush2.xpose.msra.mxu0 0.0
    %1524 = vmatprep.subr.mxu0 0.0
    %1525 = vmatpush2.xpose.msra.mxu0 0.0
    %1526 = vmatprep.subr.mxu0 0.0
    %1527 = vmatpush2.xpose.msra.mxu0 0.0
    %1528 = vmatprep.subr.mxu0 0.0
    %1529 = vmatpush2.xpose.msra.mxu0 0.0
    %1530 = vmatprep.subr.mxu0 0.0
    %1531 = vmatpush2.xpose.msra.mxu0 0.0
    %1532 = vmatprep.subr.mxu0 0.0
    %1533 = vmatpush2.xpose.msra.mxu0 0.0
    %1534 = vmatprep.subr.mxu0 0.0
    %1535 = vmatpush2.xpose.msra.mxu0 0.0
    %1536 = vmatprep.subr.mxu0 0.0
    %1537 = vmatpush2.xpose.msra.mxu0 0.0
    %1538 = vmatprep.subr.mxu0 0.0
    %1539 = vmatpush2.xpose.msra.mxu0 0.0
    %1540 = vmatprep.subr.mxu0 0.0
    %1541 = vmatpush2.xpose.msra.mxu0 0.0
    %1542 = vmatprep.subr.mxu0 0.0
    %1543 = vmatpush2.xpose.msra.mxu0 0.0
    %1544 = vmatprep.subr.mxu0 0.0
    %1545 = vmatpush2.xpose.msra.mxu0 0.0
    %1546 = vmatprep.mubr.f32.mxu0 0.0
    %1547 = vmatmul.mubr.f32.gmra.mxu0 %v1477
    %v1548 = vpop.f32.mrf.mxu0
    %v1549 = vadd.f32 %v1474, %v1548
    %v1550 = vpop.f32.mrf.mxu0
    %1551 = vmatprep.mubr.f32.mxu0 0.0
    %1552 = vmatmul.mubr.f32.gmra.mxu0 %v1480
    %v1553 = vpop.f32.mrf.mxu0
    %v1554 = vadd.f32 %v1475, %v1553
    %v1555 = vpop.f32.mrf.mxu0
    %1556 = vdwg.mxu0
    %v1558 = vsel %vm37, %v374, 0
    %v1561 = vsel %vm37, %v379, 0
    %1563 = vmatprep.subr.mxu0 0.0
    %1564 = vmatpush1.xpose.msra.mxu0 0.0
    %1565 = vmatprep.subr.mxu0 0.0
    %1566 = vmatpush1.xpose.msra.mxu0 0.0
    %1567 = vmatprep.subr.mxu0 0.0
    %1568 = vmatpush1.xpose.msra.mxu0 0.0
    %1569 = vmatprep.subr.mxu0 0.0
    %1570 = vmatpush1.xpose.msra.mxu0 0.0
    %1571 = vmatprep.subr.mxu0 0.0
    %1572 = vmatpush1.xpose.msra.mxu0 0.0
    %1573 = vmatprep.subr.mxu0 0.0
    %1574 = vmatpush1.xpose.msra.mxu0 0.0
    %1575 = vmatprep.subr.mxu0 0.0
    %1576 = vmatpush1.xpose.msra.mxu0 0.0
    %1577 = vmatprep.subr.mxu0 0.0
    %1578 = vmatpush1.xpose.msra.mxu0 0.0
    %1579 = vmatprep.subr.mxu0 0.0
    %1580 = vmatpush1.xpose.msra.mxu0 0.0
    %1581 = vmatprep.subr.mxu0 0.0
    %1582 = vmatpush1.xpose.msra.mxu0 0.0
    %1583 = vmatprep.subr.mxu0 0.0
    %1584 = vmatpush1.xpose.msra.mxu0 0.0
    %1585 = vmatprep.subr.mxu0 0.0
    %1586 = vmatpush1.xpose.msra.mxu0 0.0
    %1587 = vmatprep.subr.mxu0 0.0
    %1588 = vmatpush1.xpose.msra.mxu0 0.0
    %1589 = vmatprep.subr.mxu0 0.0
    %1590 = vmatpush1.xpose.msra.mxu0 0.0
    %1591 = vmatprep.subr.mxu0 0.0
    %1592 = vmatpush1.xpose.msra.mxu0 %v42
    %1593 = vmatprep.subr.mxu0 0.0
    %1594 = vmatpush1.xpose.msra.mxu0 %v39
    %1595 = vmatprep.subr.mxu0 0.0
    %1596 = vmatpush2.xpose.msra.mxu0 0.0
    %1597 = vmatprep.subr.mxu0 0.0
    %1598 = vmatpush2.xpose.msra.mxu0 0.0
    %1599 = vmatprep.subr.mxu0 0.0
    %1600 = vmatpush2.xpose.msra.mxu0 0.0
    %1601 = vmatprep.subr.mxu0 0.0
    %1602 = vmatpush2.xpose.msra.mxu0 0.0
    %1603 = vmatprep.subr.mxu0 0.0
    %1604 = vmatpush2.xpose.msra.mxu0 0.0
    %1605 = vmatprep.subr.mxu0 0.0
    %1606 = vmatpush2.xpose.msra.mxu0 0.0
    %1607 = vmatprep.subr.mxu0 0.0
    %1608 = vmatpush2.xpose.msra.mxu0 0.0
    %1609 = vmatprep.subr.mxu0 0.0
    %1610 = vmatpush2.xpose.msra.mxu0 0.0
    %1611 = vmatprep.subr.mxu0 0.0
    %1612 = vmatpush2.xpose.msra.mxu0 0.0
    %1613 = vmatprep.subr.mxu0 0.0
    %1614 = vmatpush2.xpose.msra.mxu0 0.0
    %1615 = vmatprep.subr.mxu0 0.0
    %1616 = vmatpush2.xpose.msra.mxu0 0.0
    %1617 = vmatprep.subr.mxu0 0.0
    %1618 = vmatpush2.xpose.msra.mxu0 0.0
    %1619 = vmatprep.subr.mxu0 0.0
    %1620 = vmatpush2.xpose.msra.mxu0 0.0
    %1621 = vmatprep.subr.mxu0 0.0
    %1622 = vmatpush2.xpose.msra.mxu0 0.0
    %1623 = vmatprep.subr.mxu0 0.0
    %1624 = vmatpush2.xpose.msra.mxu0 0.0
    %1625 = vmatprep.subr.mxu0 0.0
    %1626 = vmatpush2.xpose.msra.mxu0 0.0
    %1627 = vmatprep.mubr.f32.mxu0 0.0
    %1628 = vmatmul.mubr.f32.gmra.mxu0 %v1558
    %v1629 = vpop.f32.mrf.mxu0
    %v1630 = vadd.f32 %v1474, %v1629
    %v1631 = vpop.f32.mrf.mxu0
    %1632 = vmatprep.mubr.f32.mxu0 0.0
    %1633 = vmatmul.mubr.f32.gmra.mxu0 %v1561
    %v1634 = vpop.f32.mrf.mxu0
    %v1635 = vadd.f32 %v1475, %v1634
    %v1636 = vpop.f32.mrf.mxu0
    %1637 = vdwg.mxu0
    %v1639 = vsel %vm37, %v452, 0
    %v1642 = vsel %vm37, %v457, 0
    %1644 = vmatprep.subr.mxu0 0.0
    %1645 = vmatpush1.xpose.msra.mxu0 0.0
    %1646 = vmatprep.subr.mxu0 0.0
    %1647 = vmatpush1.xpose.msra.mxu0 0.0
    %1648 = vmatprep.subr.mxu0 0.0
    %1649 = vmatpush1.xpose.msra.mxu0 0.0
    %1650 = vmatprep.subr.mxu0 0.0
    %1651 = vmatpush1.xpose.msra.mxu0 0.0
    %1652 = vmatprep.subr.mxu0 0.0
    %1653 = vmatpush1.xpose.msra.mxu0 0.0
    %1654 = vmatprep.subr.mxu0 0.0
    %1655 = vmatpush1.xpose.msra.mxu0 0.0
    %1656 = vmatprep.subr.mxu0 0.0
    %1657 = vmatpush1.xpose.msra.mxu0 0.0
    %1658 = vmatprep.subr.mxu0 0.0
    %1659 = vmatpush1.xpose.msra.mxu0 0.0
    %1660 = vmatprep.subr.mxu0 0.0
    %1661 = vmatpush1.xpose.msra.mxu0 0.0
    %1662 = vmatprep.subr.mxu0 0.0
    %1663 = vmatpush1.xpose.msra.mxu0 0.0
    %1664 = vmatprep.subr.mxu0 0.0
    %1665 = vmatpush1.xpose.msra.mxu0 0.0
    %1666 = vmatprep.subr.mxu0 0.0
    %1667 = vmatpush1.xpose.msra.mxu0 0.0
    %1668 = vmatprep.subr.mxu0 0.0
    %1669 = vmatpush1.xpose.msra.mxu0 0.0
    %1670 = vmatprep.subr.mxu0 0.0
    %1671 = vmatpush1.xpose.msra.mxu0 0.0
    %1672 = vmatprep.subr.mxu0 0.0
    %1673 = vmatpush1.xpose.msra.mxu0 %v42
    %1674 = vmatprep.subr.mxu0 0.0
    %1675 = vmatpush1.xpose.msra.mxu0 %v39
    %1676 = vmatprep.subr.mxu0 0.0
    %1677 = vmatpush2.xpose.msra.mxu0 0.0
    %1678 = vmatprep.subr.mxu0 0.0
    %1679 = vmatpush2.xpose.msra.mxu0 0.0
    %1680 = vmatprep.subr.mxu0 0.0
    %1681 = vmatpush2.xpose.msra.mxu0 0.0
    %1682 = vmatprep.subr.mxu0 0.0
    %1683 = vmatpush2.xpose.msra.mxu0 0.0
    %1684 = vmatprep.subr.mxu0 0.0
    %1685 = vmatpush2.xpose.msra.mxu0 0.0
    %1686 = vmatprep.subr.mxu0 0.0
    %1687 = vmatpush2.xpose.msra.mxu0 0.0
    %1688 = vmatprep.subr.mxu0 0.0
    %1689 = vmatpush2.xpose.msra.mxu0 0.0
    %1690 = vmatprep.subr.mxu0 0.0
    %1691 = vmatpush2.xpose.msra.mxu0 0.0
    %1692 = vmatprep.subr.mxu0 0.0
    %1693 = vmatpush2.xpose.msra.mxu0 0.0
    %1694 = vmatprep.subr.mxu0 0.0
    %1695 = vmatpush2.xpose.msra.mxu0 0.0
    %1696 = vmatprep.subr.mxu0 0.0
    %1697 = vmatpush2.xpose.msra.mxu0 0.0
    %1698 = vmatprep.subr.mxu0 0.0
    %1699 = vmatpush2.xpose.msra.mxu0 0.0
    %1700 = vmatprep.subr.mxu0 0.0
    %1701 = vmatpush2.xpose.msra.mxu0 0.0
    %1702 = vmatprep.subr.mxu0 0.0
    %1703 = vmatpush2.xpose.msra.mxu0 0.0
    %1704 = vmatprep.subr.mxu0 0.0
    %1705 = vmatpush2.xpose.msra.mxu0 0.0
    %1706 = vmatprep.subr.mxu0 0.0
    %1707 = vmatpush2.xpose.msra.mxu0 0.0
    %1708 = vmatprep.mubr.f32.mxu0 0.0
    %1709 = vmatmul.mubr.f32.gmra.mxu0 %v1639
    %v1710 = vpop.f32.mrf.mxu0
    %v1711 = vadd.f32 %v1474, %v1710
    %v1712 = vpop.f32.mrf.mxu0
    %1713 = vmatprep.mubr.f32.mxu0 0.0
    %1714 = vmatmul.mubr.f32.gmra.mxu0 %v1642
    %v1715 = vpop.f32.mrf.mxu0
    %v1716 = vadd.f32 %v1475, %v1715
    %v1717 = vpop.f32.mrf.mxu0
    %1718 = vdwg.mxu0
    %v1720 = vsel %vm37, %v530, 0
    %v1723 = vsel %vm37, %v535, 0
    %1725 = vmatprep.subr.mxu0 0.0
    %1726 = vmatpush1.xpose.msra.mxu0 0.0
    %1727 = vmatprep.subr.mxu0 0.0
    %1728 = vmatpush1.xpose.msra.mxu0 0.0
    %1729 = vmatprep.subr.mxu0 0.0
    %1730 = vmatpush1.xpose.msra.mxu0 0.0
    %1731 = vmatprep.subr.mxu0 0.0
    %1732 = vmatpush1.xpose.msra.mxu0 0.0
    %1733 = vmatprep.subr.mxu0 0.0
    %1734 = vmatpush1.xpose.msra.mxu0 0.0
    %1735 = vmatprep.subr.mxu0 0.0
    %1736 = vmatpush1.xpose.msra.mxu0 0.0
    %1737 = vmatprep.subr.mxu0 0.0
    %1738 = vmatpush1.xpose.msra.mxu0 0.0
    %1739 = vmatprep.subr.mxu0 0.0
    %1740 = vmatpush1.xpose.msra.mxu0 0.0
    %1741 = vmatprep.subr.mxu0 0.0
    %1742 = vmatpush1.xpose.msra.mxu0 0.0
    %1743 = vmatprep.subr.mxu0 0.0
    %1744 = vmatpush1.xpose.msra.mxu0 0.0
    %1745 = vmatprep.subr.mxu0 0.0
    %1746 = vmatpush1.xpose.msra.mxu0 0.0
    %1747 = vmatprep.subr.mxu0 0.0
    %1748 = vmatpush1.xpose.msra.mxu0 0.0
    %1749 = vmatprep.subr.mxu0 0.0
    %1750 = vmatpush1.xpose.msra.mxu0 0.0
    %1751 = vmatprep.subr.mxu0 0.0
    %1752 = vmatpush1.xpose.msra.mxu0 0.0
    %1753 = vmatprep.subr.mxu0 0.0
    %1754 = vmatpush1.xpose.msra.mxu0 %v42
    %1755 = vmatprep.subr.mxu0 0.0
    %1756 = vmatpush1.xpose.msra.mxu0 %v39
    %1757 = vmatprep.subr.mxu0 0.0
    %1758 = vmatpush2.xpose.msra.mxu0 0.0
    %1759 = vmatprep.subr.mxu0 0.0
    %1760 = vmatpush2.xpose.msra.mxu0 0.0
    %1761 = vmatprep.subr.mxu0 0.0
    %1762 = vmatpush2.xpose.msra.mxu0 0.0
    %1763 = vmatprep.subr.mxu0 0.0
    %1764 = vmatpush2.xpose.msra.mxu0 0.0
    %1765 = vmatprep.subr.mxu0 0.0
    %1766 = vmatpush2.xpose.msra.mxu0 0.0
    %1767 = vmatprep.subr.mxu0 0.0
    %1768 = vmatpush2.xpose.msra.mxu0 0.0
    %1769 = vmatprep.subr.mxu0 0.0
    %1770 = vmatpush2.xpose.msra.mxu0 0.0
    %1771 = vmatprep.subr.mxu0 0.0
    %1772 = vmatpush2.xpose.msra.mxu0 0.0
    %1773 = vmatprep.subr.mxu0 0.0
    %1774 = vmatpush2.xpose.msra.mxu0 0.0
    %1775 = vmatprep.subr.mxu0 0.0
    %1776 = vmatpush2.xpose.msra.mxu0 0.0
    %1777 = vmatprep.subr.mxu0 0.0
    %1778 = vmatpush2.xpose.msra.mxu0 0.0
    %1779 = vmatprep.subr.mxu0 0.0
    %1780 = vmatpush2.xpose.msra.mxu0 0.0
    %1781 = vmatprep.subr.mxu0 0.0
    %1782 = vmatpush2.xpose.msra.mxu0 0.0
    %1783 = vmatprep.subr.mxu0 0.0
    %1784 = vmatpush2.xpose.msra.mxu0 0.0
    %1785 = vmatprep.subr.mxu0 0.0
    %1786 = vmatpush2.xpose.msra.mxu0 0.0
    %1787 = vmatprep.subr.mxu0 0.0
    %1788 = vmatpush2.xpose.msra.mxu0 0.0
    %1789 = vmatprep.mubr.f32.mxu0 0.0
    %1790 = vmatmul.mubr.f32.gmra.mxu0 %v1720
    %v1791 = vpop.f32.mrf.mxu0
    %v1792 = vadd.f32 %v1474, %v1791
    %v1793 = vpop.f32.mrf.mxu0
    %1794 = vmatprep.mubr.f32.mxu0 0.0
    %1795 = vmatmul.mubr.f32.gmra.mxu0 %v1723
    %v1796 = vpop.f32.mrf.mxu0
    %v1797 = vadd.f32 %v1475, %v1796
    %v1798 = vpop.f32.mrf.mxu0
    %1799 = vdwg.mxu0
    %v1801 = vsel %vm37, %v608, 0
    %v1804 = vsel %vm37, %v613, 0
    %1806 = vmatprep.subr.mxu0 0.0
    %1807 = vmatpush1.xpose.msra.mxu0 0.0
    %1808 = vmatprep.subr.mxu0 0.0
    %1809 = vmatpush1.xpose.msra.mxu0 0.0
    %1810 = vmatprep.subr.mxu0 0.0
    %1811 = vmatpush1.xpose.msra.mxu0 0.0
    %1812 = vmatprep.subr.mxu0 0.0
    %1813 = vmatpush1.xpose.msra.mxu0 0.0
    %1814 = vmatprep.subr.mxu0 0.0
    %1815 = vmatpush1.xpose.msra.mxu0 0.0
    %1816 = vmatprep.subr.mxu0 0.0
    %1817 = vmatpush1.xpose.msra.mxu0 0.0
    %1818 = vmatprep.subr.mxu0 0.0
    %1819 = vmatpush1.xpose.msra.mxu0 0.0
    %1820 = vmatprep.subr.mxu0 0.0
    %1821 = vmatpush1.xpose.msra.mxu0 0.0
    %1822 = vmatprep.subr.mxu0 0.0
    %1823 = vmatpush1.xpose.msra.mxu0 0.0
    %1824 = vmatprep.subr.mxu0 0.0
    %1825 = vmatpush1.xpose.msra.mxu0 0.0
    %1826 = vmatprep.subr.mxu0 0.0
    %1827 = vmatpush1.xpose.msra.mxu0 0.0
    %1828 = vmatprep.subr.mxu0 0.0
    %1829 = vmatpush1.xpose.msra.mxu0 0.0
    %1830 = vmatprep.subr.mxu0 0.0
    %1831 = vmatpush1.xpose.msra.mxu0 0.0
    %1832 = vmatprep.subr.mxu0 0.0
    %1833 = vmatpush1.xpose.msra.mxu0 0.0
    %1834 = vmatprep.subr.mxu0 0.0
    %1835 = vmatpush1.xpose.msra.mxu0 %v42
    %1836 = vmatprep.subr.mxu0 0.0
    %1837 = vmatpush1.xpose.msra.mxu0 %v39
    %1838 = vmatprep.subr.mxu0 0.0
    %1839 = vmatpush2.xpose.msra.mxu0 0.0
    %1840 = vmatprep.subr.mxu0 0.0
    %1841 = vmatpush2.xpose.msra.mxu0 0.0
    %1842 = vmatprep.subr.mxu0 0.0
    %1843 = vmatpush2.xpose.msra.mxu0 0.0
    %1844 = vmatprep.subr.mxu0 0.0
    %1845 = vmatpush2.xpose.msra.mxu0 0.0
    %1846 = vmatprep.subr.mxu0 0.0
    %1847 = vmatpush2.xpose.msra.mxu0 0.0
    %1848 = vmatprep.subr.mxu0 0.0
    %1849 = vmatpush2.xpose.msra.mxu0 0.0
    %1850 = vmatprep.subr.mxu0 0.0
    %1851 = vmatpush2.xpose.msra.mxu0 0.0
    %1852 = vmatprep.subr.mxu0 0.0
    %1853 = vmatpush2.xpose.msra.mxu0 0.0
    %1854 = vmatprep.subr.mxu0 0.0
    %1855 = vmatpush2.xpose.msra.mxu0 0.0
    %1856 = vmatprep.subr.mxu0 0.0
    %1857 = vmatpush2.xpose.msra.mxu0 0.0
    %1858 = vmatprep.subr.mxu0 0.0
    %1859 = vmatpush2.xpose.msra.mxu0 0.0
    %1860 = vmatprep.subr.mxu0 0.0
    %1861 = vmatpush2.xpose.msra.mxu0 0.0
    %1862 = vmatprep.subr.mxu0 0.0
    %1863 = vmatpush2.xpose.msra.mxu0 0.0
    %1864 = vmatprep.subr.mxu0 0.0
    %1865 = vmatpush2.xpose.msra.mxu0 0.0
    %1866 = vmatprep.subr.mxu0 0.0
    %1867 = vmatpush2.xpose.msra.mxu0 0.0
    %1868 = vmatprep.subr.mxu0 0.0
    %1869 = vmatpush2.xpose.msra.mxu0 0.0
    %1870 = vmatprep.mubr.f32.mxu0 0.0
    %1871 = vmatmul.mubr.f32.gmra.mxu0 %v1801
    %v1872 = vpop.f32.mrf.mxu0
    %v1873 = vadd.f32 %v1474, %v1872
    %v1874 = vpop.f32.mrf.mxu0
    %1875 = vmatprep.mubr.f32.mxu0 0.0
    %1876 = vmatmul.mubr.f32.gmra.mxu0 %v1804
    %v1877 = vpop.f32.mrf.mxu0
    %v1878 = vadd.f32 %v1475, %v1877
    %v1879 = vpop.f32.mrf.mxu0
    %1880 = vdwg.mxu0
    %v1882 = vsel %vm37, %v686, 0
    %v1885 = vsel %vm37, %v691, 0
    %1887 = vmatprep.subr.mxu0 0.0
    %1888 = vmatpush1.xpose.msra.mxu0 0.0
    %1889 = vmatprep.subr.mxu0 0.0
    %1890 = vmatpush1.xpose.msra.mxu0 0.0
    %1891 = vmatprep.subr.mxu0 0.0
    %1892 = vmatpush1.xpose.msra.mxu0 0.0
    %1893 = vmatprep.subr.mxu0 0.0
    %1894 = vmatpush1.xpose.msra.mxu0 0.0
    %1895 = vmatprep.subr.mxu0 0.0
    %1896 = vmatpush1.xpose.msra.mxu0 0.0
    %1897 = vmatprep.subr.mxu0 0.0
    %1898 = vmatpush1.xpose.msra.mxu0 0.0
    %1899 = vmatprep.subr.mxu0 0.0
    %1900 = vmatpush1.xpose.msra.mxu0 0.0
    %1901 = vmatprep.subr.mxu0 0.0
    %1902 = vmatpush1.xpose.msra.mxu0 0.0
    %1903 = vmatprep.subr.mxu0 0.0
    %1904 = vmatpush1.xpose.msra.mxu0 0.0
    %1905 = vmatprep.subr.mxu0 0.0
    %1906 = vmatpush1.xpose.msra.mxu0 0.0
    %1907 = vmatprep.subr.mxu0 0.0
    %1908 = vmatpush1.xpose.msra.mxu0 0.0
    %1909 = vmatprep.subr.mxu0 0.0
    %1910 = vmatpush1.xpose.msra.mxu0 0.0
    %1911 = vmatprep.subr.mxu0 0.0
    %1912 = vmatpush1.xpose.msra.mxu0 0.0
    %1913 = vmatprep.subr.mxu0 0.0
    %1914 = vmatpush1.xpose.msra.mxu0 0.0
    %1915 = vmatprep.subr.mxu0 0.0
    %1916 = vmatpush1.xpose.msra.mxu0 %v42
    %1917 = vmatprep.subr.mxu0 0.0
    %1918 = vmatpush1.xpose.msra.mxu0 %v39
    %1919 = vmatprep.subr.mxu0 0.0
    %1920 = vmatpush2.xpose.msra.mxu0 0.0
    %1921 = vmatprep.subr.mxu0 0.0
    %1922 = vmatpush2.xpose.msra.mxu0 0.0
    %1923 = vmatprep.subr.mxu0 0.0
    %1924 = vmatpush2.xpose.msra.mxu0 0.0
    %1925 = vmatprep.subr.mxu0 0.0
    %1926 = vmatpush2.xpose.msra.mxu0 0.0
    %1927 = vmatprep.subr.mxu0 0.0
    %1928 = vmatpush2.xpose.msra.mxu0 0.0
    %1929 = vmatprep.subr.mxu0 0.0
    %1930 = vmatpush2.xpose.msra.mxu0 0.0
    %1931 = vmatprep.subr.mxu0 0.0
    %1932 = vmatpush2.xpose.msra.mxu0 0.0
    %1933 = vmatprep.subr.mxu0 0.0
    %1934 = vmatpush2.xpose.msra.mxu0 0.0
    %1935 = vmatprep.subr.mxu0 0.0
    %1936 = vmatpush2.xpose.msra.mxu0 0.0
    %1937 = vmatprep.subr.mxu0 0.0
    %1938 = vmatpush2.xpose.msra.mxu0 0.0
    %1939 = vmatprep.subr.mxu0 0.0
    %1940 = vmatpush2.xpose.msra.mxu0 0.0
    %1941 = vmatprep.subr.mxu0 0.0
    %1942 = vmatpush2.xpose.msra.mxu0 0.0
    %1943 = vmatprep.subr.mxu0 0.0
    %1944 = vmatpush2.xpose.msra.mxu0 0.0
    %1945 = vmatprep.subr.mxu0 0.0
    %1946 = vmatpush2.xpose.msra.mxu0 0.0
    %1947 = vmatprep.subr.mxu0 0.0
    %1948 = vmatpush2.xpose.msra.mxu0 0.0
    %1949 = vmatprep.subr.mxu0 0.0
    %1950 = vmatpush2.xpose.msra.mxu0 0.0
    %1951 = vmatprep.mubr.f32.mxu0 0.0
    %1952 = vmatmul.mubr.f32.gmra.mxu0 %v1882
    %v1953 = vpop.f32.mrf.mxu0
    %v1954 = vadd.f32 %v1474, %v1953
    %v1955 = vpop.f32.mrf.mxu0
    %1956 = vmatprep.mubr.f32.mxu0 0.0
    %1957 = vmatmul.mubr.f32.gmra.mxu0 %v1885
    %v1958 = vpop.f32.mrf.mxu0
    %v1959 = vadd.f32 %v1475, %v1958
    %v1960 = vpop.f32.mrf.mxu0
    %1961 = vdwg.mxu0
    %v1963 = vsel %vm37, %v764, 0
    %v1966 = vsel %vm37, %v769, 0
    %1968 = vmatprep.subr.mxu0 0.0
    %1969 = vmatpush1.xpose.msra.mxu0 0.0
    %1970 = vmatprep.subr.mxu0 0.0
    %1971 = vmatpush1.xpose.msra.mxu0 0.0
    %1972 = vmatprep.subr.mxu0 0.0
    %1973 = vmatpush1.xpose.msra.mxu0 0.0
    %1974 = vmatprep.subr.mxu0 0.0
    %1975 = vmatpush1.xpose.msra.mxu0 0.0
    %1976 = vmatprep.subr.mxu0 0.0
    %1977 = vmatpush1.xpose.msra.mxu0 0.0
    %1978 = vmatprep.subr.mxu0 0.0
    %1979 = vmatpush1.xpose.msra.mxu0 0.0
    %1980 = vmatprep.subr.mxu0 0.0
    %1981 = vmatpush1.xpose.msra.mxu0 0.0
    %1982 = vmatprep.subr.mxu0 0.0
    %1983 = vmatpush1.xpose.msra.mxu0 0.0
    %1984 = vmatprep.subr.mxu0 0.0
    %1985 = vmatpush1.xpose.msra.mxu0 0.0
    %1986 = vmatprep.subr.mxu0 0.0
    %1987 = vmatpush1.xpose.msra.mxu0 0.0
    %1988 = vmatprep.subr.mxu0 0.0
    %1989 = vmatpush1.xpose.msra.mxu0 0.0
    %1990 = vmatprep.subr.mxu0 0.0
    %1991 = vmatpush1.xpose.msra.mxu0 0.0
    %1992 = vmatprep.subr.mxu0 0.0
    %1993 = vmatpush1.xpose.msra.mxu0 0.0
    %1994 = vmatprep.subr.mxu0 0.0
    %1995 = vmatpush1.xpose.msra.mxu0 0.0
    %1996 = vmatprep.subr.mxu0 0.0
    %1997 = vmatpush1.xpose.msra.mxu0 %v42
    %1998 = vmatprep.subr.mxu0 0.0
    %1999 = vmatpush1.xpose.msra.mxu0 %v39
    %2000 = vmatprep.subr.mxu0 0.0
    %2001 = vmatpush2.xpose.msra.mxu0 0.0
    %2002 = vmatprep.subr.mxu0 0.0
    %2003 = vmatpush2.xpose.msra.mxu0 0.0
    %2004 = vmatprep.subr.mxu0 0.0
    %2005 = vmatpush2.xpose.msra.mxu0 0.0
    %2006 = vmatprep.subr.mxu0 0.0
    %2007 = vmatpush2.xpose.msra.mxu0 0.0
    %2008 = vmatprep.subr.mxu0 0.0
    %2009 = vmatpush2.xpose.msra.mxu0 0.0
    %2010 = vmatprep.subr.mxu0 0.0
    %2011 = vmatpush2.xpose.msra.mxu0 0.0
    %2012 = vmatprep.subr.mxu0 0.0
    %2013 = vmatpush2.xpose.msra.mxu0 0.0
    %2014 = vmatprep.subr.mxu0 0.0
    %2015 = vmatpush2.xpose.msra.mxu0 0.0
    %2016 = vmatprep.subr.mxu0 0.0
    %2017 = vmatpush2.xpose.msra.mxu0 0.0
    %2018 = vmatprep.subr.mxu0 0.0
    %2019 = vmatpush2.xpose.msra.mxu0 0.0
    %2020 = vmatprep.subr.mxu0 0.0
    %2021 = vmatpush2.xpose.msra.mxu0 0.0
    %2022 = vmatprep.subr.mxu0 0.0
    %2023 = vmatpush2.xpose.msra.mxu0 0.0
    %2024 = vmatprep.subr.mxu0 0.0
    %2025 = vmatpush2.xpose.msra.mxu0 0.0
    %2026 = vmatprep.subr.mxu0 0.0
    %2027 = vmatpush2.xpose.msra.mxu0 0.0
    %2028 = vmatprep.subr.mxu0 0.0
    %2029 = vmatpush2.xpose.msra.mxu0 0.0
    %2030 = vmatprep.subr.mxu0 0.0
    %2031 = vmatpush2.xpose.msra.mxu0 0.0
    %2032 = vmatprep.mubr.f32.mxu0 0.0
    %2033 = vmatmul.mubr.f32.gmra.mxu0 %v1963
    %v2034 = vpop.f32.mrf.mxu0
    %v2035 = vadd.f32 %v1474, %v2034
    %v2036 = vpop.f32.mrf.mxu0
    %2037 = vmatprep.mubr.f32.mxu0 0.0
    %2038 = vmatmul.mubr.f32.gmra.mxu0 %v1966
    %v2039 = vpop.f32.mrf.mxu0
    %v2040 = vadd.f32 %v1475, %v2039
    %v2041 = vpop.f32.mrf.mxu0
    %2042 = vdwg.mxu0
    %v2044 = vsel %vm37, %v842, 0
    %v2047 = vsel %vm37, %v847, 0
    %2049 = vmatprep.subr.mxu0 0.0
    %2050 = vmatpush1.xpose.msra.mxu0 0.0
    %2051 = vmatprep.subr.mxu0 0.0
    %2052 = vmatpush1.xpose.msra.mxu0 0.0
    %2053 = vmatprep.subr.mxu0 0.0
    %2054 = vmatpush1.xpose.msra.mxu0 0.0
    %2055 = vmatprep.subr.mxu0 0.0
    %2056 = vmatpush1.xpose.msra.mxu0 0.0
    %2057 = vmatprep.subr.mxu0 0.0
    %2058 = vmatpush1.xpose.msra.mxu0 0.0
    %2059 = vmatprep.subr.mxu0 0.0
    %2060 = vmatpush1.xpose.msra.mxu0 0.0
    %2061 = vmatprep.subr.mxu0 0.0
    %2062 = vmatpush1.xpose.msra.mxu0 0.0
    %2063 = vmatprep.subr.mxu0 0.0
    %2064 = vmatpush1.xpose.msra.mxu0 0.0
    %2065 = vmatprep.subr.mxu0 0.0
    %2066 = vmatpush1.xpose.msra.mxu0 0.0
    %2067 = vmatprep.subr.mxu0 0.0
    %2068 = vmatpush1.xpose.msra.mxu0 0.0
    %2069 = vmatprep.subr.mxu0 0.0
    %2070 = vmatpush1.xpose.msra.mxu0 0.0
    %2071 = vmatprep.subr.mxu0 0.0
    %2072 = vmatpush1.xpose.msra.mxu0 0.0
    %2073 = vmatprep.subr.mxu0 0.0
    %2074 = vmatpush1.xpose.msra.mxu0 0.0
    %2075 = vmatprep.subr.mxu0 0.0
    %2076 = vmatpush1.xpose.msra.mxu0 0.0
    %2077 = vmatprep.subr.mxu0 0.0
    %2078 = vmatpush1.xpose.msra.mxu0 %v42
    %2079 = vmatprep.subr.mxu0 0.0
    %2080 = vmatpush1.xpose.msra.mxu0 %v39
    %2081 = vmatprep.subr.mxu0 0.0
    %2082 = vmatpush2.xpose.msra.mxu0 0.0
    %2083 = vmatprep.subr.mxu0 0.0
    %2084 = vmatpush2.xpose.msra.mxu0 0.0
    %2085 = vmatprep.subr.mxu0 0.0
    %2086 = vmatpush2.xpose.msra.mxu0 0.0
    %2087 = vmatprep.subr.mxu0 0.0
    %2088 = vmatpush2.xpose.msra.mxu0 0.0
    %2089 = vmatprep.subr.mxu0 0.0
    %2090 = vmatpush2.xpose.msra.mxu0 0.0
    %2091 = vmatprep.subr.mxu0 0.0
    %2092 = vmatpush2.xpose.msra.mxu0 0.0
    %2093 = vmatprep.subr.mxu0 0.0
    %2094 = vmatpush2.xpose.msra.mxu0 0.0
    %2095 = vmatprep.subr.mxu0 0.0
    %2096 = vmatpush2.xpose.msra.mxu0 0.0
    %2097 = vmatprep.subr.mxu0 0.0
    %2098 = vmatpush2.xpose.msra.mxu0 0.0
    %2099 = vmatprep.subr.mxu0 0.0
    %2100 = vmatpush2.xpose.msra.mxu0 0.0
    %2101 = vmatprep.subr.mxu0 0.0
    %2102 = vmatpush2.xpose.msra.mxu0 0.0
    %2103 = vmatprep.subr.mxu0 0.0
    %2104 = vmatpush2.xpose.msra.mxu0 0.0
    %2105 = vmatprep.subr.mxu0 0.0
    %2106 = vmatpush2.xpose.msra.mxu0 0.0
    %2107 = vmatprep.subr.mxu0 0.0
    %2108 = vmatpush2.xpose.msra.mxu0 0.0
    %2109 = vmatprep.subr.mxu0 0.0
    %2110 = vmatpush2.xpose.msra.mxu0 0.0
    %2111 = vmatprep.subr.mxu0 0.0
    %2112 = vmatpush2.xpose.msra.mxu0 0.0
    %2113 = vmatprep.mubr.f32.mxu0 0.0
    %2114 = vmatmul.mubr.f32.gmra.mxu0 %v2044
    %v2115 = vpop.f32.mrf.mxu0
    %v2116 = vadd.f32 %v1474, %v2115
    %v2117 = vpop.f32.mrf.mxu0
    %2118 = vmatprep.mubr.f32.mxu0 0.0
    %2119 = vmatmul.mubr.f32.gmra.mxu0 %v2047
    %v2120 = vpop.f32.mrf.mxu0
    %v2121 = vadd.f32 %v1475, %v2120
    %v2122 = vpop.f32.mrf.mxu0
    %2123 = vdwg.mxu0
    %v2125 = vsel %vm37, %v920, 0
    %v2128 = vsel %vm37, %v925, 0
    %2130 = vmatprep.subr.mxu0 0.0
    %2131 = vmatpush1.xpose.msra.mxu0 0.0
    %2132 = vmatprep.subr.mxu0 0.0
    %2133 = vmatpush1.xpose.msra.mxu0 0.0
    %2134 = vmatprep.subr.mxu0 0.0
    %2135 = vmatpush1.xpose.msra.mxu0 0.0
    %2136 = vmatprep.subr.mxu0 0.0
    %2137 = vmatpush1.xpose.msra.mxu0 0.0
    %2138 = vmatprep.subr.mxu0 0.0
    %2139 = vmatpush1.xpose.msra.mxu0 0.0
    %2140 = vmatprep.subr.mxu0 0.0
    %2141 = vmatpush1.xpose.msra.mxu0 0.0
    %2142 = vmatprep.subr.mxu0 0.0
    %2143 = vmatpush1.xpose.msra.mxu0 0.0
    %2144 = vmatprep.subr.mxu0 0.0
    %2145 = vmatpush1.xpose.msra.mxu0 0.0
    %2146 = vmatprep.subr.mxu0 0.0
    %2147 = vmatpush1.xpose.msra.mxu0 0.0
    %2148 = vmatprep.subr.mxu0 0.0
    %2149 = vmatpush1.xpose.msra.mxu0 0.0
    %2150 = vmatprep.subr.mxu0 0.0
    %2151 = vmatpush1.xpose.msra.mxu0 0.0
    %2152 = vmatprep.subr.mxu0 0.0
    %2153 = vmatpush1.xpose.msra.mxu0 0.0
    %2154 = vmatprep.subr.mxu0 0.0
    %2155 = vmatpush1.xpose.msra.mxu0 0.0
    %2156 = vmatprep.subr.mxu0 0.0
    %2157 = vmatpush1.xpose.msra.mxu0 0.0
    %2158 = vmatprep.subr.mxu0 0.0
    %2159 = vmatpush1.xpose.msra.mxu0 %v42
    %2160 = vmatprep.subr.mxu0 0.0
    %2161 = vmatpush1.xpose.msra.mxu0 %v39
    %2162 = vmatprep.subr.mxu0 0.0
    %2163 = vmatpush2.xpose.msra.mxu0 0.0
    %2164 = vmatprep.subr.mxu0 0.0
    %2165 = vmatpush2.xpose.msra.mxu0 0.0
    %2166 = vmatprep.subr.mxu0 0.0
    %2167 = vmatpush2.xpose.msra.mxu0 0.0
    %2168 = vmatprep.subr.mxu0 0.0
    %2169 = vmatpush2.xpose.msra.mxu0 0.0
    %2170 = vmatprep.subr.mxu0 0.0
    %2171 = vmatpush2.xpose.msra.mxu0 0.0
    %2172 = vmatprep.subr.mxu0 0.0
    %2173 = vmatpush2.xpose.msra.mxu0 0.0
    %2174 = vmatprep.subr.mxu0 0.0
    %2175 = vmatpush2.xpose.msra.mxu0 0.0
    %2176 = vmatprep.subr.mxu0 0.0
    %2177 = vmatpush2.xpose.msra.mxu0 0.0
    %2178 = vmatprep.subr.mxu0 0.0
    %2179 = vmatpush2.xpose.msra.mxu0 0.0
    %2180 = vmatprep.subr.mxu0 0.0
    %2181 = vmatpush2.xpose.msra.mxu0 0.0
    %2182 = vmatprep.subr.mxu0 0.0
    %2183 = vmatpush2.xpose.msra.mxu0 0.0
    %2184 = vmatprep.subr.mxu0 0.0
    %2185 = vmatpush2.xpose.msra.mxu0 0.0
    %2186 = vmatprep.subr.mxu0 0.0
    %2187 = vmatpush2.xpose.msra.mxu0 0.0
    %2188 = vmatprep.subr.mxu0 0.0
    %2189 = vmatpush2.xpose.msra.mxu0 0.0
    %2190 = vmatprep.subr.mxu0 0.0
    %2191 = vmatpush2.xpose.msra.mxu0 0.0
    %2192 = vmatprep.subr.mxu0 0.0
    %2193 = vmatpush2.xpose.msra.mxu0 0.0
    %2194 = vmatprep.mubr.f32.mxu0 0.0
    %2195 = vmatmul.mubr.f32.gmra.mxu0 %v2125
    %v2196 = vpop.f32.mrf.mxu0
    %v2197 = vadd.f32 %v1474, %v2196
    %v2198 = vpop.f32.mrf.mxu0
    %2199 = vmatprep.mubr.f32.mxu0 0.0
    %2200 = vmatmul.mubr.f32.gmra.mxu0 %v2128
    %v2201 = vpop.f32.mrf.mxu0
    %v2202 = vadd.f32 %v1475, %v2201
    %v2203 = vpop.f32.mrf.mxu0
    %2204 = vdwg.mxu0
    %v2206 = vsel %vm37, %v998, 0
    %v2209 = vsel %vm37, %v1003, 0
    %2211 = vmatprep.subr.mxu0 0.0
    %2212 = vmatpush1.xpose.msra.mxu0 0.0
    %2213 = vmatprep.subr.mxu0 0.0
    %2214 = vmatpush1.xpose.msra.mxu0 0.0
    %2215 = vmatprep.subr.mxu0 0.0
    %2216 = vmatpush1.xpose.msra.mxu0 0.0
    %2217 = vmatprep.subr.mxu0 0.0
    %2218 = vmatpush1.xpose.msra.mxu0 0.0
    %2219 = vmatprep.subr.mxu0 0.0
    %2220 = vmatpush1.xpose.msra.mxu0 0.0
    %2221 = vmatprep.subr.mxu0 0.0
    %2222 = vmatpush1.xpose.msra.mxu0 0.0
    %2223 = vmatprep.subr.mxu0 0.0
    %2224 = vmatpush1.xpose.msra.mxu0 0.0
    %2225 = vmatprep.subr.mxu0 0.0
    %2226 = vmatpush1.xpose.msra.mxu0 0.0
    %2227 = vmatprep.subr.mxu0 0.0
    %2228 = vmatpush1.xpose.msra.mxu0 0.0
    %2229 = vmatprep.subr.mxu0 0.0
    %2230 = vmatpush1.xpose.msra.mxu0 0.0
    %2231 = vmatprep.subr.mxu0 0.0
    %2232 = vmatpush1.xpose.msra.mxu0 0.0
    %2233 = vmatprep.subr.mxu0 0.0
    %2234 = vmatpush1.xpose.msra.mxu0 0.0
    %2235 = vmatprep.subr.mxu0 0.0
    %2236 = vmatpush1.xpose.msra.mxu0 0.0
    %2237 = vmatprep.subr.mxu0 0.0
    %2238 = vmatpush1.xpose.msra.mxu0 0.0
    %2239 = vmatprep.subr.mxu0 0.0
    %2240 = vmatpush1.xpose.msra.mxu0 %v42
    %2241 = vmatprep.subr.mxu0 0.0
    %2242 = vmatpush1.xpose.msra.mxu0 %v39
    %2243 = vmatprep.subr.mxu0 0.0
    %2244 = vmatpush2.xpose.msra.mxu0 0.0
    %2245 = vmatprep.subr.mxu0 0.0
    %2246 = vmatpush2.xpose.msra.mxu0 0.0
    %2247 = vmatprep.subr.mxu0 0.0
    %2248 = vmatpush2.xpose.msra.mxu0 0.0
    %2249 = vmatprep.subr.mxu0 0.0
    %2250 = vmatpush2.xpose.msra.mxu0 0.0
    %2251 = vmatprep.subr.mxu0 0.0
    %2252 = vmatpush2.xpose.msra.mxu0 0.0
    %2253 = vmatprep.subr.mxu0 0.0
    %2254 = vmatpush2.xpose.msra.mxu0 0.0
    %2255 = vmatprep.subr.mxu0 0.0
    %2256 = vmatpush2.xpose.msra.mxu0 0.0
    %2257 = vmatprep.subr.mxu0 0.0
    %2258 = vmatpush2.xpose.msra.mxu0 0.0
    %2259 = vmatprep.subr.mxu0 0.0
    %2260 = vmatpush2.xpose.msra.mxu0 0.0
    %2261 = vmatprep.subr.mxu0 0.0
    %2262 = vmatpush2.xpose.msra.mxu0 0.0
    %2263 = vmatprep.subr.mxu0 0.0
    %2264 = vmatpush2.xpose.msra.mxu0 0.0
    %2265 = vmatprep.subr.mxu0 0.0
    %2266 = vmatpush2.xpose.msra.mxu0 0.0
    %2267 = vmatprep.subr.mxu0 0.0
    %2268 = vmatpush2.xpose.msra.mxu0 0.0
    %2269 = vmatprep.subr.mxu0 0.0
    %2270 = vmatpush2.xpose.msra.mxu0 0.0
    %2271 = vmatprep.subr.mxu0 0.0
    %2272 = vmatpush2.xpose.msra.mxu0 0.0
    %2273 = vmatprep.subr.mxu0 0.0
    %2274 = vmatpush2.xpose.msra.mxu0 0.0
    %2275 = vmatprep.mubr.f32.mxu0 0.0
    %2276 = vmatmul.mubr.f32.gmra.mxu0 %v2206
    %v2277 = vpop.f32.mrf.mxu0
    %v2278 = vadd.f32 %v1474, %v2277
    %v2279 = vpop.f32.mrf.mxu0
    %2280 = vmatprep.mubr.f32.mxu0 0.0
    %2281 = vmatmul.mubr.f32.gmra.mxu0 %v2209
    %v2282 = vpop.f32.mrf.mxu0
    %v2283 = vadd.f32 %v1475, %v2282
    %v2284 = vpop.f32.mrf.mxu0
    %2285 = vdwg.mxu0
    %v2287 = vsel %vm37, %v1076, 0
    %v2290 = vsel %vm37, %v1081, 0
    %2292 = vmatprep.subr.mxu0 0.0
    %2293 = vmatpush1.xpose.msra.mxu0 0.0
    %2294 = vmatprep.subr.mxu0 0.0
    %2295 = vmatpush1.xpose.msra.mxu0 0.0
    %2296 = vmatprep.subr.mxu0 0.0
    %2297 = vmatpush1.xpose.msra.mxu0 0.0
    %2298 = vmatprep.subr.mxu0 0.0
    %2299 = vmatpush1.xpose.msra.mxu0 0.0
    %2300 = vmatprep.subr.mxu0 0.0
    %2301 = vmatpush1.xpose.msra.mxu0 0.0
    %2302 = vmatprep.subr.mxu0 0.0
    %2303 = vmatpush1.xpose.msra.mxu0 0.0
    %2304 = vmatprep.subr.mxu0 0.0
    %2305 = vmatpush1.xpose.msra.mxu0 0.0
    %2306 = vmatprep.subr.mxu0 0.0
    %2307 = vmatpush1.xpose.msra.mxu0 0.0
    %2308 = vmatprep.subr.mxu0 0.0
    %2309 = vmatpush1.xpose.msra.mxu0 0.0
    %2310 = vmatprep.subr.mxu0 0.0
    %2311 = vmatpush1.xpose.msra.mxu0 0.0
    %2312 = vmatprep.subr.mxu0 0.0
    %2313 = vmatpush1.xpose.msra.mxu0 0.0
    %2314 = vmatprep.subr.mxu0 0.0
    %2315 = vmatpush1.xpose.msra.mxu0 0.0
    %2316 = vmatprep.subr.mxu0 0.0
    %2317 = vmatpush1.xpose.msra.mxu0 0.0
    %2318 = vmatprep.subr.mxu0 0.0
    %2319 = vmatpush1.xpose.msra.mxu0 0.0
    %2320 = vmatprep.subr.mxu0 0.0
    %2321 = vmatpush1.xpose.msra.mxu0 %v42
    %2322 = vmatprep.subr.mxu0 0.0
    %2323 = vmatpush1.xpose.msra.mxu0 %v39
    %2324 = vmatprep.subr.mxu0 0.0
    %2325 = vmatpush2.xpose.msra.mxu0 0.0
    %2326 = vmatprep.subr.mxu0 0.0
    %2327 = vmatpush2.xpose.msra.mxu0 0.0
    %2328 = vmatprep.subr.mxu0 0.0
    %2329 = vmatpush2.xpose.msra.mxu0 0.0
    %2330 = vmatprep.subr.mxu0 0.0
    %2331 = vmatpush2.xpose.msra.mxu0 0.0
    %2332 = vmatprep.subr.mxu0 0.0
    %2333 = vmatpush2.xpose.msra.mxu0 0.0
    %2334 = vmatprep.subr.mxu0 0.0
    %2335 = vmatpush2.xpose.msra.mxu0 0.0
    %2336 = vmatprep.subr.mxu0 0.0
    %2337 = vmatpush2.xpose.msra.mxu0 0.0
    %2338 = vmatprep.subr.mxu0 0.0
    %2339 = vmatpush2.xpose.msra.mxu0 0.0
    %2340 = vmatprep.subr.mxu0 0.0
    %2341 = vmatpush2.xpose.msra.mxu0 0.0
    %2342 = vmatprep.subr.mxu0 0.0
    %2343 = vmatpush2.xpose.msra.mxu0 0.0
    %2344 = vmatprep.subr.mxu0 0.0
    %2345 = vmatpush2.xpose.msra.mxu0 0.0
    %2346 = vmatprep.subr.mxu0 0.0
    %2347 = vmatpush2.xpose.msra.mxu0 0.0
    %2348 = vmatprep.subr.mxu0 0.0
    %2349 = vmatpush2.xpose.msra.mxu0 0.0
    %2350 = vmatprep.subr.mxu0 0.0
    %2351 = vmatpush2.xpose.msra.mxu0 0.0
    %2352 = vmatprep.subr.mxu0 0.0
    %2353 = vmatpush2.xpose.msra.mxu0 0.0
    %2354 = vmatprep.subr.mxu0 0.0
    %2355 = vmatpush2.xpose.msra.mxu0 0.0
    %2356 = vmatprep.mubr.f32.mxu0 0.0
    %2357 = vmatmul.mubr.f32.gmra.mxu0 %v2287
    %v2358 = vpop.f32.mrf.mxu0
    %v2359 = vadd.f32 %v1474, %v2358
    %v2360 = vpop.f32.mrf.mxu0
    %2361 = vmatprep.mubr.f32.mxu0 0.0
    %2362 = vmatmul.mubr.f32.gmra.mxu0 %v2290
    %v2363 = vpop.f32.mrf.mxu0
    %v2364 = vadd.f32 %v1475, %v2363
    %v2365 = vpop.f32.mrf.mxu0
    %2366 = vdwg.mxu0
    %v2368 = vsel %vm37, %v1154, 0
    %v2371 = vsel %vm37, %v1159, 0
    %2373 = vmatprep.subr.mxu0 0.0
    %2374 = vmatpush1.xpose.msra.mxu0 0.0
    %2375 = vmatprep.subr.mxu0 0.0
    %2376 = vmatpush1.xpose.msra.mxu0 0.0
    %2377 = vmatprep.subr.mxu0 0.0
    %2378 = vmatpush1.xpose.msra.mxu0 0.0
    %2379 = vmatprep.subr.mxu0 0.0
    %2380 = vmatpush1.xpose.msra.mxu0 0.0
    %2381 = vmatprep.subr.mxu0 0.0
    %2382 = vmatpush1.xpose.msra.mxu0 0.0
    %2383 = vmatprep.subr.mxu0 0.0
    %2384 = vmatpush1.xpose.msra.mxu0 0.0
    %2385 = vmatprep.subr.mxu0 0.0
    %2386 = vmatpush1.xpose.msra.mxu0 0.0
    %2387 = vmatprep.subr.mxu0 0.0
    %2388 = vmatpush1.xpose.msra.mxu0 0.0
    %2389 = vmatprep.subr.mxu0 0.0
    %2390 = vmatpush1.xpose.msra.mxu0 0.0
    %2391 = vmatprep.subr.mxu0 0.0
    %2392 = vmatpush1.xpose.msra.mxu0 0.0
    %2393 = vmatprep.subr.mxu0 0.0
    %2394 = vmatpush1.xpose.msra.mxu0 0.0
    %2395 = vmatprep.subr.mxu0 0.0
    %2396 = vmatpush1.xpose.msra.mxu0 0.0
    %2397 = vmatprep.subr.mxu0 0.0
    %2398 = vmatpush1.xpose.msra.mxu0 0.0
    %2399 = vmatprep.subr.mxu0 0.0
    %2400 = vmatpush1.xpose.msra.mxu0 0.0
    %2401 = vmatprep.subr.mxu0 0.0
    %2402 = vmatpush1.xpose.msra.mxu0 %v42
    %2403 = vmatprep.subr.mxu0 0.0
    %2404 = vmatpush1.xpose.msra.mxu0 %v39
    %2405 = vmatprep.subr.mxu0 0.0
    %2406 = vmatpush2.xpose.msra.mxu0 0.0
    %2407 = vmatprep.subr.mxu0 0.0
    %2408 = vmatpush2.xpose.msra.mxu0 0.0
    %2409 = vmatprep.subr.mxu0 0.0
    %2410 = vmatpush2.xpose.msra.mxu0 0.0
    %2411 = vmatprep.subr.mxu0 0.0
    %2412 = vmatpush2.xpose.msra.mxu0 0.0
    %2413 = vmatprep.subr.mxu0 0.0
    %2414 = vmatpush2.xpose.msra.mxu0 0.0
    %2415 = vmatprep.subr.mxu0 0.0
    %2416 = vmatpush2.xpose.msra.mxu0 0.0
    %2417 = vmatprep.subr.mxu0 0.0
    %2418 = vmatpush2.xpose.msra.mxu0 0.0
    %2419 = vmatprep.subr.mxu0 0.0
    %2420 = vmatpush2.xpose.msra.mxu0 0.0
    %2421 = vmatprep.subr.mxu0 0.0
    %2422 = vmatpush2.xpose.msra.mxu0 0.0
    %2423 = vmatprep.subr.mxu0 0.0
    %2424 = vmatpush2.xpose.msra.mxu0 0.0
    %2425 = vmatprep.subr.mxu0 0.0
    %2426 = vmatpush2.xpose.msra.mxu0 0.0
    %2427 = vmatprep.subr.mxu0 0.0
    %2428 = vmatpush2.xpose.msra.mxu0 0.0
    %2429 = vmatprep.subr.mxu0 0.0
    %2430 = vmatpush2.xpose.msra.mxu0 0.0
    %2431 = vmatprep.subr.mxu0 0.0
    %2432 = vmatpush2.xpose.msra.mxu0 0.0
    %2433 = vmatprep.subr.mxu0 0.0
    %2434 = vmatpush2.xpose.msra.mxu0 0.0
    %2435 = vmatprep.subr.mxu0 0.0
    %2436 = vmatpush2.xpose.msra.mxu0 0.0
    %2437 = vmatprep.mubr.f32.mxu0 0.0
    %2438 = vmatmul.mubr.f32.gmra.mxu0 %v2368
    %v2439 = vpop.f32.mrf.mxu0
    %v2440 = vadd.f32 %v1474, %v2439
    %v2441 = vpop.f32.mrf.mxu0
    %2442 = vmatprep.mubr.f32.mxu0 0.0
    %2443 = vmatmul.mubr.f32.gmra.mxu0 %v2371
    %v2444 = vpop.f32.mrf.mxu0
    %v2445 = vadd.f32 %v1475, %v2444
    %v2446 = vpop.f32.mrf.mxu0
    %2447 = vdwg.mxu0
    %v2449 = vsel %vm37, %v1232, 0
    %v2452 = vsel %vm37, %v1237, 0
    %2454 = vmatprep.subr.mxu0 0.0
    %2455 = vmatpush1.xpose.msra.mxu0 0.0
    %2456 = vmatprep.subr.mxu0 0.0
    %2457 = vmatpush1.xpose.msra.mxu0 0.0
    %2458 = vmatprep.subr.mxu0 0.0
    %2459 = vmatpush1.xpose.msra.mxu0 0.0
    %2460 = vmatprep.subr.mxu0 0.0
    %2461 = vmatpush1.xpose.msra.mxu0 0.0
    %2462 = vmatprep.subr.mxu0 0.0
    %2463 = vmatpush1.xpose.msra.mxu0 0.0
    %2464 = vmatprep.subr.mxu0 0.0
    %2465 = vmatpush1.xpose.msra.mxu0 0.0
    %2466 = vmatprep.subr.mxu0 0.0
    %2467 = vmatpush1.xpose.msra.mxu0 0.0
    %2468 = vmatprep.subr.mxu0 0.0
    %2469 = vmatpush1.xpose.msra.mxu0 0.0
    %2470 = vmatprep.subr.mxu0 0.0
    %2471 = vmatpush1.xpose.msra.mxu0 0.0
    %2472 = vmatprep.subr.mxu0 0.0
    %2473 = vmatpush1.xpose.msra.mxu0 0.0
    %2474 = vmatprep.subr.mxu0 0.0
    %2475 = vmatpush1.xpose.msra.mxu0 0.0
    %2476 = vmatprep.subr.mxu0 0.0
    %2477 = vmatpush1.xpose.msra.mxu0 0.0
    %2478 = vmatprep.subr.mxu0 0.0
    %2479 = vmatpush1.xpose.msra.mxu0 0.0
    %2480 = vmatprep.subr.mxu0 0.0
    %2481 = vmatpush1.xpose.msra.mxu0 0.0
    %2482 = vmatprep.subr.mxu0 0.0
    %2483 = vmatpush1.xpose.msra.mxu0 %v42
    %2484 = vmatprep.subr.mxu0 0.0
    %2485 = vmatpush1.xpose.msra.mxu0 %v39
    %2486 = vmatprep.subr.mxu0 0.0
    %2487 = vmatpush2.xpose.msra.mxu0 0.0
    %2488 = vmatprep.subr.mxu0 0.0
    %2489 = vmatpush2.xpose.msra.mxu0 0.0
    %2490 = vmatprep.subr.mxu0 0.0
    %2491 = vmatpush2.xpose.msra.mxu0 0.0
    %2492 = vmatprep.subr.mxu0 0.0
    %2493 = vmatpush2.xpose.msra.mxu0 0.0
    %2494 = vmatprep.subr.mxu0 0.0
    %2495 = vmatpush2.xpose.msra.mxu0 0.0
    %2496 = vmatprep.subr.mxu0 0.0
    %2497 = vmatpush2.xpose.msra.mxu0 0.0
    %2498 = vmatprep.subr.mxu0 0.0
    %2499 = vmatpush2.xpose.msra.mxu0 0.0
    %2500 = vmatprep.subr.mxu0 0.0
    %2501 = vmatpush2.xpose.msra.mxu0 0.0
    %2502 = vmatprep.subr.mxu0 0.0
    %2503 = vmatpush2.xpose.msra.mxu0 0.0
    %2504 = vmatprep.subr.mxu0 0.0
    %2505 = vmatpush2.xpose.msra.mxu0 0.0
    %2506 = vmatprep.subr.mxu0 0.0
    %2507 = vmatpush2.xpose.msra.mxu0 0.0
    %2508 = vmatprep.subr.mxu0 0.0
    %2509 = vmatpush2.xpose.msra.mxu0 0.0
    %2510 = vmatprep.subr.mxu0 0.0
    %2511 = vmatpush2.xpose.msra.mxu0 0.0
    %2512 = vmatprep.subr.mxu0 0.0
    %2513 = vmatpush2.xpose.msra.mxu0 0.0
    %2514 = vmatprep.subr.mxu0 0.0
    %2515 = vmatpush2.xpose.msra.mxu0 0.0
    %2516 = vmatprep.subr.mxu0 0.0
    %2517 = vmatpush2.xpose.msra.mxu0 0.0
    %2518 = vmatprep.mubr.f32.mxu0 0.0
    %2519 = vmatmul.mubr.f32.gmra.mxu0 %v2449
    %v2520 = vpop.f32.mrf.mxu0
    %v2521 = vadd.f32 %v1474, %v2520
    %v2522 = vpop.f32.mrf.mxu0
    %2523 = vmatprep.mubr.f32.mxu0 0.0
    %2524 = vmatmul.mubr.f32.gmra.mxu0 %v2452
    %v2525 = vpop.f32.mrf.mxu0
    %v2526 = vadd.f32 %v1475, %v2525
    %v2527 = vpop.f32.mrf.mxu0
    %2528 = vdwg.mxu0
    %v2530 = vsel %vm37, %v1310, 0
    %v2533 = vsel %vm37, %v1315, 0
    %2535 = vmatprep.subr.mxu0 0.0
    %2536 = vmatpush1.xpose.msra.mxu0 0.0
    %2537 = vmatprep.subr.mxu0 0.0
    %2538 = vmatpush1.xpose.msra.mxu0 0.0
    %2539 = vmatprep.subr.mxu0 0.0
    %2540 = vmatpush1.xpose.msra.mxu0 0.0
    %2541 = vmatprep.subr.mxu0 0.0
    %2542 = vmatpush1.xpose.msra.mxu0 0.0
    %2543 = vmatprep.subr.mxu0 0.0
    %2544 = vmatpush1.xpose.msra.mxu0 0.0
    %2545 = vmatprep.subr.mxu0 0.0
    %2546 = vmatpush1.xpose.msra.mxu0 0.0
    %2547 = vmatprep.subr.mxu0 0.0
    %2548 = vmatpush1.xpose.msra.mxu0 0.0
    %2549 = vmatprep.subr.mxu0 0.0
    %2550 = vmatpush1.xpose.msra.mxu0 0.0
    %2551 = vmatprep.subr.mxu0 0.0
    %2552 = vmatpush1.xpose.msra.mxu0 0.0
    %2553 = vmatprep.subr.mxu0 0.0
    %2554 = vmatpush1.xpose.msra.mxu0 0.0
    %2555 = vmatprep.subr.mxu0 0.0
    %2556 = vmatpush1.xpose.msra.mxu0 0.0
    %2557 = vmatprep.subr.mxu0 0.0
    %2558 = vmatpush1.xpose.msra.mxu0 0.0
    %2559 = vmatprep.subr.mxu0 0.0
    %2560 = vmatpush1.xpose.msra.mxu0 0.0
    %2561 = vmatprep.subr.mxu0 0.0
    %2562 = vmatpush1.xpose.msra.mxu0 0.0
    %2563 = vmatprep.subr.mxu0 0.0
    %2564 = vmatpush1.xpose.msra.mxu0 %v42
    %2565 = vmatprep.subr.mxu0 0.0
    %2566 = vmatpush1.xpose.msra.mxu0 %v39
    %2567 = vmatprep.subr.mxu0 0.0
    %2568 = vmatpush2.xpose.msra.mxu0 0.0
    %2569 = vmatprep.subr.mxu0 0.0
    %2570 = vmatpush2.xpose.msra.mxu0 0.0
    %2571 = vmatprep.subr.mxu0 0.0
    %2572 = vmatpush2.xpose.msra.mxu0 0.0
    %2573 = vmatprep.subr.mxu0 0.0
    %2574 = vmatpush2.xpose.msra.mxu0 0.0
    %2575 = vmatprep.subr.mxu0 0.0
    %2576 = vmatpush2.xpose.msra.mxu0 0.0
    %2577 = vmatprep.subr.mxu0 0.0
    %2578 = vmatpush2.xpose.msra.mxu0 0.0
    %2579 = vmatprep.subr.mxu0 0.0
    %2580 = vmatpush2.xpose.msra.mxu0 0.0
    %2581 = vmatprep.subr.mxu0 0.0
    %2582 = vmatpush2.xpose.msra.mxu0 0.0
    %2583 = vmatprep.subr.mxu0 0.0
    %2584 = vmatpush2.xpose.msra.mxu0 0.0
    %2585 = vmatprep.subr.mxu0 0.0
    %2586 = vmatpush2.xpose.msra.mxu0 0.0
    %2587 = vmatprep.subr.mxu0 0.0
    %2588 = vmatpush2.xpose.msra.mxu0 0.0
    %2589 = vmatprep.subr.mxu0 0.0
    %2590 = vmatpush2.xpose.msra.mxu0 0.0
    %2591 = vmatprep.subr.mxu0 0.0
    %2592 = vmatpush2.xpose.msra.mxu0 0.0
    %2593 = vmatprep.subr.mxu0 0.0
    %2594 = vmatpush2.xpose.msra.mxu0 0.0
    %2595 = vmatprep.subr.mxu0 0.0
    %2596 = vmatpush2.xpose.msra.mxu0 0.0
    %2597 = vmatprep.subr.mxu0 0.0
    %2598 = vmatpush2.xpose.msra.mxu0 0.0
    %2599 = vmatprep.mubr.f32.mxu0 0.0
    %2600 = vmatmul.mubr.f32.gmra.mxu0 %v2530
    %v2601 = vpop.f32.mrf.mxu0
    %v2602 = vadd.f32 %v1474, %v2601
    %v2603 = vpop.f32.mrf.mxu0
    %2604 = vmatprep.mubr.f32.mxu0 0.0
    %2605 = vmatmul.mubr.f32.gmra.mxu0 %v2533
    %v2606 = vpop.f32.mrf.mxu0
    %v2607 = vadd.f32 %v1475, %v2606
    %v2608 = vpop.f32.mrf.mxu0
    %2609 = vdwg.mxu0
    %v2611 = vsel %vm37, %v1388, 0
    %v2614 = vsel %vm37, %v1393, 0
    %2616 = vmatprep.subr.mxu0 0.0
    %2617 = vmatpush1.xpose.msra.mxu0 0.0
    %2618 = vmatprep.subr.mxu0 0.0
    %2619 = vmatpush1.xpose.msra.mxu0 0.0
    %2620 = vmatprep.subr.mxu0 0.0
    %2621 = vmatpush1.xpose.msra.mxu0 0.0
    %2622 = vmatprep.subr.mxu0 0.0
    %2623 = vmatpush1.xpose.msra.mxu0 0.0
    %2624 = vmatprep.subr.mxu0 0.0
    %2625 = vmatpush1.xpose.msra.mxu0 0.0
    %2626 = vmatprep.subr.mxu0 0.0
    %2627 = vmatpush1.xpose.msra.mxu0 0.0
    %2628 = vmatprep.subr.mxu0 0.0
    %2629 = vmatpush1.xpose.msra.mxu0 0.0
    %2630 = vmatprep.subr.mxu0 0.0
    %2631 = vmatpush1.xpose.msra.mxu0 0.0
    %2632 = vmatprep.subr.mxu0 0.0
    %2633 = vmatpush1.xpose.msra.mxu0 0.0
    %2634 = vmatprep.subr.mxu0 0.0
    %2635 = vmatpush1.xpose.msra.mxu0 0.0
    %2636 = vmatprep.subr.mxu0 0.0
    %2637 = vmatpush1.xpose.msra.mxu0 0.0
    %2638 = vmatprep.subr.mxu0 0.0
    %2639 = vmatpush1.xpose.msra.mxu0 0.0
    %2640 = vmatprep.subr.mxu0 0.0
    %2641 = vmatpush1.xpose.msra.mxu0 0.0
    %2642 = vmatprep.subr.mxu0 0.0
    %2643 = vmatpush1.xpose.msra.mxu0 0.0
    %2644 = vmatprep.subr.mxu0 0.0
    %2645 = vmatpush1.xpose.msra.mxu0 %v42
    %2646 = vmatprep.subr.mxu0 0.0
    %2647 = vmatpush1.xpose.msra.mxu0 %v39
    %2648 = vmatprep.subr.mxu0 0.0
    %2649 = vmatpush2.xpose.msra.mxu0 0.0
    %2650 = vmatprep.subr.mxu0 0.0
    %2651 = vmatpush2.xpose.msra.mxu0 0.0
    %2652 = vmatprep.subr.mxu0 0.0
    %2653 = vmatpush2.xpose.msra.mxu0 0.0
    %2654 = vmatprep.subr.mxu0 0.0
    %2655 = vmatpush2.xpose.msra.mxu0 0.0
    %2656 = vmatprep.subr.mxu0 0.0
    %2657 = vmatpush2.xpose.msra.mxu0 0.0
    %2658 = vmatprep.subr.mxu0 0.0
    %2659 = vmatpush2.xpose.msra.mxu0 0.0
    %2660 = vmatprep.subr.mxu0 0.0
    %2661 = vmatpush2.xpose.msra.mxu0 0.0
    %2662 = vmatprep.subr.mxu0 0.0
    %2663 = vmatpush2.xpose.msra.mxu0 0.0
    %2664 = vmatprep.subr.mxu0 0.0
    %2665 = vmatpush2.xpose.msra.mxu0 0.0
    %2666 = vmatprep.subr.mxu0 0.0
    %2667 = vmatpush2.xpose.msra.mxu0 0.0
    %2668 = vmatprep.subr.mxu0 0.0
    %2669 = vmatpush2.xpose.msra.mxu0 0.0
    %2670 = vmatprep.subr.mxu0 0.0
    %2671 = vmatpush2.xpose.msra.mxu0 0.0
    %2672 = vmatprep.subr.mxu0 0.0
    %2673 = vmatpush2.xpose.msra.mxu0 0.0
    %2674 = vmatprep.subr.mxu0 0.0
    %2675 = vmatpush2.xpose.msra.mxu0 0.0
    %2676 = vmatprep.subr.mxu0 0.0
    %2677 = vmatpush2.xpose.msra.mxu0 0.0
    %2678 = vmatprep.subr.mxu0 0.0
    %2679 = vmatpush2.xpose.msra.mxu0 0.0
    %2680 = vmatprep.mubr.f32.mxu0 0.0
    %2681 = vmatmul.mubr.f32.gmra.mxu0 %v2611
    %v2682 = vpop.f32.mrf.mxu0
    %v2683 = vadd.f32 %v1474, %v2682
    %v2684 = vpop.f32.mrf.mxu0
    %2685 = vmatprep.mubr.f32.mxu0 0.0
    %2686 = vmatmul.mubr.f32.gmra.mxu0 %v2614
    %v2687 = vpop.f32.mrf.mxu0
    %v2688 = vadd.f32 %v1475, %v2687
    %v2689 = vpop.f32.mrf.mxu0
    %2690 = vdwg.mxu0
    %v2692 = vsel %vm37, %v1466, 0
    %v2695 = vsel %vm37, %v1471, 0
    %2697 = vmatprep.subr.mxu0 0.0
    %2698 = vmatpush1.xpose.msra.mxu0 0.0
    %2699 = vmatprep.subr.mxu0 0.0
    %2700 = vmatpush1.xpose.msra.mxu0 0.0
    %2701 = vmatprep.subr.mxu0 0.0
    %2702 = vmatpush1.xpose.msra.mxu0 0.0
    %2703 = vmatprep.subr.mxu0 0.0
    %2704 = vmatpush1.xpose.msra.mxu0 0.0
    %2705 = vmatprep.subr.mxu0 0.0
    %2706 = vmatpush1.xpose.msra.mxu0 0.0
    %2707 = vmatprep.subr.mxu0 0.0
    %2708 = vmatpush1.xpose.msra.mxu0 0.0
    %2709 = vmatprep.subr.mxu0 0.0
    %2710 = vmatpush1.xpose.msra.mxu0 0.0
    %2711 = vmatprep.subr.mxu0 0.0
    %2712 = vmatpush1.xpose.msra.mxu0 0.0
    %2713 = vmatprep.subr.mxu0 0.0
    %2714 = vmatpush1.xpose.msra.mxu0 0.0
    %2715 = vmatprep.subr.mxu0 0.0
    %2716 = vmatpush1.xpose.msra.mxu0 0.0
    %2717 = vmatprep.subr.mxu0 0.0
    %2718 = vmatpush1.xpose.msra.mxu0 0.0
    %2719 = vmatprep.subr.mxu0 0.0
    %2720 = vmatpush1.xpose.msra.mxu0 0.0
    %2721 = vmatprep.subr.mxu0 0.0
    %2722 = vmatpush1.xpose.msra.mxu0 0.0
    %2723 = vmatprep.subr.mxu0 0.0
    %2724 = vmatpush1.xpose.msra.mxu0 0.0
    %2725 = vmatprep.subr.mxu0 0.0
    %2726 = vmatpush1.xpose.msra.mxu0 %v42
    %2727 = vmatprep.subr.mxu0 0.0
    %2728 = vmatpush1.xpose.msra.mxu0 %v39
    %2729 = vmatprep.subr.mxu0 0.0
    %2730 = vmatpush2.xpose.msra.mxu0 0.0
    %2731 = vmatprep.subr.mxu0 0.0
    %2732 = vmatpush2.xpose.msra.mxu0 0.0
    %2733 = vmatprep.subr.mxu0 0.0
    %2734 = vmatpush2.xpose.msra.mxu0 0.0
    %2735 = vmatprep.subr.mxu0 0.0
    %2736 = vmatpush2.xpose.msra.mxu0 0.0
    %2737 = vmatprep.subr.mxu0 0.0
    %2738 = vmatpush2.xpose.msra.mxu0 0.0
    %2739 = vmatprep.subr.mxu0 0.0
    %2740 = vmatpush2.xpose.msra.mxu0 0.0
    %2741 = vmatprep.subr.mxu0 0.0
    %2742 = vmatpush2.xpose.msra.mxu0 0.0
    %2743 = vmatprep.subr.mxu0 0.0
    %2744 = vmatpush2.xpose.msra.mxu0 0.0
    %2745 = vmatprep.subr.mxu0 0.0
    %2746 = vmatpush2.xpose.msra.mxu0 0.0
    %2747 = vmatprep.subr.mxu0 0.0
    %2748 = vmatpush2.xpose.msra.mxu0 0.0
    %2749 = vmatprep.subr.mxu0 0.0
    %2750 = vmatpush2.xpose.msra.mxu0 0.0
    %2751 = vmatprep.subr.mxu0 0.0
    %2752 = vmatpush2.xpose.msra.mxu0 0.0
    %2753 = vmatprep.subr.mxu0 0.0
    %2754 = vmatpush2.xpose.msra.mxu0 0.0
    %2755 = vmatprep.subr.mxu0 0.0
    %2756 = vmatpush2.xpose.msra.mxu0 0.0
    %2757 = vmatprep.subr.mxu0 0.0
    %2758 = vmatpush2.xpose.msra.mxu0 0.0
    %2759 = vmatprep.subr.mxu0 0.0
    %2760 = vmatpush2.xpose.msra.mxu0 0.0
    %2761 = vmatprep.mubr.f32.mxu0 0.0
    %2762 = vmatmul.mubr.f32.gmra.mxu0 %v2692
    %v2763 = vpop.f32.mrf.mxu0
    %v2764 = vadd.f32 %v1474, %v2763
    %v2765 = vpop.f32.mrf.mxu0
    %2766 = vmatprep.mubr.f32.mxu0 0.0
    %2767 = vmatmul.mubr.f32.gmra.mxu0 %v2695
    %v2768 = vpop.f32.mrf.mxu0
    %v2769 = vadd.f32 %v1475, %v2768
    %v2770 = vpop.f32.mrf.mxu0
    %2771 = vdwg.mxu0
    %vm2772 = vcmask 130048
    %v2773 = vsel %vm2772, %v1549, -inf
    %2774 = vmax.xlane.f32.xlu0 %v2773
    %v2775 = vpop.xlane.xlu0 %2774
    %v2776 = vsel %vm2772, %v1554, -inf
    %2777 = vmax.xlane.f32.xlu0 %v2776
    %v2778 = vpop.xlane.xlu0 %2777
    %v2779 = vsel %vm2772, %v1630, -inf
    %2780 = vmax.xlane.f32.xlu0 %v2779
    %v2781 = vpop.xlane.xlu0 %2780
    %v2782 = vsel %vm2772, %v1635, -inf
    %2783 = vmax.xlane.f32.xlu0 %v2782
    %v2784 = vpop.xlane.xlu0 %2783
    %v2785 = vsel %vm2772, %v1711, -inf
    %2786 = vmax.xlane.f32.xlu0 %v2785
    %v2787 = vpop.xlane.xlu0 %2786
    %v2788 = vsel %vm2772, %v1716, -inf
    %2789 = vmax.xlane.f32.xlu0 %v2788
    %v2790 = vpop.xlane.xlu0 %2789
    %v2791 = vsel %vm2772, %v1792, -inf
    %2792 = vmax.xlane.f32.xlu0 %v2791
    %v2793 = vpop.xlane.xlu0 %2792
    %v2794 = vsel %vm2772, %v1797, -inf
    %2795 = vmax.xlane.f32.xlu0 %v2794
    %v2796 = vpop.xlane.xlu0 %2795
    %v2797 = vsel %vm2772, %v1873, -inf
    %2798 = vmax.xlane.f32.xlu0 %v2797
    %v2799 = vpop.xlane.xlu0 %2798
    %v2800 = vsel %vm2772, %v1878, -inf
    %2801 = vmax.xlane.f32.xlu0 %v2800
    %v2802 = vpop.xlane.xlu0 %2801
    %v2803 = vsel %vm2772, %v1954, -inf
    %2804 = vmax.xlane.f32.xlu0 %v2803
    %v2805 = vpop.xlane.xlu0 %2804
    %v2806 = vsel %vm2772, %v1959, -inf
    %2807 = vmax.xlane.f32.xlu0 %v2806
    %v2808 = vpop.xlane.xlu0 %2807
    %v2809 = vsel %vm2772, %v2035, -inf
    %2810 = vmax.xlane.f32.xlu0 %v2809
    %v2811 = vpop.xlane.xlu0 %2810
    %v2812 = vsel %vm2772, %v2040, -inf
    %2813 = vmax.xlane.f32.xlu0 %v2812
    %v2814 = vpop.xlane.xlu0 %2813
    %v2815 = vsel %vm2772, %v2116, -inf
    %2816 = vmax.xlane.f32.xlu0 %v2815
    %v2817 = vpop.xlane.xlu0 %2816
    %v2818 = vsel %vm2772, %v2121, -inf
    %2819 = vmax.xlane.f32.xlu0 %v2818
    %v2820 = vpop.xlane.xlu0 %2819
    %v2821 = vsel %vm2772, %v2197, -inf
    %2822 = vmax.xlane.f32.xlu0 %v2821
    %v2823 = vpop.xlane.xlu0 %2822
    %v2824 = vsel %vm2772, %v2202, -inf
    %2825 = vmax.xlane.f32.xlu0 %v2824
    %v2826 = vpop.xlane.xlu0 %2825
    %v2827 = vsel %vm2772, %v2278, -inf
    %2828 = vmax.xlane.f32.xlu0 %v2827
    %v2829 = vpop.xlane.xlu0 %2828
    %v2830 = vsel %vm2772, %v2283, -inf
    %2831 = vmax.xlane.f32.xlu0 %v2830
    %v2832 = vpop.xlane.xlu0 %2831
    %v2833 = vsel %vm2772, %v2359, -inf
    %2834 = vmax.xlane.f32.xlu0 %v2833
    %v2835 = vpop.xlane.xlu0 %2834
    %v2836 = vsel %vm2772, %v2364, -inf
    %2837 = vmax.xlane.f32.xlu0 %v2836
    %v2838 = vpop.xlane.xlu0 %2837
    %v2839 = vsel %vm2772, %v2440, -inf
    %2840 = vmax.xlane.f32.xlu0 %v2839
    %v2841 = vpop.xlane.xlu0 %2840
    %v2842 = vsel %vm2772, %v2445, -inf
    %2843 = vmax.xlane.f32.xlu0 %v2842
    %v2844 = vpop.xlane.xlu0 %2843
    %v2845 = vsel %vm2772, %v2521, -inf
    %2846 = vmax.xlane.f32.xlu0 %v2845
    %v2847 = vpop.xlane.xlu0 %2846
    %v2848 = vsel %vm2772, %v2526, -inf
    %2849 = vmax.xlane.f32.xlu0 %v2848
    %v2850 = vpop.xlane.xlu0 %2849
    %v2851 = vsel %vm2772, %v2602, -inf
    %2852 = vmax.xlane.f32.xlu0 %v2851
    %v2853 = vpop.xlane.xlu0 %2852
    %v2854 = vsel %vm2772, %v2607, -inf
    %2855 = vmax.xlane.f32.xlu0 %v2854
    %v2856 = vpop.xlane.xlu0 %2855
    %v2857 = vsel %vm2772, %v2683, -inf
    %2858 = vmax.xlane.f32.xlu0 %v2857
    %v2859 = vpop.xlane.xlu0 %2858
    %v2860 = vsel %vm2772, %v2688, -inf
    %2861 = vmax.xlane.f32.xlu0 %v2860
    %v2862 = vpop.xlane.xlu0 %2861
    %v2863 = vsel %vm2772, %v2764, -inf
    %2864 = vmax.xlane.f32.xlu0 %v2863
    %v2865 = vpop.xlane.xlu0 %2864
    %v2866 = vsel %vm2772, %v2769, -inf
    %2867 = vmax.xlane.f32.xlu0 %v2866
    %v2868 = vpop.xlane.xlu0 %2867
    %v2869 = vsub.f32 %v1549, %v2775
    %v2870 = vsub.f32 %v1554, %v2778
    %v2871 = vsub.f32 %v1630, %v2781
    %v2872 = vsub.f32 %v1635, %v2784
    %v2873 = vsub.f32 %v1711, %v2787
    %v2874 = vsub.f32 %v1716, %v2790
    %v2875 = vsub.f32 %v1792, %v2793
    %v2876 = vsub.f32 %v1797, %v2796
    %v2877 = vsub.f32 %v1873, %v2799
    %v2878 = vsub.f32 %v1878, %v2802
    %v2879 = vsub.f32 %v1954, %v2805
    %v2880 = vsub.f32 %v1959, %v2808
    %v2881 = vsub.f32 %v2035, %v2811
    %v2882 = vsub.f32 %v2040, %v2814
    %v2883 = vsub.f32 %v2116, %v2817
    %v2884 = vsub.f32 %v2121, %v2820
    %v2885 = vsub.f32 %v2197, %v2823
    %v2886 = vsub.f32 %v2202, %v2826
    %v2887 = vsub.f32 %v2278, %v2829
    %v2888 = vsub.f32 %v2283, %v2832
    %v2889 = vsub.f32 %v2359, %v2835
    %v2890 = vsub.f32 %v2364, %v2838
    %v2891 = vsub.f32 %v2440, %v2841
    %v2892 = vsub.f32 %v2445, %v2844
    %v2893 = vsub.f32 %v2521, %v2847
    %v2894 = vsub.f32 %v2526, %v2850
    %v2895 = vsub.f32 %v2602, %v2853
    %v2896 = vsub.f32 %v2607, %v2856
    %v2897 = vsub.f32 %v2683, %v2859
    %v2898 = vsub.f32 %v2688, %v2862
    %v2899 = vsub.f32 %v2764, %v2865
    %v2900 = vsub.f32 %v2769, %v2868
    %v2901 = vmul.f32 %v2869, 1.442695
    %v2902 = vpow.pop %v2901
    %v2903 = vmul.f32 %v2870, 1.442695
    %v2904 = vpow.pop %v2903
    %v2905 = vmul.f32 %v2871, 1.442695
    %v2906 = vpow.pop %v2905
    %v2907 = vmul.f32 %v2872, 1.442695
    %v2908 = vpow.pop %v2907
    %v2909 = vmul.f32 %v2873, 1.442695
    %v2910 = vpow.pop %v2909
    %v2911 = vmul.f32 %v2874, 1.442695
    %v2912 = vpow.pop %v2911
    %v2913 = vmul.f32 %v2875, 1.442695
    %v2914 = vpow.pop %v2913
    %v2915 = vmul.f32 %v2876, 1.442695
    %v2916 = vpow.pop %v2915
    %v2917 = vmul.f32 %v2877, 1.442695
    %v2918 = vpow.pop %v2917
    %v2919 = vmul.f32 %v2878, 1.442695
    %v2920 = vpow.pop %v2919
    %v2921 = vmul.f32 %v2879, 1.442695
    %v2922 = vpow.pop %v2921
    %v2923 = vmul.f32 %v2880, 1.442695
    %v2924 = vpow.pop %v2923
    %v2925 = vmul.f32 %v2881, 1.442695
    %v2926 = vpow.pop %v2925
    %v2927 = vmul.f32 %v2882, 1.442695
    %v2928 = vpow.pop %v2927
    %v2929 = vmul.f32 %v2883, 1.442695
    %v2930 = vpow.pop %v2929
    %v2931 = vmul.f32 %v2884, 1.442695
    %v2932 = vpow.pop %v2931
    %v2933 = vmul.f32 %v2885, 1.442695
    %v2934 = vpow.pop %v2933
    %v2935 = vmul.f32 %v2886, 1.442695
    %v2936 = vpow.pop %v2935
    %v2937 = vmul.f32 %v2887, 1.442695
    %v2938 = vpow.pop %v2937
    %v2939 = vmul.f32 %v2888, 1.442695
    %v2940 = vpow.pop %v2939
    %v2941 = vmul.f32 %v2889, 1.442695
    %v2942 = vpow.pop %v2941
    %v2943 = vmul.f32 %v2890, 1.442695
    %v2944 = vpow.pop %v2943
    %v2945 = vmul.f32 %v2891, 1.442695
    %v2946 = vpow.pop %v2945
    %v2947 = vmul.f32 %v2892, 1.442695
    %v2948 = vpow.pop %v2947
    %v2949 = vmul.f32 %v2893, 1.442695
    %v2950 = vpow.pop %v2949
    %v2951 = vmul.f32 %v2894, 1.442695
    %v2952 = vpow.pop %v2951
    %v2953 = vmul.f32 %v2895, 1.442695
    %v2954 = vpow.pop %v2953
    %v2955 = vmul.f32 %v2896, 1.442695
    %v2956 = vpow.pop %v2955
    %v2957 = vmul.f32 %v2897, 1.442695
    %v2958 = vpow.pop %v2957
    %v2959 = vmul.f32 %v2898, 1.442695
    %v2960 = vpow.pop %v2959
    %v2961 = vmul.f32 %v2899, 1.442695
    %v2962 = vpow.pop %v2961
    %v2963 = vmul.f32 %v2900, 1.442695
    %v2964 = vpow.pop %v2963
    %v2965 = vsel %vm2772, %v2902, 0.0
    %2966 = vadd.xlane.f32.xlu0 %v2965
    %v2967 = vpop.xlane.xlu0 %2966
    %v2968 = vsel %vm2772, %v2904, 0.0
    %2969 = vadd.xlane.f32.xlu0 %v2968
    %v2970 = vpop.xlane.xlu0 %2969
    %v2971 = vsel %vm2772, %v2906, 0.0
    %2972 = vadd.xlane.f32.xlu0 %v2971
    %v2973 = vpop.xlane.xlu0 %2972
    %v2974 = vsel %vm2772, %v2908, 0.0
    %2975 = vadd.xlane.f32.xlu0 %v2974
    %v2976 = vpop.xlane.xlu0 %2975
    %v2977 = vsel %vm2772, %v2910, 0.0
    %2978 = vadd.xlane.f32.xlu0 %v2977
    %v2979 = vpop.xlane.xlu0 %2978
    %v2980 = vsel %vm2772, %v2912, 0.0
    %2981 = vadd.xlane.f32.xlu0 %v2980
    %v2982 = vpop.xlane.xlu0 %2981
    %v2983 = vsel %vm2772, %v2914, 0.0
    %2984 = vadd.xlane.f32.xlu0 %v2983
    %v2985 = vpop.xlane.xlu0 %2984
    %v2986 = vsel %vm2772, %v2916, 0.0
    %2987 = vadd.xlane.f32.xlu0 %v2986
    %v2988 = vpop.xlane.xlu0 %2987
    %v2989 = vsel %vm2772, %v2918, 0.0
    %2990 = vadd.xlane.f32.xlu0 %v2989
    %v2991 = vpop.xlane.xlu0 %2990
    %v2992 = vsel %vm2772, %v2920, 0.0
    %2993 = vadd.xlane.f32.xlu0 %v2992
    %v2994 = vpop.xlane.xlu0 %2993
    %v2995 = vsel %vm2772, %v2922, 0.0
    %2996 = vadd.xlane.f32.xlu0 %v2995
    %v2997 = vpop.xlane.xlu0 %2996
    %v2998 = vsel %vm2772, %v2924, 0.0
    %2999 = vadd.xlane.f32.xlu0 %v2998
    %v3000 = vpop.xlane.xlu0 %2999
    %v3001 = vsel %vm2772, %v2926, 0.0
    %3002 = vadd.xlane.f32.xlu0 %v3001
    %v3003 = vpop.xlane.xlu0 %3002
    %v3004 = vsel %vm2772, %v2928, 0.0
    %3005 = vadd.xlane.f32.xlu0 %v3004
    %v3006 = vpop.xlane.xlu0 %3005
    %v3007 = vsel %vm2772, %v2930, 0.0
    %3008 = vadd.xlane.f32.xlu0 %v3007
    %v3009 = vpop.xlane.xlu0 %3008
    %v3010 = vsel %vm2772, %v2932, 0.0
    %3011 = vadd.xlane.f32.xlu0 %v3010
    %v3012 = vpop.xlane.xlu0 %3011
    %v3013 = vsel %vm2772, %v2934, 0.0
    %3014 = vadd.xlane.f32.xlu0 %v3013
    %v3015 = vpop.xlane.xlu0 %3014
    %v3016 = vsel %vm2772, %v2936, 0.0
    %3017 = vadd.xlane.f32.xlu0 %v3016
    %v3018 = vpop.xlane.xlu0 %3017
    %v3019 = vsel %vm2772, %v2938, 0.0
    %3020 = vadd.xlane.f32.xlu0 %v3019
    %v3021 = vpop.xlane.xlu0 %3020
    %v3022 = vsel %vm2772, %v2940, 0.0
    %3023 = vadd.xlane.f32.xlu0 %v3022
    %v3024 = vpop.xlane.xlu0 %3023
    %v3025 = vsel %vm2772, %v2942, 0.0
    %3026 = vadd.xlane.f32.xlu0 %v3025
    %v3027 = vpop.xlane.xlu0 %3026
    %v3028 = vsel %vm2772, %v2944, 0.0
    %3029 = vadd.xlane.f32.xlu0 %v3028
    %v3030 = vpop.xlane.xlu0 %3029
    %v3031 = vsel %vm2772, %v2946, 0.0
    %3032 = vadd.xlane.f32.xlu0 %v3031
    %v3033 = vpop.xlane.xlu0 %3032
    %v3034 = vsel %vm2772, %v2948, 0.0
    %3035 = vadd.xlane.f32.xlu0 %v3034
    %v3036 = vpop.xlane.xlu0 %3035
    %v3037 = vsel %vm2772, %v2950, 0.0
    %3038 = vadd.xlane.f32.xlu0 %v3037
    %v3039 = vpop.xlane.xlu0 %3038
    %v3040 = vsel %vm2772, %v2952, 0.0
    %3041 = vadd.xlane.f32.xlu0 %v3040
    %v3042 = vpop.xlane.xlu0 %3041
    %v3043 = vsel %vm2772, %v2954, 0.0
    %3044 = vadd.xlane.f32.xlu0 %v3043
    %v3045 = vpop.xlane.xlu0 %3044
    %v3046 = vsel %vm2772, %v2956, 0.0
    %3047 = vadd.xlane.f32.xlu0 %v3046
    %v3048 = vpop.xlane.xlu0 %3047
    %v3049 = vsel %vm2772, %v2958, 0.0
    %3050 = vadd.xlane.f32.xlu0 %v3049
    %v3051 = vpop.xlane.xlu0 %3050
    %v3052 = vsel %vm2772, %v2960, 0.0
    %3053 = vadd.xlane.f32.xlu0 %v3052
    %v3054 = vpop.xlane.xlu0 %3053
    %v3055 = vsel %vm2772, %v2962, 0.0
    %3056 = vadd.xlane.f32.xlu0 %v3055
    %v3057 = vpop.xlane.xlu0 %3056
    %v3058 = vsel %vm2772, %v2964, 0.0
    %3059 = vadd.xlane.f32.xlu0 %v3058
    %v3060 = vpop.xlane.xlu0 %3059
    %v3061 = vrcp.pop %v2967
    %v3062 = vrcp.pop %v2970
    %v3063 = vrcp.pop %v2973
    %v3064 = vrcp.pop %v2976
    %v3065 = vrcp.pop %v2979
    %v3066 = vrcp.pop %v2982
    %v3067 = vrcp.pop %v2985
    %v3068 = vrcp.pop %v2988
    %v3069 = vrcp.pop %v2991
    %v3070 = vrcp.pop %v2994
    %v3071 = vrcp.pop %v2997
    %v3072 = vrcp.pop %v3000
    %v3073 = vrcp.pop %v3003
    %v3074 = vrcp.pop %v3006
    %v3075 = vrcp.pop %v3009
    %v3076 = vrcp.pop %v3012
    %v3077 = vrcp.pop %v3015
    %v3078 = vrcp.pop %v3018
    %v3079 = vrcp.pop %v3021
    %v3080 = vrcp.pop %v3024
    %v3081 = vrcp.pop %v3027
    %v3082 = vrcp.pop %v3030
    %v3083 = vrcp.pop %v3033
    %v3084 = vrcp.pop %v3036
    %v3085 = vrcp.pop %v3039
    %v3086 = vrcp.pop %v3042
    %v3087 = vrcp.pop %v3045
    %v3088 = vrcp.pop %v3048
    %v3089 = vrcp.pop %v3051
    %v3090 = vrcp.pop %v3054
    %v3091 = vrcp.pop %v3057
    %v3092 = vrcp.pop %v3060
    %v3093 = vmul.f32 %v2902, %v3061
    %v3094 = vmul.f32 %v2904, %v3062
    %v3095 = vmul.f32 %v2906, %v3063
    %v3096 = vmul.f32 %v2908, %v3064
    %v3097 = vmul.f32 %v2910, %v3065
    %v3098 = vmul.f32 %v2912, %v3066
    %v3099 = vmul.f32 %v2914, %v3067
    %v3100 = vmul.f32 %v2916, %v3068
    %v3101 = vmul.f32 %v2918, %v3069
    %v3102 = vmul.f32 %v2920, %v3070
    %v3103 = vmul.f32 %v2922, %v3071
    %v3104 = vmul.f32 %v2924, %v3072
    %v3105 = vmul.f32 %v2926, %v3073
    %v3106 = vmul.f32 %v2928, %v3074
    %v3107 = vmul.f32 %v2930, %v3075
    %v3108 = vmul.f32 %v2932, %v3076
    %v3109 = vmul.f32 %v2934, %v3077
    %v3110 = vmul.f32 %v2936, %v3078
    %v3111 = vmul.f32 %v2938, %v3079
    %v3112 = vmul.f32 %v2940, %v3080
    %v3113 = vmul.f32 %v2942, %v3081
    %v3114 = vmul.f32 %v2944, %v3082
    %v3115 = vmul.f32 %v2946, %v3083
    %v3116 = vmul.f32 %v2948, %v3084
    %v3117 = vmul.f32 %v2950, %v3085
    %v3118 = vmul.f32 %v2952, %v3086
    %v3119 = vmul.f32 %v2954, %v3087
    %v3120 = vmul.f32 %v2956, %v3088
    %v3121 = vmul.f32 %v2958, %v3089
    %v3122 = vmul.f32 %v2960, %v3090
    %v3123 = vmul.f32 %v2962, %v3091
    %v3124 = vmul.f32 %v2964, %v3092
    %v3125 = vld [vmem:[%s2] sm:$0xff]
    %v3126 = vld [vmem:[%s2 + $0x8] sm:$0xff]
    %v3127 = vld [vmem:[%s2 + $0x10] sm:$0xff]
    %v3128 = vld [vmem:[%s2 + $0x18] sm:$0xff]
    %v3129 = vld [vmem:[%s2 + $0x20] sm:$0x1]
    %v3130 = vld [vmem:[%s2 + $0x28] sm:$0xff]
    %v3131 = vld [vmem:[%s2 + $0x30] sm:$0xff]
    %v3132 = vld [vmem:[%s2 + $0x38] sm:$0xff]
    %v3133 = vld [vmem:[%s2 + $0x40] sm:$0xff]
    %v3134 = vld [vmem:[%s2 + $0x48] sm:$0x1]
    %v3135 = vld [vmem:[%s2 + $0x50] sm:$0xff]
    %v3136 = vld [vmem:[%s2 + $0x58] sm:$0xff]
    %v3137 = vld [vmem:[%s2 + $0x60] sm:$0xff]
    %v3138 = vld [vmem:[%s2 + $0x68] sm:$0xff]
    %v3139 = vld [vmem:[%s2 + $0x70] sm:$0x1]
    %v3140 = vld [vmem:[%s2 + $0x78] sm:$0xff]
    %v3141 = vld [vmem:[%s2 + $0x80] sm:$0xff]
    %v3142 = vld [vmem:[%s2 + $0x88] sm:$0xff]
    %v3143 = vld [vmem:[%s2 + $0x90] sm:$0xff]
    %v3144 = vld [vmem:[%s2 + $0x98] sm:$0x1]
    %v3145 = vld [vmem:[%s2 + $0xa0] sm:$0xff]
    %v3146 = vld [vmem:[%s2 + $0xa8] sm:$0xff]
    %v3147 = vld [vmem:[%s2 + $0xb0] sm:$0xff]
    %v3148 = vld [vmem:[%s2 + $0xb8] sm:$0xff]
    %v3149 = vld [vmem:[%s2 + $0xc0] sm:$0x1]
    %v3150 = vld [vmem:[%s2 + $0xc8] sm:$0xff]
    %v3151 = vld [vmem:[%s2 + $0xd0] sm:$0xff]
    %v3152 = vld [vmem:[%s2 + $0xd8] sm:$0xff]
    %v3153 = vld [vmem:[%s2 + $0xe0] sm:$0xff]
    %v3154 = vld [vmem:[%s2 + $0xe8] sm:$0x1]
    %v3155 = vld [vmem:[%s2 + $0xf0] sm:$0xff]
    %v3156 = vld [vmem:[%s2 + $0xf8] sm:$0xff]
    %v3157 = vld [vmem:[%s2 + $0x100] sm:$0xff]
    %v3158 = vld [vmem:[%s2 + $0x108] sm:$0xff]
    %v3159 = vld [vmem:[%s2 + $0x110] sm:$0x1]
    %v3160 = vld [vmem:[%s2 + $0x118] sm:$0xff]
    %v3161 = vld [vmem:[%s2 + $0x120] sm:$0xff]
    %v3162 = vld [vmem:[%s2 + $0x128] sm:$0xff]
    %v3163 = vld [vmem:[%s2 + $0x130] sm:$0xff]
    %v3164 = vld [vmem:[%s2 + $0x138] sm:$0x1]
    %v3165 = vld [vmem:[%s2 + $0x140] sm:$0xff]
    %v3166 = vld [vmem:[%s2 + $0x148] sm:$0xff]
    %v3167 = vld [vmem:[%s2 + $0x150] sm:$0xff]
    %v3168 = vld [vmem:[%s2 + $0x158] sm:$0xff]
    %v3169 = vld [vmem:[%s2 + $0x160] sm:$0x1]
    %v3170 = vld [vmem:[%s2 + $0x168] sm:$0xff]
    %v3171 = vld [vmem:[%s2 + $0x170] sm:$0xff]
    %v3172 = vld [vmem:[%s2 + $0x178] sm:$0xff]
    %v3173 = vld [vmem:[%s2 + $0x180] sm:$0xff]
    %v3174 = vld [vmem:[%s2 + $0x188] sm:$0x1]
    %v3175 = vld [vmem:[%s2 + $0x190] sm:$0xff]
    %v3176 = vld [vmem:[%s2 + $0x198] sm:$0xff]
    %v3177 = vld [vmem:[%s2 + $0x1a0] sm:$0xff]
    %v3178 = vld [vmem:[%s2 + $0x1a8] sm:$0xff]
    %v3179 = vld [vmem:[%s2 + $0x1b0] sm:$0x1]
    %v3180 = vld [vmem:[%s2 + $0x1b8] sm:$0xff]
    %v3181 = vld [vmem:[%s2 + $0x1c0] sm:$0xff]
    %v3182 = vld [vmem:[%s2 + $0x1c8] sm:$0xff]
    %v3183 = vld [vmem:[%s2 + $0x1d0] sm:$0xff]
    %v3184 = vld [vmem:[%s2 + $0x1d8] sm:$0x1]
    %v3185 = vld [vmem:[%s2 + $0x1e0] sm:$0xff]
    %v3186 = vld [vmem:[%s2 + $0x1e8] sm:$0xff]
    %v3187 = vld [vmem:[%s2 + $0x1f0] sm:$0xff]
    %v3188 = vld [vmem:[%s2 + $0x1f8] sm:$0xff]
    %v3189 = vld [vmem:[%s2 + $0x200] sm:$0x1]
    %v3190 = vld [vmem:[%s2 + $0x208] sm:$0xff]
    %v3191 = vld [vmem:[%s2 + $0x210] sm:$0xff]
    %v3192 = vld [vmem:[%s2 + $0x218] sm:$0xff]
    %v3193 = vld [vmem:[%s2 + $0x220] sm:$0xff]
    %v3194 = vld [vmem:[%s2 + $0x228] sm:$0x1]
    %v3195 = vld [vmem:[%s2 + $0x230] sm:$0xff]
    %v3196 = vld [vmem:[%s2 + $0x238] sm:$0xff]
    %v3197 = vld [vmem:[%s2 + $0x240] sm:$0xff]
    %v3198 = vld [vmem:[%s2 + $0x248] sm:$0xff]
    %v3199 = vld [vmem:[%s2 + $0x250] sm:$0x1]
    %v3200 = vld [vmem:[%s2 + $0x258] sm:$0xff]
    %v3201 = vld [vmem:[%s2 + $0x260] sm:$0xff]
    %v3202 = vld [vmem:[%s2 + $0x268] sm:$0xff]
    %v3203 = vld [vmem:[%s2 + $0x270] sm:$0xff]
    %v3204 = vld [vmem:[%s2 + $0x278] sm:$0x1]
    %v3206 = vsel %vm44, %v3129, 0
    %3208 = vmatprep.subr.mxu0 0.0
    %3209 = vmatpush1.msra.mxu0 0.0
    %3210 = vmatprep.subr.mxu0 0.0
    %3211 = vmatpush1.msra.mxu0 0.0
    %3212 = vmatprep.subr.mxu0 0.0
    %3213 = vmatpush1.msra.mxu0 0.0
    %3214 = vmatprep.subr.mxu0 0.0
    %3215 = vmatpush1.msra.mxu0 0.0
    %3216 = vmatprep.subr.mxu0 0.0
    %3217 = vmatpush1.msra.mxu0 0.0
    %3218 = vmatprep.subr.mxu0 0.0
    %3219 = vmatpush1.msra.mxu0 0.0
    %3220 = vmatprep.subr.mxu0 0.0
    %3221 = vmatpush1.msra.mxu0 0.0
    %3222 = vmatprep.subr.mxu0 0.0
    %3223 = vmatpush1.msra.mxu0 0.0
    %3224 = vmatprep.subr.mxu0 0.0
    %3225 = vmatpush1.msra.mxu0 0.0
    %3226 = vmatprep.subr.mxu0 0.0
    %3227 = vmatpush1.msra.mxu0 0.0
    %3228 = vmatprep.subr.mxu0 0.0
    %3229 = vmatpush1.msra.mxu0 0.0
    %3230 = vmatprep.subr.mxu0 0.0
    %3231 = vmatpush1.msra.mxu0 %v3206
    %3232 = vmatprep.subr.mxu0 0.0
    %3233 = vmatpush1.msra.mxu0 %v3128
    %3234 = vmatprep.subr.mxu0 0.0
    %3235 = vmatpush1.msra.mxu0 %v3127
    %3236 = vmatprep.subr.mxu0 0.0
    %3237 = vmatpush1.msra.mxu0 %v3126
    %3238 = vmatprep.subr.mxu0 0.0
    %3239 = vmatpush1.msra.mxu0 %v3125
    %3240 = vmatprep.subr.mxu0 0.0
    %3241 = vmatpush2.msra.mxu0 0.0
    %3242 = vmatprep.subr.mxu0 0.0
    %3243 = vmatpush2.msra.mxu0 0.0
    %3244 = vmatprep.subr.mxu0 0.0
    %3245 = vmatpush2.msra.mxu0 0.0
    %3246 = vmatprep.subr.mxu0 0.0
    %3247 = vmatpush2.msra.mxu0 0.0
    %3248 = vmatprep.subr.mxu0 0.0
    %3249 = vmatpush2.msra.mxu0 0.0
    %3250 = vmatprep.subr.mxu0 0.0
    %3251 = vmatpush2.msra.mxu0 0.0
    %3252 = vmatprep.subr.mxu0 0.0
    %3253 = vmatpush2.msra.mxu0 0.0
    %3254 = vmatprep.subr.mxu0 0.0
    %3255 = vmatpush2.msra.mxu0 0.0
    %3256 = vmatprep.subr.mxu0 0.0
    %3257 = vmatpush2.msra.mxu0 0.0
    %3258 = vmatprep.subr.mxu0 0.0
    %3259 = vmatpush2.msra.mxu0 0.0
    %3260 = vmatprep.subr.mxu0 0.0
    %3261 = vmatpush2.msra.mxu0 0.0
    %3262 = vmatprep.subr.mxu0 0.0
    %3263 = vmatpush2.msra.mxu0 0.0
    %3264 = vmatprep.subr.mxu0 0.0
    %3265 = vmatpush2.msra.mxu0 0.0
    %3266 = vmatprep.subr.mxu0 0.0
    %3267 = vmatpush2.msra.mxu0 0.0
    %3268 = vmatprep.subr.mxu0 0.0
    %3269 = vmatpush2.msra.mxu0 0.0
    %3270 = vmatprep.subr.mxu0 0.0
    %3271 = vmatpush2.msra.mxu0 0.0
    %3272 = vmatprep.mubr.f32.mxu0 0.0
    %3273 = vmatmul.mubr.f32.gmra.mxu0 %v39
    %v3274 = vpop.f32.mrf.mxu0
    %v3275 = vadd.f32 0.0, %v3274
    %v3276 = vpop.f32.mrf.mxu0
    %3277 = vmatprep.mubr.f32.mxu0 0.0
    %3278 = vmatmul.mubr.f32.gmra.mxu0 %v42
    %v3279 = vpop.f32.mrf.mxu0
    %v3280 = vadd.f32 0.0, %v3279
    %v3281 = vpop.f32.mrf.mxu0
    %3282 = vdwg.mxu0
    %v3284 = vsel %vm44, %v3134, 0
    %3286 = vmatprep.subr.mxu0 0.0
    %3287 = vmatpush1.msra.mxu0 0.0
    %3288 = vmatprep.subr.mxu0 0.0
    %3289 = vmatpush1.msra.mxu0 0.0
    %3290 = vmatprep.subr.mxu0 0.0
    %3291 = vmatpush1.msra.mxu0 0.0
    %3292 = vmatprep.subr.mxu0 0.0
    %3293 = vmatpush1.msra.mxu0 0.0
    %3294 = vmatprep.subr.mxu0 0.0
    %3295 = vmatpush1.msra.mxu0 0.0
    %3296 = vmatprep.subr.mxu0 0.0
    %3297 = vmatpush1.msra.mxu0 0.0
    %3298 = vmatprep.subr.mxu0 0.0
    %3299 = vmatpush1.msra.mxu0 0.0
    %3300 = vmatprep.subr.mxu0 0.0
    %3301 = vmatpush1.msra.mxu0 0.0
    %3302 = vmatprep.subr.mxu0 0.0
    %3303 = vmatpush1.msra.mxu0 0.0
    %3304 = vmatprep.subr.mxu0 0.0
    %3305 = vmatpush1.msra.mxu0 0.0
    %3306 = vmatprep.subr.mxu0 0.0
    %3307 = vmatpush1.msra.mxu0 0.0
    %3308 = vmatprep.subr.mxu0 0.0
    %3309 = vmatpush1.msra.mxu0 %v3284
    %3310 = vmatprep.subr.mxu0 0.0
    %3311 = vmatpush1.msra.mxu0 %v3133
    %3312 = vmatprep.subr.mxu0 0.0
    %3313 = vmatpush1.msra.mxu0 %v3132
    %3314 = vmatprep.subr.mxu0 0.0
    %3315 = vmatpush1.msra.mxu0 %v3131
    %3316 = vmatprep.subr.mxu0 0.0
    %3317 = vmatpush1.msra.mxu0 %v3130
    %3318 = vmatprep.subr.mxu0 0.0
    %3319 = vmatpush2.msra.mxu0 0.0
    %3320 = vmatprep.subr.mxu0 0.0
    %3321 = vmatpush2.msra.mxu0 0.0
    %3322 = vmatprep.subr.mxu0 0.0
    %3323 = vmatpush2.msra.mxu0 0.0
    %3324 = vmatprep.subr.mxu0 0.0
    %3325 = vmatpush2.msra.mxu0 0.0
    %3326 = vmatprep.subr.mxu0 0.0
    %3327 = vmatpush2.msra.mxu0 0.0
    %3328 = vmatprep.subr.mxu0 0.0
    %3329 = vmatpush2.msra.mxu0 0.0
    %3330 = vmatprep.subr.mxu0 0.0
    %3331 = vmatpush2.msra.mxu0 0.0
    %3332 = vmatprep.subr.mxu0 0.0
    %3333 = vmatpush2.msra.mxu0 0.0
    %3334 = vmatprep.subr.mxu0 0.0
    %3335 = vmatpush2.msra.mxu0 0.0
    %3336 = vmatprep.subr.mxu0 0.0
    %3337 = vmatpush2.msra.mxu0 0.0
    %3338 = vmatprep.subr.mxu0 0.0
    %3339 = vmatpush2.msra.mxu0 0.0
    %3340 = vmatprep.subr.mxu0 0.0
    %3341 = vmatpush2.msra.mxu0 0.0
    %3342 = vmatprep.subr.mxu0 0.0
    %3343 = vmatpush2.msra.mxu0 0.0
    %3344 = vmatprep.subr.mxu0 0.0
    %3345 = vmatpush2.msra.mxu0 0.0
    %3346 = vmatprep.subr.mxu0 0.0
    %3347 = vmatpush2.msra.mxu0 0.0
    %3348 = vmatprep.subr.mxu0 0.0
    %3349 = vmatpush2.msra.mxu0 0.0
    %3350 = vmatprep.mubr.f32.mxu0 0.0
    %3351 = vmatmul.mubr.f32.gmra.mxu0 %v39
    %v3352 = vpop.f32.mrf.mxu0
    %v3353 = vadd.f32 0.0, %v3352
    %v3354 = vpop.f32.mrf.mxu0
    %3355 = vmatprep.mubr.f32.mxu0 0.0
    %3356 = vmatmul.mubr.f32.gmra.mxu0 %v42
    %v3357 = vpop.f32.mrf.mxu0
    %v3358 = vadd.f32 0.0, %v3357
    %v3359 = vpop.f32.mrf.mxu0
    %3360 = vdwg.mxu0
    %v3362 = vsel %vm44, %v3139, 0
    %3364 = vmatprep.subr.mxu0 0.0
    %3365 = vmatpush1.msra.mxu0 0.0
    %3366 = vmatprep.subr.mxu0 0.0
    %3367 = vmatpush1.msra.mxu0 0.0
    %3368 = vmatprep.subr.mxu0 0.0
    %3369 = vmatpush1.msra.mxu0 0.0
    %3370 = vmatprep.subr.mxu0 0.0
    %3371 = vmatpush1.msra.mxu0 0.0
    %3372 = vmatprep.subr.mxu0 0.0
    %3373 = vmatpush1.msra.mxu0 0.0
    %3374 = vmatprep.subr.mxu0 0.0
    %3375 = vmatpush1.msra.mxu0 0.0
    %3376 = vmatprep.subr.mxu0 0.0
    %3377 = vmatpush1.msra.mxu0 0.0
    %3378 = vmatprep.subr.mxu0 0.0
    %3379 = vmatpush1.msra.mxu0 0.0
    %3380 = vmatprep.subr.mxu0 0.0
    %3381 = vmatpush1.msra.mxu0 0.0
    %3382 = vmatprep.subr.mxu0 0.0
    %3383 = vmatpush1.msra.mxu0 0.0
    %3384 = vmatprep.subr.mxu0 0.0
    %3385 = vmatpush1.msra.mxu0 0.0
    %3386 = vmatprep.subr.mxu0 0.0
    %3387 = vmatpush1.msra.mxu0 %v3362
    %3388 = vmatprep.subr.mxu0 0.0
    %3389 = vmatpush1.msra.mxu0 %v3138
    %3390 = vmatprep.subr.mxu0 0.0
    %3391 = vmatpush1.msra.mxu0 %v3137
    %3392 = vmatprep.subr.mxu0 0.0
    %3393 = vmatpush1.msra.mxu0 %v3136
    %3394 = vmatprep.subr.mxu0 0.0
    %3395 = vmatpush1.msra.mxu0 %v3135
    %3396 = vmatprep.subr.mxu0 0.0
    %3397 = vmatpush2.msra.mxu0 0.0
    %3398 = vmatprep.subr.mxu0 0.0
    %3399 = vmatpush2.msra.mxu0 0.0
    %3400 = vmatprep.subr.mxu0 0.0
    %3401 = vmatpush2.msra.mxu0 0.0
    %3402 = vmatprep.subr.mxu0 0.0
    %3403 = vmatpush2.msra.mxu0 0.0
    %3404 = vmatprep.subr.mxu0 0.0
    %3405 = vmatpush2.msra.mxu0 0.0
    %3406 = vmatprep.subr.mxu0 0.0
    %3407 = vmatpush2.msra.mxu0 0.0
    %3408 = vmatprep.subr.mxu0 0.0
    %3409 = vmatpush2.msra.mxu0 0.0
    %3410 = vmatprep.subr.mxu0 0.0
    %3411 = vmatpush2.msra.mxu0 0.0
    %3412 = vmatprep.subr.mxu0 0.0
    %3413 = vmatpush2.msra.mxu0 0.0
    %3414 = vmatprep.subr.mxu0 0.0
    %3415 = vmatpush2.msra.mxu0 0.0
    %3416 = vmatprep.subr.mxu0 0.0
    %3417 = vmatpush2.msra.mxu0 0.0
    %3418 = vmatprep.subr.mxu0 0.0
    %3419 = vmatpush2.msra.mxu0 0.0
    %3420 = vmatprep.subr.mxu0 0.0
    %3421 = vmatpush2.msra.mxu0 0.0
    %3422 = vmatprep.subr.mxu0 0.0
    %3423 = vmatpush2.msra.mxu0 0.0
    %3424 = vmatprep.subr.mxu0 0.0
    %3425 = vmatpush2.msra.mxu0 0.0
    %3426 = vmatprep.subr.mxu0 0.0
    %3427 = vmatpush2.msra.mxu0 0.0
    %3428 = vmatprep.mubr.f32.mxu0 0.0
    %3429 = vmatmul.mubr.f32.gmra.mxu0 %v39
    %v3430 = vpop.f32.mrf.mxu0
    %v3431 = vadd.f32 0.0, %v3430
    %v3432 = vpop.f32.mrf.mxu0
    %3433 = vmatprep.mubr.f32.mxu0 0.0
    %3434 = vmatmul.mubr.f32.gmra.mxu0 %v42
    %v3435 = vpop.f32.mrf.mxu0
    %v3436 = vadd.f32 0.0, %v3435
    %v3437 = vpop.f32.mrf.mxu0
    %3438 = vdwg.mxu0
    %v3440 = vsel %vm44, %v3144, 0
    %3442 = vmatprep.subr.mxu0 0.0
    %3443 = vmatpush1.msra.mxu0 0.0
    %3444 = vmatprep.subr.mxu0 0.0
    %3445 = vmatpush1.msra.mxu0 0.0
    %3446 = vmatprep.subr.mxu0 0.0
    %3447 = vmatpush1.msra.mxu0 0.0
    %3448 = vmatprep.subr.mxu0 0.0
    %3449 = vmatpush1.msra.mxu0 0.0
    %3450 = vmatprep.subr.mxu0 0.0
    %3451 = vmatpush1.msra.mxu0 0.0
    %3452 = vmatprep.subr.mxu0 0.0
    %3453 = vmatpush1.msra.mxu0 0.0
    %3454 = vmatprep.subr.mxu0 0.0
    %3455 = vmatpush1.msra.mxu0 0.0
    %3456 = vmatprep.subr.mxu0 0.0
    %3457 = vmatpush1.msra.mxu0 0.0
    %3458 = vmatprep.subr.mxu0 0.0
    %3459 = vmatpush1.msra.mxu0 0.0
    %3460 = vmatprep.subr.mxu0 0.0
    %3461 = vmatpush1.msra.mxu0 0.0
    %3462 = vmatprep.subr.mxu0 0.0
    %3463 = vmatpush1.msra.mxu0 0.0
    %3464 = vmatprep.subr.mxu0 0.0
    %3465 = vmatpush1.msra.mxu0 %v3440
    %3466 = vmatprep.subr.mxu0 0.0
    %3467 = vmatpush1.msra.mxu0 %v3143
    %3468 = vmatprep.subr.mxu0 0.0
    %3469 = vmatpush1.msra.mxu0 %v3142
    %3470 = vmatprep.subr.mxu0 0.0
    %3471 = vmatpush1.msra.mxu0 %v3141
    %3472 = vmatprep.subr.mxu0 0.0
    %3473 = vmatpush1.msra.mxu0 %v3140
    %3474 = vmatprep.subr.mxu0 0.0
    %3475 = vmatpush2.msra.mxu0 0.0
    %3476 = vmatprep.subr.mxu0 0.0
    %3477 = vmatpush2.msra.mxu0 0.0
    %3478 = vmatprep.subr.mxu0 0.0
    %3479 = vmatpush2.msra.mxu0 0.0
    %3480 = vmatprep.subr.mxu0 0.0
    %3481 = vmatpush2.msra.mxu0 0.0
    %3482 = vmatprep.subr.mxu0 0.0
    %3483 = vmatpush2.msra.mxu0 0.0
    %3484 = vmatprep.subr.mxu0 0.0
    %3485 = vmatpush2.msra.mxu0 0.0
    %3486 = vmatprep.subr.mxu0 0.0
    %3487 = vmatpush2.msra.mxu0 0.0
    %3488 = vmatprep.subr.mxu0 0.0
    %3489 = vmatpush2.msra.mxu0 0.0
    %3490 = vmatprep.subr.mxu0 0.0
    %3491 = vmatpush2.msra.mxu0 0.0
    %3492 = vmatprep.subr.mxu0 0.0
    %3493 = vmatpush2.msra.mxu0 0.0
    %3494 = vmatprep.subr.mxu0 0.0
    %3495 = vmatpush2.msra.mxu0 0.0
    %3496 = vmatprep.subr.mxu0 0.0
    %3497 = vmatpush2.msra.mxu0 0.0
    %3498 = vmatprep.subr.mxu0 0.0
    %3499 = vmatpush2.msra.mxu0 0.0
    %3500 = vmatprep.subr.mxu0 0.0
    %3501 = vmatpush2.msra.mxu0 0.0
    %3502 = vmatprep.subr.mxu0 0.0
    %3503 = vmatpush2.msra.mxu0 0.0
    %3504 = vmatprep.subr.mxu0 0.0
    %3505 = vmatpush2.msra.mxu0 0.0
    %3506 = vmatprep.mubr.f32.mxu0 0.0
    %3507 = vmatmul.mubr.f32.gmra.mxu0 %v39
    %v3508 = vpop.f32.mrf.mxu0
    %v3509 = vadd.f32 0.0, %v3508
    %v3510 = vpop.f32.mrf.mxu0
    %3511 = vmatprep.mubr.f32.mxu0 0.0
    %3512 = vmatmul.mubr.f32.gmra.mxu0 %v42
    %v3513 = vpop.f32.mrf.mxu0
    %v3514 = vadd.f32 0.0, %v3513
    %v3515 = vpop.f32.mrf.mxu0
    %3516 = vdwg.mxu0
    %v3518 = vsel %vm44, %v3149, 0
    %3520 = vmatprep.subr.mxu0 0.0
    %3521 = vmatpush1.msra.mxu0 0.0
    %3522 = vmatprep.subr.mxu0 0.0
    %3523 = vmatpush1.msra.mxu0 0.0
    %3524 = vmatprep.subr.mxu0 0.0
    %3525 = vmatpush1.msra.mxu0 0.0
    %3526 = vmatprep.subr.mxu0 0.0
    %3527 = vmatpush1.msra.mxu0 0.0
    %3528 = vmatprep.subr.mxu0 0.0
    %3529 = vmatpush1.msra.mxu0 0.0
    %3530 = vmatprep.subr.mxu0 0.0
    %3531 = vmatpush1.msra.mxu0 0.0
    %3532 = vmatprep.subr.mxu0 0.0
    %3533 = vmatpush1.msra.mxu0 0.0
    %3534 = vmatprep.subr.mxu0 0.0
    %3535 = vmatpush1.msra.mxu0 0.0
    %3536 = vmatprep.subr.mxu0 0.0
    %3537 = vmatpush1.msra.mxu0 0.0
    %3538 = vmatprep.subr.mxu0 0.0
    %3539 = vmatpush1.msra.mxu0 0.0
    %3540 = vmatprep.subr.mxu0 0.0
    %3541 = vmatpush1.msra.mxu0 0.0
    %3542 = vmatprep.subr.mxu0 0.0
    %3543 = vmatpush1.msra.mxu0 %v3518
    %3544 = vmatprep.subr.mxu0 0.0
    %3545 = vmatpush1.msra.mxu0 %v3148
    %3546 = vmatprep.subr.mxu0 0.0
    %3547 = vmatpush1.msra.mxu0 %v3147
    %3548 = vmatprep.subr.mxu0 0.0
    %3549 = vmatpush1.msra.mxu0 %v3146
    %3550 = vmatprep.subr.mxu0 0.0
    %3551 = vmatpush1.msra.mxu0 %v3145
    %3552 = vmatprep.subr.mxu0 0.0
    %3553 = vmatpush2.msra.mxu0 0.0
    %3554 = vmatprep.subr.mxu0 0.0
    %3555 = vmatpush2.msra.mxu0 0.0
    %3556 = vmatprep.subr.mxu0 0.0
    %3557 = vmatpush2.msra.mxu0 0.0
    %3558 = vmatprep.subr.mxu0 0.0
    %3559 = vmatpush2.msra.mxu0 0.0
    %3560 = vmatprep.subr.mxu0 0.0
    %3561 = vmatpush2.msra.mxu0 0.0
    %3562 = vmatprep.subr.mxu0 0.0
    %3563 = vmatpush2.msra.mxu0 0.0
    %3564 = vmatprep.subr.mxu0 0.0
    %3565 = vmatpush2.msra.mxu0 0.0
    %3566 = vmatprep.subr.mxu0 0.0
    %3567 = vmatpush2.msra.mxu0 0.0
    %3568 = vmatprep.subr.mxu0 0.0
    %3569 = vmatpush2.msra.mxu0 0.0
    %3570 = vmatprep.subr.mxu0 0.0
    %3571 = vmatpush2.msra.mxu0 0.0
    %3572 = vmatprep.subr.mxu0 0.0
    %3573 = vmatpush2.msra.mxu0 0.0
    %3574 = vmatprep.subr.mxu0 0.0
    %3575 = vmatpush2.msra.mxu0 0.0
    %3576 = vmatprep.subr.mxu0 0.0
    %3577 = vmatpush2.msra.mxu0 0.0
    %3578 = vmatprep.subr.mxu0 0.0
    %3579 = vmatpush2.msra.mxu0 0.0
    %3580 = vmatprep.subr.mxu0 0.0
    %3581 = vmatpush2.msra.mxu0 0.0
    %3582 = vmatprep.subr.mxu0 0.0
    %3583 = vmatpush2.msra.mxu0 0.0
    %3584 = vmatprep.mubr.f32.mxu0 0.0
    %3585 = vmatmul.mubr.f32.gmra.mxu0 %v39
    %v3586 = vpop.f32.mrf.mxu0
    %v3587 = vadd.f32 0.0, %v3586
    %v3588 = vpop.f32.mrf.mxu0
    %3589 = vmatprep.mubr.f32.mxu0 0.0
    %3590 = vmatmul.mubr.f32.gmra.mxu0 %v42
    %v3591 = vpop.f32.mrf.mxu0
    %v3592 = vadd.f32 0.0, %v3591
    %v3593 = vpop.f32.mrf.mxu0
    %3594 = vdwg.mxu0
    %v3596 = vsel %vm44, %v3154, 0
    %3598 = vmatprep.subr.mxu0 0.0
    %3599 = vmatpush1.msra.mxu0 0.0
    %3600 = vmatprep.subr.mxu0 0.0
    %3601 = vmatpush1.msra.mxu0 0.0
    %3602 = vmatprep.subr.mxu0 0.0
    %3603 = vmatpush1.msra.mxu0 0.0
    %3604 = vmatprep.subr.mxu0 0.0
    %3605 = vmatpush1.msra.mxu0 0.0
    %3606 = vmatprep.subr.mxu0 0.0
    %3607 = vmatpush1.msra.mxu0 0.0
    %3608 = vmatprep.subr.mxu0 0.0
    %3609 = vmatpush1.msra.mxu0 0.0
    %3610 = vmatprep.subr.mxu0 0.0
    %3611 = vmatpush1.msra.mxu0 0.0
    %3612 = vmatprep.subr.mxu0 0.0
    %3613 = vmatpush1.msra.mxu0 0.0
    %3614 = vmatprep.subr.mxu0 0.0
    %3615 = vmatpush1.msra.mxu0 0.0
    %3616 = vmatprep.subr.mxu0 0.0
    %3617 = vmatpush1.msra.mxu0 0.0
    %3618 = vmatprep.subr.mxu0 0.0
    %3619 = vmatpush1.msra.mxu0 0.0
    %3620 = vmatprep.subr.mxu0 0.0
    %3621 = vmatpush1.msra.mxu0 %v3596
    %3622 = vmatprep.subr.mxu0 0.0
    %3623 = vmatpush1.msra.mxu0 %v3153
    %3624 = vmatprep.subr.mxu0 0.0
    %3625 = vmatpush1.msra.mxu0 %v3152
    %3626 = vmatprep.subr.mxu0 0.0
    %3627 = vmatpush1.msra.mxu0 %v3151
    %3628 = vmatprep.subr.mxu0 0.0
    %3629 = vmatpush1.msra.mxu0 %v3150
    %3630 = vmatprep.subr.mxu0 0.0
    %3631 = vmatpush2.msra.mxu0 0.0
    %3632 = vmatprep.subr.mxu0 0.0
    %3633 = vmatpush2.msra.mxu0 0.0
    %3634 = vmatprep.subr.mxu0 0.0
    %3635 = vmatpush2.msra.mxu0 0.0
    %3636 = vmatprep.subr.mxu0 0.0
    %3637 = vmatpush2.msra.mxu0 0.0
    %3638 = vmatprep.subr.mxu0 0.0
    %3639 = vmatpush2.msra.mxu0 0.0
    %3640 = vmatprep.subr.mxu0 0.0
    %3641 = vmatpush2.msra.mxu0 0.0
    %3642 = vmatprep.subr.mxu0 0.0
    %3643 = vmatpush2.msra.mxu0 0.0
    %3644 = vmatprep.subr.mxu0 0.0
    %3645 = vmatpush2.msra.mxu0 0.0
    %3646 = vmatprep.subr.mxu0 0.0
    %3647 = vmatpush2.msra.mxu0 0.0
    %3648 = vmatprep.subr.mxu0 0.0
    %3649 = vmatpush2.msra.mxu0 0.0
    %3650 = vmatprep.subr.mxu0 0.0
    %3651 = vmatpush2.msra.mxu0 0.0
    %3652 = vmatprep.subr.mxu0 0.0
    %3653 = vmatpush2.msra.mxu0 0.0
    %3654 = vmatprep.subr.mxu0 0.0
    %3655 = vmatpush2.msra.mxu0 0.0
    %3656 = vmatprep.subr.mxu0 0.0
    %3657 = vmatpush2.msra.mxu0 0.0
    %3658 = vmatprep.subr.mxu0 0.0
    %3659 = vmatpush2.msra.mxu0 0.0
    %3660 = vmatprep.subr.mxu0 0.0
    %3661 = vmatpush2.msra.mxu0 0.0
    %3662 = vmatprep.mubr.f32.mxu0 0.0
    %3663 = vmatmul.mubr.f32.gmra.mxu0 %v39
    %v3664 = vpop.f32.mrf.mxu0
    %v3665 = vadd.f32 0.0, %v3664
    %v3666 = vpop.f32.mrf.mxu0
    %3667 = vmatprep.mubr.f32.mxu0 0.0
    %3668 = vmatmul.mubr.f32.gmra.mxu0 %v42
    %v3669 = vpop.f32.mrf.mxu0
    %v3670 = vadd.f32 0.0, %v3669
    %v3671 = vpop.f32.mrf.mxu0
    %3672 = vdwg.mxu0
    %v3674 = vsel %vm44, %v3159, 0
    %3676 = vmatprep.subr.mxu0 0.0
    %3677 = vmatpush1.msra.mxu0 0.0
    %3678 = vmatprep.subr.mxu0 0.0
    %3679 = vmatpush1.msra.mxu0 0.0
    %3680 = vmatprep.subr.mxu0 0.0
    %3681 = vmatpush1.msra.mxu0 0.0
    %3682 = vmatprep.subr.mxu0 0.0
    %3683 = vmatpush1.msra.mxu0 0.0
    %3684 = vmatprep.subr.mxu0 0.0
    %3685 = vmatpush1.msra.mxu0 0.0
    %3686 = vmatprep.subr.mxu0 0.0
    %3687 = vmatpush1.msra.mxu0 0.0
    %3688 = vmatprep.subr.mxu0 0.0
    %3689 = vmatpush1.msra.mxu0 0.0
    %3690 = vmatprep.subr.mxu0 0.0
    %3691 = vmatpush1.msra.mxu0 0.0
    %3692 = vmatprep.subr.mxu0 0.0
    %3693 = vmatpush1.msra.mxu0 0.0
    %3694 = vmatprep.subr.mxu0 0.0
    %3695 = vmatpush1.msra.mxu0 0.0
    %3696 = vmatprep.subr.mxu0 0.0
    %3697 = vmatpush1.msra.mxu0 0.0
    %3698 = vmatprep.subr.mxu0 0.0
    %3699 = vmatpush1.msra.mxu0 %v3674
    %3700 = vmatprep.subr.mxu0 0.0
    %3701 = vmatpush1.msra.mxu0 %v3158
    %3702 = vmatprep.subr.mxu0 0.0
    %3703 = vmatpush1.msra.mxu0 %v3157
    %3704 = vmatprep.subr.mxu0 0.0
    %3705 = vmatpush1.msra.mxu0 %v3156
    %3706 = vmatprep.subr.mxu0 0.0
    %3707 = vmatpush1.msra.mxu0 %v3155
    %3708 = vmatprep.subr.mxu0 0.0
    %3709 = vmatpush2.msra.mxu0 0.0
    %3710 = vmatprep.subr.mxu0 0.0
    %3711 = vmatpush2.msra.mxu0 0.0
    %3712 = vmatprep.subr.mxu0 0.0
    %3713 = vmatpush2.msra.mxu0 0.0
    %3714 = vmatprep.subr.mxu0 0.0
    %3715 = vmatpush2.msra.mxu0 0.0
    %3716 = vmatprep.subr.mxu0 0.0
    %3717 = vmatpush2.msra.mxu0 0.0
    %3718 = vmatprep.subr.mxu0 0.0
    %3719 = vmatpush2.msra.mxu0 0.0
    %3720 = vmatprep.subr.mxu0 0.0
    %3721 = vmatpush2.msra.mxu0 0.0
    %3722 = vmatprep.subr.mxu0 0.0
    %3723 = vmatpush2.msra.mxu0 0.0
    %3724 = vmatprep.subr.mxu0 0.0
    %3725 = vmatpush2.msra.mxu0 0.0
    %3726 = vmatprep.subr.mxu0 0.0
    %3727 = vmatpush2.msra.mxu0 0.0
    %3728 = vmatprep.subr.mxu0 0.0
    %3729 = vmatpush2.msra.mxu0 0.0
    %3730 = vmatprep.subr.mxu0 0.0
    %3731 = vmatpush2.msra.mxu0 0.0
    %3732 = vmatprep.subr.mxu0 0.0
    %3733 = vmatpush2.msra.mxu0 0.0
    %3734 = vmatprep.subr.mxu0 0.0
    %3735 = vmatpush2.msra.mxu0 0.0
    %3736 = vmatprep.subr.mxu0 0.0
    %3737 = vmatpush2.msra.mxu0 0.0
    %3738 = vmatprep.subr.mxu0 0.0
    %3739 = vmatpush2.msra.mxu0 0.0
    %3740 = vmatprep.mubr.f32.mxu0 0.0
    %3741 = vmatmul.mubr.f32.gmra.mxu0 %v39
    %v3742 = vpop.f32.mrf.mxu0
    %v3743 = vadd.f32 0.0, %v3742
    %v3744 = vpop.f32.mrf.mxu0
    %3745 = vmatprep.mubr.f32.mxu0 0.0
    %3746 = vmatmul.mubr.f32.gmra.mxu0 %v42
    %v3747 = vpop.f32.mrf.mxu0
    %v3748 = vadd.f32 0.0, %v3747
    %v3749 = vpop.f32.mrf.mxu0
    %3750 = vdwg.mxu0
    %v3752 = vsel %vm44, %v3164, 0
    %3754 = vmatprep.subr.mxu0 0.0
    %3755 = vmatpush1.msra.mxu0 0.0
    %3756 = vmatprep.subr.mxu0 0.0
    %3757 = vmatpush1.msra.mxu0 0.0
    %3758 = vmatprep.subr.mxu0 0.0
    %3759 = vmatpush1.msra.mxu0 0.0
    %3760 = vmatprep.subr.mxu0 0.0
    %3761 = vmatpush1.msra.mxu0 0.0
    %3762 = vmatprep.subr.mxu0 0.0
    %3763 = vmatpush1.msra.mxu0 0.0
    %3764 = vmatprep.subr.mxu0 0.0
    %3765 = vmatpush1.msra.mxu0 0.0
    %3766 = vmatprep.subr.mxu0 0.0
    %3767 = vmatpush1.msra.mxu0 0.0
    %3768 = vmatprep.subr.mxu0 0.0
    %3769 = vmatpush1.msra.mxu0 0.0
    %3770 = vmatprep.subr.mxu0 0.0
    %3771 = vmatpush1.msra.mxu0 0.0
    %3772 = vmatprep.subr.mxu0 0.0
    %3773 = vmatpush1.msra.mxu0 0.0
    %3774 = vmatprep.subr.mxu0 0.0
    %3775 = vmatpush1.msra.mxu0 0.0
    %3776 = vmatprep.subr.mxu0 0.0
    %3777 = vmatpush1.msra.mxu0 %v3752
    %3778 = vmatprep.subr.mxu0 0.0
    %3779 = vmatpush1.msra.mxu0 %v3163
    %3780 = vmatprep.subr.mxu0 0.0
    %3781 = vmatpush1.msra.mxu0 %v3162
    %3782 = vmatprep.subr.mxu0 0.0
    %3783 = vmatpush1.msra.mxu0 %v3161
    %3784 = vmatprep.subr.mxu0 0.0
    %3785 = vmatpush1.msra.mxu0 %v3160
    %3786 = vmatprep.subr.mxu0 0.0
    %3787 = vmatpush2.msra.mxu0 0.0
    %3788 = vmatprep.subr.mxu0 0.0
    %3789 = vmatpush2.msra.mxu0 0.0
    %3790 = vmatprep.subr.mxu0 0.0
    %3791 = vmatpush2.msra.mxu0 0.0
    %3792 = vmatprep.subr.mxu0 0.0
    %3793 = vmatpush2.msra.mxu0 0.0
    %3794 = vmatprep.subr.mxu0 0.0
    %3795 = vmatpush2.msra.mxu0 0.0
    %3796 = vmatprep.subr.mxu0 0.0
    %3797 = vmatpush2.msra.mxu0 0.0
    %3798 = vmatprep.subr.mxu0 0.0
    %3799 = vmatpush2.msra.mxu0 0.0
    %3800 = vmatprep.subr.mxu0 0.0
    %3801 = vmatpush2.msra.mxu0 0.0
    %3802 = vmatprep.subr.mxu0 0.0
    %3803 = vmatpush2.msra.mxu0 0.0
    %3804 = vmatprep.subr.mxu0 0.0
    %3805 = vmatpush2.msra.mxu0 0.0
    %3806 = vmatprep.subr.mxu0 0.0
    %3807 = vmatpush2.msra.mxu0 0.0
    %3808 = vmatprep.subr.mxu0 0.0
    %3809 = vmatpush2.msra.mxu0 0.0
    %3810 = vmatprep.subr.mxu0 0.0
    %3811 = vmatpush2.msra.mxu0 0.0
    %3812 = vmatprep.subr.mxu0 0.0
    %3813 = vmatpush2.msra.mxu0 0.0
    %3814 = vmatprep.subr.mxu0 0.0
    %3815 = vmatpush2.msra.mxu0 0.0
    %3816 = vmatprep.subr.mxu0 0.0
    %3817 = vmatpush2.msra.mxu0 0.0
    %3818 = vmatprep.mubr.f32.mxu0 0.0
    %3819 = vmatmul.mubr.f32.gmra.mxu0 %v39
    %v3820 = vpop.f32.mrf.mxu0
    %v3821 = vadd.f32 0.0, %v3820
    %v3822 = vpop.f32.mrf.mxu0
    %3823 = vmatprep.mubr.f32.mxu0 0.0
    %3824 = vmatmul.mubr.f32.gmra.mxu0 %v42
    %v3825 = vpop.f32.mrf.mxu0
    %v3826 = vadd.f32 0.0, %v3825
    %v3827 = vpop.f32.mrf.mxu0
    %3828 = vdwg.mxu0
    %v3830 = vsel %vm44, %v3169, 0
    %3832 = vmatprep.subr.mxu0 0.0
    %3833 = vmatpush1.msra.mxu0 0.0
    %3834 = vmatprep.subr.mxu0 0.0
    %3835 = vmatpush1.msra.mxu0 0.0
    %3836 = vmatprep.subr.mxu0 0.0
    %3837 = vmatpush1.msra.mxu0 0.0
    %3838 = vmatprep.subr.mxu0 0.0
    %3839 = vmatpush1.msra.mxu0 0.0
    %3840 = vmatprep.subr.mxu0 0.0
    %3841 = vmatpush1.msra.mxu0 0.0
    %3842 = vmatprep.subr.mxu0 0.0
    %3843 = vmatpush1.msra.mxu0 0.0
    %3844 = vmatprep.subr.mxu0 0.0
    %3845 = vmatpush1.msra.mxu0 0.0
    %3846 = vmatprep.subr.mxu0 0.0
    %3847 = vmatpush1.msra.mxu0 0.0
    %3848 = vmatprep.subr.mxu0 0.0
    %3849 = vmatpush1.msra.mxu0 0.0
    %3850 = vmatprep.subr.mxu0 0.0
    %3851 = vmatpush1.msra.mxu0 0.0
    %3852 = vmatprep.subr.mxu0 0.0
    %3853 = vmatpush1.msra.mxu0 0.0
    %3854 = vmatprep.subr.mxu0 0.0
    %3855 = vmatpush1.msra.mxu0 %v3830
    %3856 = vmatprep.subr.mxu0 0.0
    %3857 = vmatpush1.msra.mxu0 %v3168
    %3858 = vmatprep.subr.mxu0 0.0
    %3859 = vmatpush1.msra.mxu0 %v3167
    %3860 = vmatprep.subr.mxu0 0.0
    %3861 = vmatpush1.msra.mxu0 %v3166
    %3862 = vmatprep.subr.mxu0 0.0
    %3863 = vmatpush1.msra.mxu0 %v3165
    %3864 = vmatprep.subr.mxu0 0.0
    %3865 = vmatpush2.msra.mxu0 0.0
    %3866 = vmatprep.subr.mxu0 0.0
    %3867 = vmatpush2.msra.mxu0 0.0
    %3868 = vmatprep.subr.mxu0 0.0
    %3869 = vmatpush2.msra.mxu0 0.0
    %3870 = vmatprep.subr.mxu0 0.0
    %3871 = vmatpush2.msra.mxu0 0.0
    %3872 = vmatprep.subr.mxu0 0.0
    %3873 = vmatpush2.msra.mxu0 0.0
    %3874 = vmatprep.subr.mxu0 0.0
    %3875 = vmatpush2.msra.mxu0 0.0
    %3876 = vmatprep.subr.mxu0 0.0
    %3877 = vmatpush2.msra.mxu0 0.0
    %3878 = vmatprep.subr.mxu0 0.0
    %3879 = vmatpush2.msra.mxu0 0.0
    %3880 = vmatprep.subr.mxu0 0.0
    %3881 = vmatpush2.msra.mxu0 0.0
    %3882 = vmatprep.subr.mxu0 0.0
    %3883 = vmatpush2.msra.mxu0 0.0
    %3884 = vmatprep.subr.mxu0 0.0
    %3885 = vmatpush2.msra.mxu0 0.0
    %3886 = vmatprep.subr.mxu0 0.0
    %3887 = vmatpush2.msra.mxu0 0.0
    %3888 = vmatprep.subr.mxu0 0.0
    %3889 = vmatpush2.msra.mxu0 0.0
    %3890 = vmatprep.subr.mxu0 0.0
    %3891 = vmatpush2.msra.mxu0 0.0
    %3892 = vmatprep.subr.mxu0 0.0
    %3893 = vmatpush2.msra.mxu0 0.0
    %3894 = vmatprep.subr.mxu0 0.0
    %3895 = vmatpush2.msra.mxu0 0.0
    %3896 = vmatprep.mubr.f32.mxu0 0.0
    %3897 = vmatmul.mubr.f32.gmra.mxu0 %v39
    %v3898 = vpop.f32.mrf.mxu0
    %v3899 = vadd.f32 0.0, %v3898
    %v3900 = vpop.f32.mrf.mxu0
    %3901 = vmatprep.mubr.f32.mxu0 0.0
    %3902 = vmatmul.mubr.f32.gmra.mxu0 %v42
    %v3903 = vpop.f32.mrf.mxu0
    %v3904 = vadd.f32 0.0, %v3903
    %v3905 = vpop.f32.mrf.mxu0
    %3906 = vdwg.mxu0
    %v3908 = vsel %vm44, %v3174, 0
    %3910 = vmatprep.subr.mxu0 0.0
    %3911 = vmatpush1.msra.mxu0 0.0
    %3912 = vmatprep.subr.mxu0 0.0
    %3913 = vmatpush1.msra.mxu0 0.0
    %3914 = vmatprep.subr.mxu0 0.0
    %3915 = vmatpush1.msra.mxu0 0.0
    %3916 = vmatprep.subr.mxu0 0.0
    %3917 = vmatpush1.msra.mxu0 0.0
    %3918 = vmatprep.subr.mxu0 0.0
    %3919 = vmatpush1.msra.mxu0 0.0
    %3920 = vmatprep.subr.mxu0 0.0
    %3921 = vmatpush1.msra.mxu0 0.0
    %3922 = vmatprep.subr.mxu0 0.0
    %3923 = vmatpush1.msra.mxu0 0.0
    %3924 = vmatprep.subr.mxu0 0.0
    %3925 = vmatpush1.msra.mxu0 0.0
    %3926 = vmatprep.subr.mxu0 0.0
    %3927 = vmatpush1.msra.mxu0 0.0
    %3928 = vmatprep.subr.mxu0 0.0
    %3929 = vmatpush1.msra.mxu0 0.0
    %3930 = vmatprep.subr.mxu0 0.0
    %3931 = vmatpush1.msra.mxu0 0.0
    %3932 = vmatprep.subr.mxu0 0.0
    %3933 = vmatpush1.msra.mxu0 %v3908
    %3934 = vmatprep.subr.mxu0 0.0
    %3935 = vmatpush1.msra.mxu0 %v3173
    %3936 = vmatprep.subr.mxu0 0.0
    %3937 = vmatpush1.msra.mxu0 %v3172
    %3938 = vmatprep.subr.mxu0 0.0
    %3939 = vmatpush1.msra.mxu0 %v3171
    %3940 = vmatprep.subr.mxu0 0.0
    %3941 = vmatpush1.msra.mxu0 %v3170
    %3942 = vmatprep.subr.mxu0 0.0
    %3943 = vmatpush2.msra.mxu0 0.0
    %3944 = vmatprep.subr.mxu0 0.0
    %3945 = vmatpush2.msra.mxu0 0.0
    %3946 = vmatprep.subr.mxu0 0.0
    %3947 = vmatpush2.msra.mxu0 0.0
    %3948 = vmatprep.subr.mxu0 0.0
    %3949 = vmatpush2.msra.mxu0 0.0
    %3950 = vmatprep.subr.mxu0 0.0
    %3951 = vmatpush2.msra.mxu0 0.0
    %3952 = vmatprep.subr.mxu0 0.0
    %3953 = vmatpush2.msra.mxu0 0.0
    %3954 = vmatprep.subr.mxu0 0.0
    %3955 = vmatpush2.msra.mxu0 0.0
    %3956 = vmatprep.subr.mxu0 0.0
    %3957 = vmatpush2.msra.mxu0 0.0
    %3958 = vmatprep.subr.mxu0 0.0
    %3959 = vmatpush2.msra.mxu0 0.0
    %3960 = vmatprep.subr.mxu0 0.0
    %3961 = vmatpush2.msra.mxu0 0.0
    %3962 = vmatprep.subr.mxu0 0.0
    %3963 = vmatpush2.msra.mxu0 0.0
    %3964 = vmatprep.subr.mxu0 0.0
    %3965 = vmatpush2.msra.mxu0 0.0
    %3966 = vmatprep.subr.mxu0 0.0
    %3967 = vmatpush2.msra.mxu0 0.0
    %3968 = vmatprep.subr.mxu0 0.0
    %3969 = vmatpush2.msra.mxu0 0.0
    %3970 = vmatprep.subr.mxu0 0.0
    %3971 = vmatpush2.msra.mxu0 0.0
    %3972 = vmatprep.subr.mxu0 0.0
    %3973 = vmatpush2.msra.mxu0 0.0
    %3974 = vmatprep.mubr.f32.mxu0 0.0
    %3975 = vmatmul.mubr.f32.gmra.mxu0 %v39
    %v3976 = vpop.f32.mrf.mxu0
    %v3977 = vadd.f32 0.0, %v3976
    %v3978 = vpop.f32.mrf.mxu0
    %3979 = vmatprep.mubr.f32.mxu0 0.0
    %3980 = vmatmul.mubr.f32.gmra.mxu0 %v42
    %v3981 = vpop.f32.mrf.mxu0
    %v3982 = vadd.f32 0.0, %v3981
    %v3983 = vpop.f32.mrf.mxu0
    %3984 = vdwg.mxu0
    %v3986 = vsel %vm44, %v3179, 0
    %3988 = vmatprep.subr.mxu0 0.0
    %3989 = vmatpush1.msra.mxu0 0.0
    %3990 = vmatprep.subr.mxu0 0.0
    %3991 = vmatpush1.msra.mxu0 0.0
    %3992 = vmatprep.subr.mxu0 0.0
    %3993 = vmatpush1.msra.mxu0 0.0
    %3994 = vmatprep.subr.mxu0 0.0
    %3995 = vmatpush1.msra.mxu0 0.0
    %3996 = vmatprep.subr.mxu0 0.0
    %3997 = vmatpush1.msra.mxu0 0.0
    %3998 = vmatprep.subr.mxu0 0.0
    %3999 = vmatpush1.msra.mxu0 0.0
    %4000 = vmatprep.subr.mxu0 0.0
    %4001 = vmatpush1.msra.mxu0 0.0
    %4002 = vmatprep.subr.mxu0 0.0
    %4003 = vmatpush1.msra.mxu0 0.0
    %4004 = vmatprep.subr.mxu0 0.0
    %4005 = vmatpush1.msra.mxu0 0.0
    %4006 = vmatprep.subr.mxu0 0.0
    %4007 = vmatpush1.msra.mxu0 0.0
    %4008 = vmatprep.subr.mxu0 0.0
    %4009 = vmatpush1.msra.mxu0 0.0
    %4010 = vmatprep.subr.mxu0 0.0
    %4011 = vmatpush1.msra.mxu0 %v3986
    %4012 = vmatprep.subr.mxu0 0.0
    %4013 = vmatpush1.msra.mxu0 %v3178
    %4014 = vmatprep.subr.mxu0 0.0
    %4015 = vmatpush1.msra.mxu0 %v3177
    %4016 = vmatprep.subr.mxu0 0.0
    %4017 = vmatpush1.msra.mxu0 %v3176
    %4018 = vmatprep.subr.mxu0 0.0
    %4019 = vmatpush1.msra.mxu0 %v3175
    %4020 = vmatprep.subr.mxu0 0.0
    %4021 = vmatpush2.msra.mxu0 0.0
    %4022 = vmatprep.subr.mxu0 0.0
    %4023 = vmatpush2.msra.mxu0 0.0
    %4024 = vmatprep.subr.mxu0 0.0
    %4025 = vmatpush2.msra.mxu0 0.0
    %4026 = vmatprep.subr.mxu0 0.0
    %4027 = vmatpush2.msra.mxu0 0.0
    %4028 = vmatprep.subr.mxu0 0.0
    %4029 = vmatpush2.msra.mxu0 0.0
    %4030 = vmatprep.subr.mxu0 0.0
    %4031 = vmatpush2.msra.mxu0 0.0
    %4032 = vmatprep.subr.mxu0 0.0
    %4033 = vmatpush2.msra.mxu0 0.0
    %4034 = vmatprep.subr.mxu0 0.0
    %4035 = vmatpush2.msra.mxu0 0.0
    %4036 = vmatprep.subr.mxu0 0.0
    %4037 = vmatpush2.msra.mxu0 0.0
    %4038 = vmatprep.subr.mxu0 0.0
    %4039 = vmatpush2.msra.mxu0 0.0
    %4040 = vmatprep.subr.mxu0 0.0
    %4041 = vmatpush2.msra.mxu0 0.0
    %4042 = vmatprep.subr.mxu0 0.0
    %4043 = vmatpush2.msra.mxu0 0.0
    %4044 = vmatprep.subr.mxu0 0.0
    %4045 = vmatpush2.msra.mxu0 0.0
    %4046 = vmatprep.subr.mxu0 0.0
    %4047 = vmatpush2.msra.mxu0 0.0
    %4048 = vmatprep.subr.mxu0 0.0
    %4049 = vmatpush2.msra.mxu0 0.0
    %4050 = vmatprep.subr.mxu0 0.0
    %4051 = vmatpush2.msra.mxu0 0.0
    %4052 = vmatprep.mubr.f32.mxu0 0.0
    %4053 = vmatmul.mubr.f32.gmra.mxu0 %v39
    %v4054 = vpop.f32.mrf.mxu0
    %v4055 = vadd.f32 0.0, %v4054
    %v4056 = vpop.f32.mrf.mxu0
    %4057 = vmatprep.mubr.f32.mxu0 0.0
    %4058 = vmatmul.mubr.f32.gmra.mxu0 %v42
    %v4059 = vpop.f32.mrf.mxu0
    %v4060 = vadd.f32 0.0, %v4059
    %v4061 = vpop.f32.mrf.mxu0
    %4062 = vdwg.mxu0
    %v4064 = vsel %vm44, %v3184, 0
    %4066 = vmatprep.subr.mxu0 0.0
    %4067 = vmatpush1.msra.mxu0 0.0
    %4068 = vmatprep.subr.mxu0 0.0
    %4069 = vmatpush1.msra.mxu0 0.0
    %4070 = vmatprep.subr.mxu0 0.0
    %4071 = vmatpush1.msra.mxu0 0.0
    %4072 = vmatprep.subr.mxu0 0.0
    %4073 = vmatpush1.msra.mxu0 0.0
    %4074 = vmatprep.subr.mxu0 0.0
    %4075 = vmatpush1.msra.mxu0 0.0
    %4076 = vmatprep.subr.mxu0 0.0
    %4077 = vmatpush1.msra.mxu0 0.0
    %4078 = vmatprep.subr.mxu0 0.0
    %4079 = vmatpush1.msra.mxu0 0.0
    %4080 = vmatprep.subr.mxu0 0.0
    %4081 = vmatpush1.msra.mxu0 0.0
    %4082 = vmatprep.subr.mxu0 0.0
    %4083 = vmatpush1.msra.mxu0 0.0
    %4084 = vmatprep.subr.mxu0 0.0
    %4085 = vmatpush1.msra.mxu0 0.0
    %4086 = vmatprep.subr.mxu0 0.0
    %4087 = vmatpush1.msra.mxu0 0.0
    %4088 = vmatprep.subr.mxu0 0.0
    %4089 = vmatpush1.msra.mxu0 %v4064
    %4090 = vmatprep.subr.mxu0 0.0
    %4091 = vmatpush1.msra.mxu0 %v3183
    %4092 = vmatprep.subr.mxu0 0.0
    %4093 = vmatpush1.msra.mxu0 %v3182
    %4094 = vmatprep.subr.mxu0 0.0
    %4095 = vmatpush1.msra.mxu0 %v3181
    %4096 = vmatprep.subr.mxu0 0.0
    %4097 = vmatpush1.msra.mxu0 %v3180
    %4098 = vmatprep.subr.mxu0 0.0
    %4099 = vmatpush2.msra.mxu0 0.0
    %4100 = vmatprep.subr.mxu0 0.0
    %4101 = vmatpush2.msra.mxu0 0.0
    %4102 = vmatprep.subr.mxu0 0.0
    %4103 = vmatpush2.msra.mxu0 0.0
    %4104 = vmatprep.subr.mxu0 0.0
    %4105 = vmatpush2.msra.mxu0 0.0
    %4106 = vmatprep.subr.mxu0 0.0
    %4107 = vmatpush2.msra.mxu0 0.0
    %4108 = vmatprep.subr.mxu0 0.0
    %4109 = vmatpush2.msra.mxu0 0.0
    %4110 = vmatprep.subr.mxu0 0.0
    %4111 = vmatpush2.msra.mxu0 0.0
    %4112 = vmatprep.subr.mxu0 0.0
    %4113 = vmatpush2.msra.mxu0 0.0
    %4114 = vmatprep.subr.mxu0 0.0
    %4115 = vmatpush2.msra.mxu0 0.0
    %4116 = vmatprep.subr.mxu0 0.0
    %4117 = vmatpush2.msra.mxu0 0.0
    %4118 = vmatprep.subr.mxu0 0.0
    %4119 = vmatpush2.msra.mxu0 0.0
    %4120 = vmatprep.subr.mxu0 0.0
    %4121 = vmatpush2.msra.mxu0 0.0
    %4122 = vmatprep.subr.mxu0 0.0
    %4123 = vmatpush2.msra.mxu0 0.0
    %4124 = vmatprep.subr.mxu0 0.0
    %4125 = vmatpush2.msra.mxu0 0.0
    %4126 = vmatprep.subr.mxu0 0.0
    %4127 = vmatpush2.msra.mxu0 0.0
    %4128 = vmatprep.subr.mxu0 0.0
    %4129 = vmatpush2.msra.mxu0 0.0
    %4130 = vmatprep.mubr.f32.mxu0 0.0
    %4131 = vmatmul.mubr.f32.gmra.mxu0 %v39
    %v4132 = vpop.f32.mrf.mxu0
    %v4133 = vadd.f32 0.0, %v4132
    %v4134 = vpop.f32.mrf.mxu0
    %4135 = vmatprep.mubr.f32.mxu0 0.0
    %4136 = vmatmul.mubr.f32.gmra.mxu0 %v42
    %v4137 = vpop.f32.mrf.mxu0
    %v4138 = vadd.f32 0.0, %v4137
    %v4139 = vpop.f32.mrf.mxu0
    %4140 = vdwg.mxu0
    %v4142 = vsel %vm44, %v3189, 0
    %4144 = vmatprep.subr.mxu0 0.0
    %4145 = vmatpush1.msra.mxu0 0.0
    %4146 = vmatprep.subr.mxu0 0.0
    %4147 = vmatpush1.msra.mxu0 0.0
    %4148 = vmatprep.subr.mxu0 0.0
    %4149 = vmatpush1.msra.mxu0 0.0
    %4150 = vmatprep.subr.mxu0 0.0
    %4151 = vmatpush1.msra.mxu0 0.0
    %4152 = vmatprep.subr.mxu0 0.0
    %4153 = vmatpush1.msra.mxu0 0.0
    %4154 = vmatprep.subr.mxu0 0.0
    %4155 = vmatpush1.msra.mxu0 0.0
    %4156 = vmatprep.subr.mxu0 0.0
    %4157 = vmatpush1.msra.mxu0 0.0
    %4158 = vmatprep.subr.mxu0 0.0
    %4159 = vmatpush1.msra.mxu0 0.0
    %4160 = vmatprep.subr.mxu0 0.0
    %4161 = vmatpush1.msra.mxu0 0.0
    %4162 = vmatprep.subr.mxu0 0.0
    %4163 = vmatpush1.msra.mxu0 0.0
    %4164 = vmatprep.subr.mxu0 0.0
    %4165 = vmatpush1.msra.mxu0 0.0
    %4166 = vmatprep.subr.mxu0 0.0
    %4167 = vmatpush1.msra.mxu0 %v4142
    %4168 = vmatprep.subr.mxu0 0.0
    %4169 = vmatpush1.msra.mxu0 %v3188
    %4170 = vmatprep.subr.mxu0 0.0
    %4171 = vmatpush1.msra.mxu0 %v3187
    %4172 = vmatprep.subr.mxu0 0.0
    %4173 = vmatpush1.msra.mxu0 %v3186
    %4174 = vmatprep.subr.mxu0 0.0
    %4175 = vmatpush1.msra.mxu0 %v3185
    %4176 = vmatprep.subr.mxu0 0.0
    %4177 = vmatpush2.msra.mxu0 0.0
    %4178 = vmatprep.subr.mxu0 0.0
    %4179 = vmatpush2.msra.mxu0 0.0
    %4180 = vmatprep.subr.mxu0 0.0
    %4181 = vmatpush2.msra.mxu0 0.0
    %4182 = vmatprep.subr.mxu0 0.0
    %4183 = vmatpush2.msra.mxu0 0.0
    %4184 = vmatprep.subr.mxu0 0.0
    %4185 = vmatpush2.msra.mxu0 0.0
    %4186 = vmatprep.subr.mxu0 0.0
    %4187 = vmatpush2.msra.mxu0 0.0
    %4188 = vmatprep.subr.mxu0 0.0
    %4189 = vmatpush2.msra.mxu0 0.0
    %4190 = vmatprep.subr.mxu0 0.0
    %4191 = vmatpush2.msra.mxu0 0.0
    %4192 = vmatprep.subr.mxu0 0.0
    %4193 = vmatpush2.msra.mxu0 0.0
    %4194 = vmatprep.subr.mxu0 0.0
    %4195 = vmatpush2.msra.mxu0 0.0
    %4196 = vmatprep.subr.mxu0 0.0
    %4197 = vmatpush2.msra.mxu0 0.0
    %4198 = vmatprep.subr.mxu0 0.0
    %4199 = vmatpush2.msra.mxu0 0.0
    %4200 = vmatprep.subr.mxu0 0.0
    %4201 = vmatpush2.msra.mxu0 0.0
    %4202 = vmatprep.subr.mxu0 0.0
    %4203 = vmatpush2.msra.mxu0 0.0
    %4204 = vmatprep.subr.mxu0 0.0
    %4205 = vmatpush2.msra.mxu0 0.0
    %4206 = vmatprep.subr.mxu0 0.0
    %4207 = vmatpush2.msra.mxu0 0.0
    %4208 = vmatprep.mubr.f32.mxu0 0.0
    %4209 = vmatmul.mubr.f32.gmra.mxu0 %v39
    %v4210 = vpop.f32.mrf.mxu0
    %v4211 = vadd.f32 0.0, %v4210
    %v4212 = vpop.f32.mrf.mxu0
    %4213 = vmatprep.mubr.f32.mxu0 0.0
    %4214 = vmatmul.mubr.f32.gmra.mxu0 %v42
    %v4215 = vpop.f32.mrf.mxu0
    %v4216 = vadd.f32 0.0, %v4215
    %v4217 = vpop.f32.mrf.mxu0
    %4218 = vdwg.mxu0
    %v4220 = vsel %vm44, %v3194, 0
    %4222 = vmatprep.subr.mxu0 0.0
    %4223 = vmatpush1.msra.mxu0 0.0
    %4224 = vmatprep.subr.mxu0 0.0
    %4225 = vmatpush1.msra.mxu0 0.0
    %4226 = vmatprep.subr.mxu0 0.0
    %4227 = vmatpush1.msra.mxu0 0.0
    %4228 = vmatprep.subr.mxu0 0.0
    %4229 = vmatpush1.msra.mxu0 0.0
    %4230 = vmatprep.subr.mxu0 0.0
    %4231 = vmatpush1.msra.mxu0 0.0
    %4232 = vmatprep.subr.mxu0 0.0
    %4233 = vmatpush1.msra.mxu0 0.0
    %4234 = vmatprep.subr.mxu0 0.0
    %4235 = vmatpush1.msra.mxu0 0.0
    %4236 = vmatprep.subr.mxu0 0.0
    %4237 = vmatpush1.msra.mxu0 0.0
    %4238 = vmatprep.subr.mxu0 0.0
    %4239 = vmatpush1.msra.mxu0 0.0
    %4240 = vmatprep.subr.mxu0 0.0
    %4241 = vmatpush1.msra.mxu0 0.0
    %4242 = vmatprep.subr.mxu0 0.0
    %4243 = vmatpush1.msra.mxu0 0.0
    %4244 = vmatprep.subr.mxu0 0.0
    %4245 = vmatpush1.msra.mxu0 %v4220
    %4246 = vmatprep.subr.mxu0 0.0
    %4247 = vmatpush1.msra.mxu0 %v3193
    %4248 = vmatprep.subr.mxu0 0.0
    %4249 = vmatpush1.msra.mxu0 %v3192
    %4250 = vmatprep.subr.mxu0 0.0
    %4251 = vmatpush1.msra.mxu0 %v3191
    %4252 = vmatprep.subr.mxu0 0.0
    %4253 = vmatpush1.msra.mxu0 %v3190
    %4254 = vmatprep.subr.mxu0 0.0
    %4255 = vmatpush2.msra.mxu0 0.0
    %4256 = vmatprep.subr.mxu0 0.0
    %4257 = vmatpush2.msra.mxu0 0.0
    %4258 = vmatprep.subr.mxu0 0.0
    %4259 = vmatpush2.msra.mxu0 0.0
    %4260 = vmatprep.subr.mxu0 0.0
    %4261 = vmatpush2.msra.mxu0 0.0
    %4262 = vmatprep.subr.mxu0 0.0
    %4263 = vmatpush2.msra.mxu0 0.0
    %4264 = vmatprep.subr.mxu0 0.0
    %4265 = vmatpush2.msra.mxu0 0.0
    %4266 = vmatprep.subr.mxu0 0.0
    %4267 = vmatpush2.msra.mxu0 0.0
    %4268 = vmatprep.subr.mxu0 0.0
    %4269 = vmatpush2.msra.mxu0 0.0
    %4270 = vmatprep.subr.mxu0 0.0
    %4271 = vmatpush2.msra.mxu0 0.0
    %4272 = vmatprep.subr.mxu0 0.0
    %4273 = vmatpush2.msra.mxu0 0.0
    %4274 = vmatprep.subr.mxu0 0.0
    %4275 = vmatpush2.msra.mxu0 0.0
    %4276 = vmatprep.subr.mxu0 0.0
    %4277 = vmatpush2.msra.mxu0 0.0
    %4278 = vmatprep.subr.mxu0 0.0
    %4279 = vmatpush2.msra.mxu0 0.0
    %4280 = vmatprep.subr.mxu0 0.0
    %4281 = vmatpush2.msra.mxu0 0.0
    %4282 = vmatprep.subr.mxu0 0.0
    %4283 = vmatpush2.msra.mxu0 0.0
    %4284 = vmatprep.subr.mxu0 0.0
    %4285 = vmatpush2.msra.mxu0 0.0
    %4286 = vmatprep.mubr.f32.mxu0 0.0
    %4287 = vmatmul.mubr.f32.gmra.mxu0 %v39
    %v4288 = vpop.f32.mrf.mxu0
    %v4289 = vadd.f32 0.0, %v4288
    %v4290 = vpop.f32.mrf.mxu0
    %4291 = vmatprep.mubr.f32.mxu0 0.0
    %4292 = vmatmul.mubr.f32.gmra.mxu0 %v42
    %v4293 = vpop.f32.mrf.mxu0
    %v4294 = vadd.f32 0.0, %v4293
    %v4295 = vpop.f32.mrf.mxu0
    %4296 = vdwg.mxu0
    %v4298 = vsel %vm44, %v3199, 0
    %4300 = vmatprep.subr.mxu0 0.0
    %4301 = vmatpush1.msra.mxu0 0.0
    %4302 = vmatprep.subr.mxu0 0.0
    %4303 = vmatpush1.msra.mxu0 0.0
    %4304 = vmatprep.subr.mxu0 0.0
    %4305 = vmatpush1.msra.mxu0 0.0
    %4306 = vmatprep.subr.mxu0 0.0
    %4307 = vmatpush1.msra.mxu0 0.0
    %4308 = vmatprep.subr.mxu0 0.0
    %4309 = vmatpush1.msra.mxu0 0.0
    %4310 = vmatprep.subr.mxu0 0.0
    %4311 = vmatpush1.msra.mxu0 0.0
    %4312 = vmatprep.subr.mxu0 0.0
    %4313 = vmatpush1.msra.mxu0 0.0
    %4314 = vmatprep.subr.mxu0 0.0
    %4315 = vmatpush1.msra.mxu0 0.0
    %4316 = vmatprep.subr.mxu0 0.0
    %4317 = vmatpush1.msra.mxu0 0.0
    %4318 = vmatprep.subr.mxu0 0.0
    %4319 = vmatpush1.msra.mxu0 0.0
    %4320 = vmatprep.subr.mxu0 0.0
    %4321 = vmatpush1.msra.mxu0 0.0
    %4322 = vmatprep.subr.mxu0 0.0
    %4323 = vmatpush1.msra.mxu0 %v4298
    %4324 = vmatprep.subr.mxu0 0.0
    %4325 = vmatpush1.msra.mxu0 %v3198
    %4326 = vmatprep.subr.mxu0 0.0
    %4327 = vmatpush1.msra.mxu0 %v3197
    %4328 = vmatprep.subr.mxu0 0.0
    %4329 = vmatpush1.msra.mxu0 %v3196
    %4330 = vmatprep.subr.mxu0 0.0
    %4331 = vmatpush1.msra.mxu0 %v3195
    %4332 = vmatprep.subr.mxu0 0.0
    %4333 = vmatpush2.msra.mxu0 0.0
    %4334 = vmatprep.subr.mxu0 0.0
    %4335 = vmatpush2.msra.mxu0 0.0
    %4336 = vmatprep.subr.mxu0 0.0
    %4337 = vmatpush2.msra.mxu0 0.0
    %4338 = vmatprep.subr.mxu0 0.0
    %4339 = vmatpush2.msra.mxu0 0.0
    %4340 = vmatprep.subr.mxu0 0.0
    %4341 = vmatpush2.msra.mxu0 0.0
    %4342 = vmatprep.subr.mxu0 0.0
    %4343 = vmatpush2.msra.mxu0 0.0
    %4344 = vmatprep.subr.mxu0 0.0
    %4345 = vmatpush2.msra.mxu0 0.0
    %4346 = vmatprep.subr.mxu0 0.0
    %4347 = vmatpush2.msra.mxu0 0.0
    %4348 = vmatprep.subr.mxu0 0.0
    %4349 = vmatpush2.msra.mxu0 0.0
    %4350 = vmatprep.subr.mxu0 0.0
    %4351 = vmatpush2.msra.mxu0 0.0
    %4352 = vmatprep.subr.mxu0 0.0
    %4353 = vmatpush2.msra.mxu0 0.0
    %4354 = vmatprep.subr.mxu0 0.0
    %4355 = vmatpush2.msra.mxu0 0.0
    %4356 = vmatprep.subr.mxu0 0.0
    %4357 = vmatpush2.msra.mxu0 0.0
    %4358 = vmatprep.subr.mxu0 0.0
    %4359 = vmatpush2.msra.mxu0 0.0
    %4360 = vmatprep.subr.mxu0 0.0
    %4361 = vmatpush2.msra.mxu0 0.0
    %4362 = vmatprep.subr.mxu0 0.0
    %4363 = vmatpush2.msra.mxu0 0.0
    %4364 = vmatprep.mubr.f32.mxu0 0.0
    %4365 = vmatmul.mubr.f32.gmra.mxu0 %v39
    %v4366 = vpop.f32.mrf.mxu0
    %v4367 = vadd.f32 0.0, %v4366
    %v4368 = vpop.f32.mrf.mxu0
    %4369 = vmatprep.mubr.f32.mxu0 0.0
    %4370 = vmatmul.mubr.f32.gmra.mxu0 %v42
    %v4371 = vpop.f32.mrf.mxu0
    %v4372 = vadd.f32 0.0, %v4371
    %v4373 = vpop.f32.mrf.mxu0
    %4374 = vdwg.mxu0
    %v4376 = vsel %vm44, %v3204, 0
    %4378 = vmatprep.subr.mxu0 0.0
    %4379 = vmatpush1.msra.mxu0 0.0
    %4380 = vmatprep.subr.mxu0 0.0
    %4381 = vmatpush1.msra.mxu0 0.0
    %4382 = vmatprep.subr.mxu0 0.0
    %4383 = vmatpush1.msra.mxu0 0.0
    %4384 = vmatprep.subr.mxu0 0.0
    %4385 = vmatpush1.msra.mxu0 0.0
    %4386 = vmatprep.subr.mxu0 0.0
    %4387 = vmatpush1.msra.mxu0 0.0
    %4388 = vmatprep.subr.mxu0 0.0
    %4389 = vmatpush1.msra.mxu0 0.0
    %4390 = vmatprep.subr.mxu0 0.0
    %4391 = vmatpush1.msra.mxu0 0.0
    %4392 = vmatprep.subr.mxu0 0.0
    %4393 = vmatpush1.msra.mxu0 0.0
    %4394 = vmatprep.subr.mxu0 0.0
    %4395 = vmatpush1.msra.mxu0 0.0
    %4396 = vmatprep.subr.mxu0 0.0
    %4397 = vmatpush1.msra.mxu0 0.0
    %4398 = vmatprep.subr.mxu0 0.0
    %4399 = vmatpush1.msra.mxu0 0.0
    %4400 = vmatprep.subr.mxu0 0.0
    %4401 = vmatpush1.msra.mxu0 %v4376
    %4402 = vmatprep.subr.mxu0 0.0
    %4403 = vmatpush1.msra.mxu0 %v3203
    %4404 = vmatprep.subr.mxu0 0.0
    %4405 = vmatpush1.msra.mxu0 %v3202
    %4406 = vmatprep.subr.mxu0 0.0
    %4407 = vmatpush1.msra.mxu0 %v3201
    %4408 = vmatprep.subr.mxu0 0.0
    %4409 = vmatpush1.msra.mxu0 %v3200
    %4410 = vmatprep.subr.mxu0 0.0
    %4411 = vmatpush2.msra.mxu0 0.0
    %4412 = vmatprep.subr.mxu0 0.0
    %4413 = vmatpush2.msra.mxu0 0.0
    %4414 = vmatprep.subr.mxu0 0.0
    %4415 = vmatpush2.msra.mxu0 0.0
    %4416 = vmatprep.subr.mxu0 0.0
    %4417 = vmatpush2.msra.mxu0 0.0
    %4418 = vmatprep.subr.mxu0 0.0
    %4419 = vmatpush2.msra.mxu0 0.0
    %4420 = vmatprep.subr.mxu0 0.0
    %4421 = vmatpush2.msra.mxu0 0.0
    %4422 = vmatprep.subr.mxu0 0.0
    %4423 = vmatpush2.msra.mxu0 0.0
    %4424 = vmatprep.subr.mxu0 0.0
    %4425 = vmatpush2.msra.mxu0 0.0
    %4426 = vmatprep.subr.mxu0 0.0
    %4427 = vmatpush2.msra.mxu0 0.0
    %4428 = vmatprep.subr.mxu0 0.0
    %4429 = vmatpush2.msra.mxu0 0.0
    %4430 = vmatprep.subr.mxu0 0.0
    %4431 = vmatpush2.msra.mxu0 0.0
    %4432 = vmatprep.subr.mxu0 0.0
    %4433 = vmatpush2.msra.mxu0 0.0
    %4434 = vmatprep.subr.mxu0 0.0
    %4435 = vmatpush2.msra.mxu0 0.0
    %4436 = vmatprep.subr.mxu0 0.0
    %4437 = vmatpush2.msra.mxu0 0.0
    %4438 = vmatprep.subr.mxu0 0.0
    %4439 = vmatpush2.msra.mxu0 0.0
    %4440 = vmatprep.subr.mxu0 0.0
    %4441 = vmatpush2.msra.mxu0 0.0
    %4442 = vmatprep.mubr.f32.mxu0 0.0
    %4443 = vmatmul.mubr.f32.gmra.mxu0 %v39
    %v4444 = vpop.f32.mrf.mxu0
    %v4445 = vadd.f32 0.0, %v4444
    %v4446 = vpop.f32.mrf.mxu0
    %4447 = vmatprep.mubr.f32.mxu0 0.0
    %4448 = vmatmul.mubr.f32.gmra.mxu0 %v42
    %v4449 = vpop.f32.mrf.mxu0
    %v4450 = vadd.f32 0.0, %v4449
    %v4451 = vpop.f32.mrf.mxu0
    %4452 = vdwg.mxu0
    %v4454 = vsel %vm2772, %v3093, 0
    %v4457 = vsel %vm2772, %v3094, 0
    %4459 = vmatprep.subr.mxu0 0.0
    %4460 = vmatpush1.msra.mxu0 0.0
    %4461 = vmatprep.subr.mxu0 0.0
    %4462 = vmatpush1.msra.mxu0 0.0
    %4463 = vmatprep.subr.mxu0 0.0
    %4464 = vmatpush1.msra.mxu0 0.0
    %4465 = vmatprep.subr.mxu0 0.0
    %4466 = vmatpush1.msra.mxu0 0.0
    %4467 = vmatprep.subr.mxu0 0.0
    %4468 = vmatpush1.msra.mxu0 0.0
    %4469 = vmatprep.subr.mxu0 0.0
    %4470 = vmatpush1.msra.mxu0 0.0
    %4471 = vmatprep.subr.mxu0 0.0
    %4472 = vmatpush1.msra.mxu0 0.0
    %4473 = vmatprep.subr.mxu0 0.0
    %4474 = vmatpush1.msra.mxu0 0.0
    %4475 = vmatprep.subr.mxu0 0.0
    %4476 = vmatpush1.msra.mxu0 0.0
    %4477 = vmatprep.subr.mxu0 0.0
    %4478 = vmatpush1.msra.mxu0 0.0
    %4479 = vmatprep.subr.mxu0 0.0
    %4480 = vmatpush1.msra.mxu0 0.0
    %4481 = vmatprep.subr.mxu0 0.0
    %4482 = vmatpush1.msra.mxu0 0.0
    %4483 = vmatprep.subr.mxu0 0.0
    %4484 = vmatpush1.msra.mxu0 0.0
    %4485 = vmatprep.subr.mxu0 0.0
    %4486 = vmatpush1.msra.mxu0 0.0
    %4487 = vmatprep.subr.mxu0 0.0
    %4488 = vmatpush1.msra.mxu0 %v3280
    %4489 = vmatprep.subr.mxu0 0.0
    %4490 = vmatpush1.msra.mxu0 %v3275
    %4491 = vmatprep.subr.mxu0 0.0
    %4492 = vmatpush2.msra.mxu0 0.0
    %4493 = vmatprep.subr.mxu0 0.0
    %4494 = vmatpush2.msra.mxu0 0.0
    %4495 = vmatprep.subr.mxu0 0.0
    %4496 = vmatpush2.msra.mxu0 0.0
    %4497 = vmatprep.subr.mxu0 0.0
    %4498 = vmatpush2.msra.mxu0 0.0
    %4499 = vmatprep.subr.mxu0 0.0
    %4500 = vmatpush2.msra.mxu0 0.0
    %4501 = vmatprep.subr.mxu0 0.0
    %4502 = vmatpush2.msra.mxu0 0.0
    %4503 = vmatprep.subr.mxu0 0.0
    %4504 = vmatpush2.msra.mxu0 0.0
    %4505 = vmatprep.subr.mxu0 0.0
    %4506 = vmatpush2.msra.mxu0 0.0
    %4507 = vmatprep.subr.mxu0 0.0
    %4508 = vmatpush2.msra.mxu0 0.0
    %4509 = vmatprep.subr.mxu0 0.0
    %4510 = vmatpush2.msra.mxu0 0.0
    %4511 = vmatprep.subr.mxu0 0.0
    %4512 = vmatpush2.msra.mxu0 0.0
    %4513 = vmatprep.subr.mxu0 0.0
    %4514 = vmatpush2.msra.mxu0 0.0
    %4515 = vmatprep.subr.mxu0 0.0
    %4516 = vmatpush2.msra.mxu0 0.0
    %4517 = vmatprep.subr.mxu0 0.0
    %4518 = vmatpush2.msra.mxu0 0.0
    %4519 = vmatprep.subr.mxu0 0.0
    %4520 = vmatpush2.msra.mxu0 0.0
    %4521 = vmatprep.subr.mxu0 0.0
    %4522 = vmatpush2.msra.mxu0 0.0
    %4523 = vmatprep.mubr.f32.mxu0 0.0
    %4524 = vmatmul.mubr.f32.gmra.mxu0 %v4454
    %v4525 = vpop.f32.mrf.mxu0
    %v4526 = vadd.f32 0.0, %v4525
    %v4527 = vpop.f32.mrf.mxu0
    %4528 = vmatprep.mubr.f32.mxu0 0.0
    %4529 = vmatmul.mubr.f32.gmra.mxu0 %v4457
    %v4530 = vpop.f32.mrf.mxu0
    %v4531 = vadd.f32 0.0, %v4530
    %v4532 = vpop.f32.mrf.mxu0
    %4533 = vdwg.mxu0
    %v4535 = vsel %vm2772, %v3095, 0
    %v4538 = vsel %vm2772, %v3096, 0
    %4540 = vmatprep.subr.mxu0 0.0
    %4541 = vmatpush1.msra.mxu0 0.0
    %4542 = vmatprep.subr.mxu0 0.0
    %4543 = vmatpush1.msra.mxu0 0.0
    %4544 = vmatprep.subr.mxu0 0.0
    %4545 = vmatpush1.msra.mxu0 0.0
    %4546 = vmatprep.subr.mxu0 0.0
    %4547 = vmatpush1.msra.mxu0 0.0
    %4548 = vmatprep.subr.mxu0 0.0
    %4549 = vmatpush1.msra.mxu0 0.0
    %4550 = vmatprep.subr.mxu0 0.0
    %4551 = vmatpush1.msra.mxu0 0.0
    %4552 = vmatprep.subr.mxu0 0.0
    %4553 = vmatpush1.msra.mxu0 0.0
    %4554 = vmatprep.subr.mxu0 0.0
    %4555 = vmatpush1.msra.mxu0 0.0
    %4556 = vmatprep.subr.mxu0 0.0
    %4557 = vmatpush1.msra.mxu0 0.0
    %4558 = vmatprep.subr.mxu0 0.0
    %4559 = vmatpush1.msra.mxu0 0.0
    %4560 = vmatprep.subr.mxu0 0.0
    %4561 = vmatpush1.msra.mxu0 0.0
    %4562 = vmatprep.subr.mxu0 0.0
    %4563 = vmatpush1.msra.mxu0 0.0
    %4564 = vmatprep.subr.mxu0 0.0
    %4565 = vmatpush1.msra.mxu0 0.0
    %4566 = vmatprep.subr.mxu0 0.0
    %4567 = vmatpush1.msra.mxu0 0.0
    %4568 = vmatprep.subr.mxu0 0.0
    %4569 = vmatpush1.msra.mxu0 %v3358
    %4570 = vmatprep.subr.mxu0 0.0
    %4571 = vmatpush1.msra.mxu0 %v3353
    %4572 = vmatprep.subr.mxu0 0.0
    %4573 = vmatpush2.msra.mxu0 0.0
    %4574 = vmatprep.subr.mxu0 0.0
    %4575 = vmatpush2.msra.mxu0 0.0
    %4576 = vmatprep.subr.mxu0 0.0
    %4577 = vmatpush2.msra.mxu0 0.0
    %4578 = vmatprep.subr.mxu0 0.0
    %4579 = vmatpush2.msra.mxu0 0.0
    %4580 = vmatprep.subr.mxu0 0.0
    %4581 = vmatpush2.msra.mxu0 0.0
    %4582 = vmatprep.subr.mxu0 0.0
    %4583 = vmatpush2.msra.mxu0 0.0
    %4584 = vmatprep.subr.mxu0 0.0
    %4585 = vmatpush2.msra.mxu0 0.0
    %4586 = vmatprep.subr.mxu0 0.0
    %4587 = vmatpush2.msra.mxu0 0.0
    %4588 = vmatprep.subr.mxu0 0.0
    %4589 = vmatpush2.msra.mxu0 0.0
    %4590 = vmatprep.subr.mxu0 0.0
    %4591 = vmatpush2.msra.mxu0 0.0
    %4592 = vmatprep.subr.mxu0 0.0
    %4593 = vmatpush2.msra.mxu0 0.0
    %4594 = vmatprep.subr.mxu0 0.0
    %4595 = vmatpush2.msra.mxu0 0.0
    %4596 = vmatprep.subr.mxu0 0.0
    %4597 = vmatpush2.msra.mxu0 0.0
    %4598 = vmatprep.subr.mxu0 0.0
    %4599 = vmatpush2.msra.mxu0 0.0
    %4600 = vmatprep.subr.mxu0 0.0
    %4601 = vmatpush2.msra.mxu0 0.0
    %4602 = vmatprep.subr.mxu0 0.0
    %4603 = vmatpush2.msra.mxu0 0.0
    %4604 = vmatprep.mubr.f32.mxu0 0.0
    %4605 = vmatmul.mubr.f32.gmra.mxu0 %v4535
    %v4606 = vpop.f32.mrf.mxu0
    %v4607 = vadd.f32 0.0, %v4606
    %v4608 = vpop.f32.mrf.mxu0
    %4609 = vmatprep.mubr.f32.mxu0 0.0
    %4610 = vmatmul.mubr.f32.gmra.mxu0 %v4538
    %v4611 = vpop.f32.mrf.mxu0
    %v4612 = vadd.f32 0.0, %v4611
    %v4613 = vpop.f32.mrf.mxu0
    %4614 = vdwg.mxu0
    %v4616 = vsel %vm2772, %v3097, 0
    %v4619 = vsel %vm2772, %v3098, 0
    %4621 = vmatprep.subr.mxu0 0.0
    %4622 = vmatpush1.msra.mxu0 0.0
    %4623 = vmatprep.subr.mxu0 0.0
    %4624 = vmatpush1.msra.mxu0 0.0
    %4625 = vmatprep.subr.mxu0 0.0
    %4626 = vmatpush1.msra.mxu0 0.0
    %4627 = vmatprep.subr.mxu0 0.0
    %4628 = vmatpush1.msra.mxu0 0.0
    %4629 = vmatprep.subr.mxu0 0.0
    %4630 = vmatpush1.msra.mxu0 0.0
    %4631 = vmatprep.subr.mxu0 0.0
    %4632 = vmatpush1.msra.mxu0 0.0
    %4633 = vmatprep.subr.mxu0 0.0
    %4634 = vmatpush1.msra.mxu0 0.0
    %4635 = vmatprep.subr.mxu0 0.0
    %4636 = vmatpush1.msra.mxu0 0.0
    %4637 = vmatprep.subr.mxu0 0.0
    %4638 = vmatpush1.msra.mxu0 0.0
    %4639 = vmatprep.subr.mxu0 0.0
    %4640 = vmatpush1.msra.mxu0 0.0
    %4641 = vmatprep.subr.mxu0 0.0
    %4642 = vmatpush1.msra.mxu0 0.0
    %4643 = vmatprep.subr.mxu0 0.0
    %4644 = vmatpush1.msra.mxu0 0.0
    %4645 = vmatprep.subr.mxu0 0.0
    %4646 = vmatpush1.msra.mxu0 0.0
    %4647 = vmatprep.subr.mxu0 0.0
    %4648 = vmatpush1.msra.mxu0 0.0
    %4649 = vmatprep.subr.mxu0 0.0
    %4650 = vmatpush1.msra.mxu0 %v3436
    %4651 = vmatprep.subr.mxu0 0.0
    %4652 = vmatpush1.msra.mxu0 %v3431
    %4653 = vmatprep.subr.mxu0 0.0
    %4654 = vmatpush2.msra.mxu0 0.0
    %4655 = vmatprep.subr.mxu0 0.0
    %4656 = vmatpush2.msra.mxu0 0.0
    %4657 = vmatprep.subr.mxu0 0.0
    %4658 = vmatpush2.msra.mxu0 0.0
    %4659 = vmatprep.subr.mxu0 0.0
    %4660 = vmatpush2.msra.mxu0 0.0
    %4661 = vmatprep.subr.mxu0 0.0
    %4662 = vmatpush2.msra.mxu0 0.0
    %4663 = vmatprep.subr.mxu0 0.0
    %4664 = vmatpush2.msra.mxu0 0.0
    %4665 = vmatprep.subr.mxu0 0.0
    %4666 = vmatpush2.msra.mxu0 0.0
    %4667 = vmatprep.subr.mxu0 0.0
    %4668 = vmatpush2.msra.mxu0 0.0
    %4669 = vmatprep.subr.mxu0 0.0
    %4670 = vmatpush2.msra.mxu0 0.0
    %4671 = vmatprep.subr.mxu0 0.0
    %4672 = vmatpush2.msra.mxu0 0.0
    %4673 = vmatprep.subr.mxu0 0.0
    %4674 = vmatpush2.msra.mxu0 0.0
    %4675 = vmatprep.subr.mxu0 0.0
    %4676 = vmatpush2.msra.mxu0 0.0
    %4677 = vmatprep.subr.mxu0 0.0
    %4678 = vmatpush2.msra.mxu0 0.0
    %4679 = vmatprep.subr.mxu0 0.0
    %4680 = vmatpush2.msra.mxu0 0.0
    %4681 = vmatprep.subr.mxu0 0.0
    %4682 = vmatpush2.msra.mxu0 0.0
    %4683 = vmatprep.subr.mxu0 0.0
    %4684 = vmatpush2.msra.mxu0 0.0
    %4685 = vmatprep.mubr.f32.mxu0 0.0
    %4686 = vmatmul.mubr.f32.gmra.mxu0 %v4616
    %v4687 = vpop.f32.mrf.mxu0
    %v4688 = vadd.f32 0.0, %v4687
    %v4689 = vpop.f32.mrf.mxu0
    %4690 = vmatprep.mubr.f32.mxu0 0.0
    %4691 = vmatmul.mubr.f32.gmra.mxu0 %v4619
    %v4692 = vpop.f32.mrf.mxu0
    %v4693 = vadd.f32 0.0, %v4692
    %v4694 = vpop.f32.mrf.mxu0
    %4695 = vdwg.mxu0
    %v4697 = vsel %vm2772, %v3099, 0
    %v4700 = vsel %vm2772, %v3100, 0
    %4702 = vmatprep.subr.mxu0 0.0
    %4703 = vmatpush1.msra.mxu0 0.0
    %4704 = vmatprep.subr.mxu0 0.0
    %4705 = vmatpush1.msra.mxu0 0.0
    %4706 = vmatprep.subr.mxu0 0.0
    %4707 = vmatpush1.msra.mxu0 0.0
    %4708 = vmatprep.subr.mxu0 0.0
    %4709 = vmatpush1.msra.mxu0 0.0
    %4710 = vmatprep.subr.mxu0 0.0
    %4711 = vmatpush1.msra.mxu0 0.0
    %4712 = vmatprep.subr.mxu0 0.0
    %4713 = vmatpush1.msra.mxu0 0.0
    %4714 = vmatprep.subr.mxu0 0.0
    %4715 = vmatpush1.msra.mxu0 0.0
    %4716 = vmatprep.subr.mxu0 0.0
    %4717 = vmatpush1.msra.mxu0 0.0
    %4718 = vmatprep.subr.mxu0 0.0
    %4719 = vmatpush1.msra.mxu0 0.0
    %4720 = vmatprep.subr.mxu0 0.0
    %4721 = vmatpush1.msra.mxu0 0.0
    %4722 = vmatprep.subr.mxu0 0.0
    %4723 = vmatpush1.msra.mxu0 0.0
    %4724 = vmatprep.subr.mxu0 0.0
    %4725 = vmatpush1.msra.mxu0 0.0
    %4726 = vmatprep.subr.mxu0 0.0
    %4727 = vmatpush1.msra.mxu0 0.0
    %4728 = vmatprep.subr.mxu0 0.0
    %4729 = vmatpush1.msra.mxu0 0.0
    %4730 = vmatprep.subr.mxu0 0.0
    %4731 = vmatpush1.msra.mxu0 %v3514
    %4732 = vmatprep.subr.mxu0 0.0
    %4733 = vmatpush1.msra.mxu0 %v3509
    %4734 = vmatprep.subr.mxu0 0.0
    %4735 = vmatpush2.msra.mxu0 0.0
    %4736 = vmatprep.subr.mxu0 0.0
    %4737 = vmatpush2.msra.mxu0 0.0
    %4738 = vmatprep.subr.mxu0 0.0
    %4739 = vmatpush2.msra.mxu0 0.0
    %4740 = vmatprep.subr.mxu0 0.0
    %4741 = vmatpush2.msra.mxu0 0.0
    %4742 = vmatprep.subr.mxu0 0.0
    %4743 = vmatpush2.msra.mxu0 0.0
    %4744 = vmatprep.subr.mxu0 0.0
    %4745 = vmatpush2.msra.mxu0 0.0
    %4746 = vmatprep.subr.mxu0 0.0
    %4747 = vmatpush2.msra.mxu0 0.0
    %4748 = vmatprep.subr.mxu0 0.0
    %4749 = vmatpush2.msra.mxu0 0.0
    %4750 = vmatprep.subr.mxu0 0.0
    %4751 = vmatpush2.msra.mxu0 0.0
    %4752 = vmatprep.subr.mxu0 0.0
    %4753 = vmatpush2.msra.mxu0 0.0
    %4754 = vmatprep.subr.mxu0 0.0
    %4755 = vmatpush2.msra.mxu0 0.0
    %4756 = vmatprep.subr.mxu0 0.0
    %4757 = vmatpush2.msra.mxu0 0.0
    %4758 = vmatprep.subr.mxu0 0.0
    %4759 = vmatpush2.msra.mxu0 0.0
    %4760 = vmatprep.subr.mxu0 0.0
    %4761 = vmatpush2.msra.mxu0 0.0
    %4762 = vmatprep.subr.mxu0 0.0
    %4763 = vmatpush2.msra.mxu0 0.0
    %4764 = vmatprep.subr.mxu0 0.0
    %4765 = vmatpush2.msra.mxu0 0.0
    %4766 = vmatprep.mubr.f32.mxu0 0.0
    %4767 = vmatmul.mubr.f32.gmra.mxu0 %v4697
    %v4768 = vpop.f32.mrf.mxu0
    %v4769 = vadd.f32 0.0, %v4768
    %v4770 = vpop.f32.mrf.mxu0
    %4771 = vmatprep.mubr.f32.mxu0 0.0
    %4772 = vmatmul.mubr.f32.gmra.mxu0 %v4700
    %v4773 = vpop.f32.mrf.mxu0
    %v4774 = vadd.f32 0.0, %v4773
    %v4775 = vpop.f32.mrf.mxu0
    %4776 = vdwg.mxu0
    %v4778 = vsel %vm2772, %v3101, 0
    %v4781 = vsel %vm2772, %v3102, 0
    %4783 = vmatprep.subr.mxu0 0.0
    %4784 = vmatpush1.msra.mxu0 0.0
    %4785 = vmatprep.subr.mxu0 0.0
    %4786 = vmatpush1.msra.mxu0 0.0
    %4787 = vmatprep.subr.mxu0 0.0
    %4788 = vmatpush1.msra.mxu0 0.0
    %4789 = vmatprep.subr.mxu0 0.0
    %4790 = vmatpush1.msra.mxu0 0.0
    %4791 = vmatprep.subr.mxu0 0.0
    %4792 = vmatpush1.msra.mxu0 0.0
    %4793 = vmatprep.subr.mxu0 0.0
    %4794 = vmatpush1.msra.mxu0 0.0
    %4795 = vmatprep.subr.mxu0 0.0
    %4796 = vmatpush1.msra.mxu0 0.0
    %4797 = vmatprep.subr.mxu0 0.0
    %4798 = vmatpush1.msra.mxu0 0.0
    %4799 = vmatprep.subr.mxu0 0.0
    %4800 = vmatpush1.msra.mxu0 0.0
    %4801 = vmatprep.subr.mxu0 0.0
    %4802 = vmatpush1.msra.mxu0 0.0
    %4803 = vmatprep.subr.mxu0 0.0
    %4804 = vmatpush1.msra.mxu0 0.0
    %4805 = vmatprep.subr.mxu0 0.0
    %4806 = vmatpush1.msra.mxu0 0.0
    %4807 = vmatprep.subr.mxu0 0.0
    %4808 = vmatpush1.msra.mxu0 0.0
    %4809 = vmatprep.subr.mxu0 0.0
    %4810 = vmatpush1.msra.mxu0 0.0
    %4811 = vmatprep.subr.mxu0 0.0
    %4812 = vmatpush1.msra.mxu0 %v3592
    %4813 = vmatprep.subr.mxu0 0.0
    %4814 = vmatpush1.msra.mxu0 %v3587
    %4815 = vmatprep.subr.mxu0 0.0
    %4816 = vmatpush2.msra.mxu0 0.0
    %4817 = vmatprep.subr.mxu0 0.0
    %4818 = vmatpush2.msra.mxu0 0.0
    %4819 = vmatprep.subr.mxu0 0.0
    %4820 = vmatpush2.msra.mxu0 0.0
    %4821 = vmatprep.subr.mxu0 0.0
    %4822 = vmatpush2.msra.mxu0 0.0
    %4823 = vmatprep.subr.mxu0 0.0
    %4824 = vmatpush2.msra.mxu0 0.0
    %4825 = vmatprep.subr.mxu0 0.0
    %4826 = vmatpush2.msra.mxu0 0.0
    %4827 = vmatprep.subr.mxu0 0.0
    %4828 = vmatpush2.msra.mxu0 0.0
    %4829 = vmatprep.subr.mxu0 0.0
    %4830 = vmatpush2.msra.mxu0 0.0
    %4831 = vmatprep.subr.mxu0 0.0
    %4832 = vmatpush2.msra.mxu0 0.0
    %4833 = vmatprep.subr.mxu0 0.0
    %4834 = vmatpush2.msra.mxu0 0.0
    %4835 = vmatprep.subr.mxu0 0.0
    %4836 = vmatpush2.msra.mxu0 0.0
    %4837 = vmatprep.subr.mxu0 0.0
    %4838 = vmatpush2.msra.mxu0 0.0
    %4839 = vmatprep.subr.mxu0 0.0
    %4840 = vmatpush2.msra.mxu0 0.0
    %4841 = vmatprep.subr.mxu0 0.0
    %4842 = vmatpush2.msra.mxu0 0.0
    %4843 = vmatprep.subr.mxu0 0.0
    %4844 = vmatpush2.msra.mxu0 0.0
    %4845 = vmatprep.subr.mxu0 0.0
    %4846 = vmatpush2.msra.mxu0 0.0
    %4847 = vmatprep.mubr.f32.mxu0 0.0
    %4848 = vmatmul.mubr.f32.gmra.mxu0 %v4778
    %v4849 = vpop.f32.mrf.mxu0
    %v4850 = vadd.f32 0.0, %v4849
    %v4851 = vpop.f32.mrf.mxu0
    %4852 = vmatprep.mubr.f32.mxu0 0.0
    %4853 = vmatmul.mubr.f32.gmra.mxu0 %v4781
    %v4854 = vpop.f32.mrf.mxu0
    %v4855 = vadd.f32 0.0, %v4854
    %v4856 = vpop.f32.mrf.mxu0
    %4857 = vdwg.mxu0
    %v4859 = vsel %vm2772, %v3103, 0
    %v4862 = vsel %vm2772, %v3104, 0
    %4864 = vmatprep.subr.mxu0 0.0
    %4865 = vmatpush1.msra.mxu0 0.0
    %4866 = vmatprep.subr.mxu0 0.0
    %4867 = vmatpush1.msra.mxu0 0.0
    %4868 = vmatprep.subr.mxu0 0.0
    %4869 = vmatpush1.msra.mxu0 0.0
    %4870 = vmatprep.subr.mxu0 0.0
    %4871 = vmatpush1.msra.mxu0 0.0
    %4872 = vmatprep.subr.mxu0 0.0
    %4873 = vmatpush1.msra.mxu0 0.0
    %4874 = vmatprep.subr.mxu0 0.0
    %4875 = vmatpush1.msra.mxu0 0.0
    %4876 = vmatprep.subr.mxu0 0.0
    %4877 = vmatpush1.msra.mxu0 0.0
    %4878 = vmatprep.subr.mxu0 0.0
    %4879 = vmatpush1.msra.mxu0 0.0
    %4880 = vmatprep.subr.mxu0 0.0
    %4881 = vmatpush1.msra.mxu0 0.0
    %4882 = vmatprep.subr.mxu0 0.0
    %4883 = vmatpush1.msra.mxu0 0.0
    %4884 = vmatprep.subr.mxu0 0.0
    %4885 = vmatpush1.msra.mxu0 0.0
    %4886 = vmatprep.subr.mxu0 0.0
    %4887 = vmatpush1.msra.mxu0 0.0
    %4888 = vmatprep.subr.mxu0 0.0
    %4889 = vmatpush1.msra.mxu0 0.0
    %4890 = vmatprep.subr.mxu0 0.0
    %4891 = vmatpush1.msra.mxu0 0.0
    %4892 = vmatprep.subr.mxu0 0.0
    %4893 = vmatpush1.msra.mxu0 %v3670
    %4894 = vmatprep.subr.mxu0 0.0
    %4895 = vmatpush1.msra.mxu0 %v3665
    %4896 = vmatprep.subr.mxu0 0.0
    %4897 = vmatpush2.msra.mxu0 0.0
    %4898 = vmatprep.subr.mxu0 0.0
    %4899 = vmatpush2.msra.mxu0 0.0
    %4900 = vmatprep.subr.mxu0 0.0
    %4901 = vmatpush2.msra.mxu0 0.0
    %4902 = vmatprep.subr.mxu0 0.0
    %4903 = vmatpush2.msra.mxu0 0.0
    %4904 = vmatprep.subr.mxu0 0.0
    %4905 = vmatpush2.msra.mxu0 0.0
    %4906 = vmatprep.subr.mxu0 0.0
    %4907 = vmatpush2.msra.mxu0 0.0
    %4908 = vmatprep.subr.mxu0 0.0
    %4909 = vmatpush2.msra.mxu0 0.0
    %4910 = vmatprep.subr.mxu0 0.0
    %4911 = vmatpush2.msra.mxu0 0.0
    %4912 = vmatprep.subr.mxu0 0.0
    %4913 = vmatpush2.msra.mxu0 0.0
    %4914 = vmatprep.subr.mxu0 0.0
    %4915 = vmatpush2.msra.mxu0 0.0
    %4916 = vmatprep.subr.mxu0 0.0
    %4917 = vmatpush2.msra.mxu0 0.0
    %4918 = vmatprep.subr.mxu0 0.0
    %4919 = vmatpush2.msra.mxu0 0.0
    %4920 = vmatprep.subr.mxu0 0.0
    %4921 = vmatpush2.msra.mxu0 0.0
    %4922 = vmatprep.subr.mxu0 0.0
    %4923 = vmatpush2.msra.mxu0 0.0
    %4924 = vmatprep.subr.mxu0 0.0
    %4925 = vmatpush2.msra.mxu0 0.0
    %4926 = vmatprep.subr.mxu0 0.0
    %4927 = vmatpush2.msra.mxu0 0.0
    %4928 = vmatprep.mubr.f32.mxu0 0.0
    %4929 = vmatmul.mubr.f32.gmra.mxu0 %v4859
    %v4930 = vpop.f32.mrf.mxu0
    %v4931 = vadd.f32 0.0, %v4930
    %v4932 = vpop.f32.mrf.mxu0
    %4933 = vmatprep.mubr.f32.mxu0 0.0
    %4934 = vmatmul.mubr.f32.gmra.mxu0 %v4862
    %v4935 = vpop.f32.mrf.mxu0
    %v4936 = vadd.f32 0.0, %v4935
    %v4937 = vpop.f32.mrf.mxu0
    %4938 = vdwg.mxu0
    %v4940 = vsel %vm2772, %v3105, 0
    %v4943 = vsel %vm2772, %v3106, 0
    %4945 = vmatprep.subr.mxu0 0.0
    %4946 = vmatpush1.msra.mxu0 0.0
    %4947 = vmatprep.subr.mxu0 0.0
    %4948 = vmatpush1.msra.mxu0 0.0
    %4949 = vmatprep.subr.mxu0 0.0
    %4950 = vmatpush1.msra.mxu0 0.0
    %4951 = vmatprep.subr.mxu0 0.0
    %4952 = vmatpush1.msra.mxu0 0.0
    %4953 = vmatprep.subr.mxu0 0.0
    %4954 = vmatpush1.msra.mxu0 0.0
    %4955 = vmatprep.subr.mxu0 0.0
    %4956 = vmatpush1.msra.mxu0 0.0
    %4957 = vmatprep.subr.mxu0 0.0
    %4958 = vmatpush1.msra.mxu0 0.0
    %4959 = vmatprep.subr.mxu0 0.0
    %4960 = vmatpush1.msra.mxu0 0.0
    %4961 = vmatprep.subr.mxu0 0.0
    %4962 = vmatpush1.msra.mxu0 0.0
    %4963 = vmatprep.subr.mxu0 0.0
    %4964 = vmatpush1.msra.mxu0 0.0
    %4965 = vmatprep.subr.mxu0 0.0
    %4966 = vmatpush1.msra.mxu0 0.0
    %4967 = vmatprep.subr.mxu0 0.0
    %4968 = vmatpush1.msra.mxu0 0.0
    %4969 = vmatprep.subr.mxu0 0.0
    %4970 = vmatpush1.msra.mxu0 0.0
    %4971 = vmatprep.subr.mxu0 0.0
    %4972 = vmatpush1.msra.mxu0 0.0
    %4973 = vmatprep.subr.mxu0 0.0
    %4974 = vmatpush1.msra.mxu0 %v3748
    %4975 = vmatprep.subr.mxu0 0.0
    %4976 = vmatpush1.msra.mxu0 %v3743
    %4977 = vmatprep.subr.mxu0 0.0
    %4978 = vmatpush2.msra.mxu0 0.0
    %4979 = vmatprep.subr.mxu0 0.0
    %4980 = vmatpush2.msra.mxu0 0.0
    %4981 = vmatprep.subr.mxu0 0.0
    %4982 = vmatpush2.msra.mxu0 0.0
    %4983 = vmatprep.subr.mxu0 0.0
    %4984 = vmatpush2.msra.mxu0 0.0
    %4985 = vmatprep.subr.mxu0 0.0
    %4986 = vmatpush2.msra.mxu0 0.0
    %4987 = vmatprep.subr.mxu0 0.0
    %4988 = vmatpush2.msra.mxu0 0.0
    %4989 = vmatprep.subr.mxu0 0.0
    %4990 = vmatpush2.msra.mxu0 0.0
    %4991 = vmatprep.subr.mxu0 0.0
    %4992 = vmatpush2.msra.mxu0 0.0
    %4993 = vmatprep.subr.mxu0 0.0
    %4994 = vmatpush2.msra.mxu0 0.0
    %4995 = vmatprep.subr.mxu0 0.0
    %4996 = vmatpush2.msra.mxu0 0.0
    %4997 = vmatprep.subr.mxu0 0.0
    %4998 = vmatpush2.msra.mxu0 0.0
    %4999 = vmatprep.subr.mxu0 0.0
    %5000 = vmatpush2.msra.mxu0 0.0
    %5001 = vmatprep.subr.mxu0 0.0
    %5002 = vmatpush2.msra.mxu0 0.0
    %5003 = vmatprep.subr.mxu0 0.0
    %5004 = vmatpush2.msra.mxu0 0.0
    %5005 = vmatprep.subr.mxu0 0.0
    %5006 = vmatpush2.msra.mxu0 0.0
    %5007 = vmatprep.subr.mxu0 0.0
    %5008 = vmatpush2.msra.mxu0 0.0
    %5009 = vmatprep.mubr.f32.mxu0 0.0
    %5010 = vmatmul.mubr.f32.gmra.mxu0 %v4940
    %v5011 = vpop.f32.mrf.mxu0
    %v5012 = vadd.f32 0.0, %v5011
    %v5013 = vpop.f32.mrf.mxu0
    %5014 = vmatprep.mubr.f32.mxu0 0.0
    %5015 = vmatmul.mubr.f32.gmra.mxu0 %v4943
    %v5016 = vpop.f32.mrf.mxu0
    %v5017 = vadd.f32 0.0, %v5016
    %v5018 = vpop.f32.mrf.mxu0
    %5019 = vdwg.mxu0
    %v5021 = vsel %vm2772, %v3107, 0
    %v5024 = vsel %vm2772, %v3108, 0
    %5026 = vmatprep.subr.mxu0 0.0
    %5027 = vmatpush1.msra.mxu0 0.0
    %5028 = vmatprep.subr.mxu0 0.0
    %5029 = vmatpush1.msra.mxu0 0.0
    %5030 = vmatprep.subr.mxu0 0.0
    %5031 = vmatpush1.msra.mxu0 0.0
    %5032 = vmatprep.subr.mxu0 0.0
    %5033 = vmatpush1.msra.mxu0 0.0
    %5034 = vmatprep.subr.mxu0 0.0
    %5035 = vmatpush1.msra.mxu0 0.0
    %5036 = vmatprep.subr.mxu0 0.0
    %5037 = vmatpush1.msra.mxu0 0.0
    %5038 = vmatprep.subr.mxu0 0.0
    %5039 = vmatpush1.msra.mxu0 0.0
    %5040 = vmatprep.subr.mxu0 0.0
    %5041 = vmatpush1.msra.mxu0 0.0
    %5042 = vmatprep.subr.mxu0 0.0
    %5043 = vmatpush1.msra.mxu0 0.0
    %5044 = vmatprep.subr.mxu0 0.0
    %5045 = vmatpush1.msra.mxu0 0.0
    %5046 = vmatprep.subr.mxu0 0.0
    %5047 = vmatpush1.msra.mxu0 0.0
    %5048 = vmatprep.subr.mxu0 0.0
    %5049 = vmatpush1.msra.mxu0 0.0
    %5050 = vmatprep.subr.mxu0 0.0
    %5051 = vmatpush1.msra.mxu0 0.0
    %5052 = vmatprep.subr.mxu0 0.0
    %5053 = vmatpush1.msra.mxu0 0.0
    %5054 = vmatprep.subr.mxu0 0.0
    %5055 = vmatpush1.msra.mxu0 %v3826
    %5056 = vmatprep.subr.mxu0 0.0
    %5057 = vmatpush1.msra.mxu0 %v3821
    %5058 = vmatprep.subr.mxu0 0.0
    %5059 = vmatpush2.msra.mxu0 0.0
    %5060 = vmatprep.subr.mxu0 0.0
    %5061 = vmatpush2.msra.mxu0 0.0
    %5062 = vmatprep.subr.mxu0 0.0
    %5063 = vmatpush2.msra.mxu0 0.0
    %5064 = vmatprep.subr.mxu0 0.0
    %5065 = vmatpush2.msra.mxu0 0.0
    %5066 = vmatprep.subr.mxu0 0.0
    %5067 = vmatpush2.msra.mxu0 0.0
    %5068 = vmatprep.subr.mxu0 0.0
    %5069 = vmatpush2.msra.mxu0 0.0
    %5070 = vmatprep.subr.mxu0 0.0
    %5071 = vmatpush2.msra.mxu0 0.0
    %5072 = vmatprep.subr.mxu0 0.0
    %5073 = vmatpush2.msra.mxu0 0.0
    %5074 = vmatprep.subr.mxu0 0.0
    %5075 = vmatpush2.msra.mxu0 0.0
    %5076 = vmatprep.subr.mxu0 0.0
    %5077 = vmatpush2.msra.mxu0 0.0
    %5078 = vmatprep.subr.mxu0 0.0
    %5079 = vmatpush2.msra.mxu0 0.0
    %5080 = vmatprep.subr.mxu0 0.0
    %5081 = vmatpush2.msra.mxu0 0.0
    %5082 = vmatprep.subr.mxu0 0.0
    %5083 = vmatpush2.msra.mxu0 0.0
    %5084 = vmatprep.subr.mxu0 0.0
    %5085 = vmatpush2.msra.mxu0 0.0
    %5086 = vmatprep.subr.mxu0 0.0
    %5087 = vmatpush2.msra.mxu0 0.0
    %5088 = vmatprep.subr.mxu0 0.0
    %5089 = vmatpush2.msra.mxu0 0.0
    %5090 = vmatprep.mubr.f32.mxu0 0.0
    %5091 = vmatmul.mubr.f32.gmra.mxu0 %v5021
    %v5092 = vpop.f32.mrf.mxu0
    %v5093 = vadd.f32 0.0, %v5092
    %v5094 = vpop.f32.mrf.mxu0
    %5095 = vmatprep.mubr.f32.mxu0 0.0
    %5096 = vmatmul.mubr.f32.gmra.mxu0 %v5024
    %v5097 = vpop.f32.mrf.mxu0
    %v5098 = vadd.f32 0.0, %v5097
    %v5099 = vpop.f32.mrf.mxu0
    %5100 = vdwg.mxu0
    %v5102 = vsel %vm2772, %v3109, 0
    %v5105 = vsel %vm2772, %v3110, 0
    %5107 = vmatprep.subr.mxu0 0.0
    %5108 = vmatpush1.msra.mxu0 0.0
    %5109 = vmatprep.subr.mxu0 0.0
    %5110 = vmatpush1.msra.mxu0 0.0
    %5111 = vmatprep.subr.mxu0 0.0
    %5112 = vmatpush1.msra.mxu0 0.0
    %5113 = vmatprep.subr.mxu0 0.0
    %5114 = vmatpush1.msra.mxu0 0.0
    %5115 = vmatprep.subr.mxu0 0.0
    %5116 = vmatpush1.msra.mxu0 0.0
    %5117 = vmatprep.subr.mxu0 0.0
    %5118 = vmatpush1.msra.mxu0 0.0
    %5119 = vmatprep.subr.mxu0 0.0
    %5120 = vmatpush1.msra.mxu0 0.0
    %5121 = vmatprep.subr.mxu0 0.0
    %5122 = vmatpush1.msra.mxu0 0.0
    %5123 = vmatprep.subr.mxu0 0.0
    %5124 = vmatpush1.msra.mxu0 0.0
    %5125 = vmatprep.subr.mxu0 0.0
    %5126 = vmatpush1.msra.mxu0 0.0
    %5127 = vmatprep.subr.mxu0 0.0
    %5128 = vmatpush1.msra.mxu0 0.0
    %5129 = vmatprep.subr.mxu0 0.0
    %5130 = vmatpush1.msra.mxu0 0.0
    %5131 = vmatprep.subr.mxu0 0.0
    %5132 = vmatpush1.msra.mxu0 0.0
    %5133 = vmatprep.subr.mxu0 0.0
    %5134 = vmatpush1.msra.mxu0 0.0
    %5135 = vmatprep.subr.mxu0 0.0
    %5136 = vmatpush1.msra.mxu0 %v3904
    %5137 = vmatprep.subr.mxu0 0.0
    %5138 = vmatpush1.msra.mxu0 %v3899
    %5139 = vmatprep.subr.mxu0 0.0
    %5140 = vmatpush2.msra.mxu0 0.0
    %5141 = vmatprep.subr.mxu0 0.0
    %5142 = vmatpush2.msra.mxu0 0.0
    %5143 = vmatprep.subr.mxu0 0.0
    %5144 = vmatpush2.msra.mxu0 0.0
    %5145 = vmatprep.subr.mxu0 0.0
    %5146 = vmatpush2.msra.mxu0 0.0
    %5147 = vmatprep.subr.mxu0 0.0
    %5148 = vmatpush2.msra.mxu0 0.0
    %5149 = vmatprep.subr.mxu0 0.0
    %5150 = vmatpush2.msra.mxu0 0.0
    %5151 = vmatprep.subr.mxu0 0.0
    %5152 = vmatpush2.msra.mxu0 0.0
    %5153 = vmatprep.subr.mxu0 0.0
    %5154 = vmatpush2.msra.mxu0 0.0
    %5155 = vmatprep.subr.mxu0 0.0
    %5156 = vmatpush2.msra.mxu0 0.0
    %5157 = vmatprep.subr.mxu0 0.0
    %5158 = vmatpush2.msra.mxu0 0.0
    %5159 = vmatprep.subr.mxu0 0.0
    %5160 = vmatpush2.msra.mxu0 0.0
    %5161 = vmatprep.subr.mxu0 0.0
    %5162 = vmatpush2.msra.mxu0 0.0
    %5163 = vmatprep.subr.mxu0 0.0
    %5164 = vmatpush2.msra.mxu0 0.0
    %5165 = vmatprep.subr.mxu0 0.0
    %5166 = vmatpush2.msra.mxu0 0.0
    %5167 = vmatprep.subr.mxu0 0.0
    %5168 = vmatpush2.msra.mxu0 0.0
    %5169 = vmatprep.subr.mxu0 0.0
    %5170 = vmatpush2.msra.mxu0 0.0
    %5171 = vmatprep.mubr.f32.mxu0 0.0
    %5172 = vmatmul.mubr.f32.gmra.mxu0 %v5102
    %v5173 = vpop.f32.mrf.mxu0
    %v5174 = vadd.f32 0.0, %v5173
    %v5175 = vpop.f32.mrf.mxu0
    %5176 = vmatprep.mubr.f32.mxu0 0.0
    %5177 = vmatmul.mubr.f32.gmra.mxu0 %v5105
    %v5178 = vpop.f32.mrf.mxu0
    %v5179 = vadd.f32 0.0, %v5178
    %v5180 = vpop.f32.mrf.mxu0
    %5181 = vdwg.mxu0
    %v5183 = vsel %vm2772, %v3111, 0
    %v5186 = vsel %vm2772, %v3112, 0
    %5188 = vmatprep.subr.mxu0 0.0
    %5189 = vmatpush1.msra.mxu0 0.0
    %5190 = vmatprep.subr.mxu0 0.0
    %5191 = vmatpush1.msra.mxu0 0.0
    %5192 = vmatprep.subr.mxu0 0.0
    %5193 = vmatpush1.msra.mxu0 0.0
    %5194 = vmatprep.subr.mxu0 0.0
    %5195 = vmatpush1.msra.mxu0 0.0
    %5196 = vmatprep.subr.mxu0 0.0
    %5197 = vmatpush1.msra.mxu0 0.0
    %5198 = vmatprep.subr.mxu0 0.0
    %5199 = vmatpush1.msra.mxu0 0.0
    %5200 = vmatprep.subr.mxu0 0.0
    %5201 = vmatpush1.msra.mxu0 0.0
    %5202 = vmatprep.subr.mxu0 0.0
    %5203 = vmatpush1.msra.mxu0 0.0
    %5204 = vmatprep.subr.mxu0 0.0
    %5205 = vmatpush1.msra.mxu0 0.0
    %5206 = vmatprep.subr.mxu0 0.0
    %5207 = vmatpush1.msra.mxu0 0.0
    %5208 = vmatprep.subr.mxu0 0.0
    %5209 = vmatpush1.msra.mxu0 0.0
    %5210 = vmatprep.subr.mxu0 0.0
    %5211 = vmatpush1.msra.mxu0 0.0
    %5212 = vmatprep.subr.mxu0 0.0
    %5213 = vmatpush1.msra.mxu0 0.0
    %5214 = vmatprep.subr.mxu0 0.0
    %5215 = vmatpush1.msra.mxu0 0.0
    %5216 = vmatprep.subr.mxu0 0.0
    %5217 = vmatpush1.msra.mxu0 %v3982
    %5218 = vmatprep.subr.mxu0 0.0
    %5219 = vmatpush1.msra.mxu0 %v3977
    %5220 = vmatprep.subr.mxu0 0.0
    %5221 = vmatpush2.msra.mxu0 0.0
    %5222 = vmatprep.subr.mxu0 0.0
    %5223 = vmatpush2.msra.mxu0 0.0
    %5224 = vmatprep.subr.mxu0 0.0
    %5225 = vmatpush2.msra.mxu0 0.0
    %5226 = vmatprep.subr.mxu0 0.0
    %5227 = vmatpush2.msra.mxu0 0.0
    %5228 = vmatprep.subr.mxu0 0.0
    %5229 = vmatpush2.msra.mxu0 0.0
    %5230 = vmatprep.subr.mxu0 0.0
    %5231 = vmatpush2.msra.mxu0 0.0
    %5232 = vmatprep.subr.mxu0 0.0
    %5233 = vmatpush2.msra.mxu0 0.0
    %5234 = vmatprep.subr.mxu0 0.0
    %5235 = vmatpush2.msra.mxu0 0.0
    %5236 = vmatprep.subr.mxu0 0.0
    %5237 = vmatpush2.msra.mxu0 0.0
    %5238 = vmatprep.subr.mxu0 0.0
    %5239 = vmatpush2.msra.mxu0 0.0
    %5240 = vmatprep.subr.mxu0 0.0
    %5241 = vmatpush2.msra.mxu0 0.0
    %5242 = vmatprep.subr.mxu0 0.0
    %5243 = vmatpush2.msra.mxu0 0.0
    %5244 = vmatprep.subr.mxu0 0.0
    %5245 = vmatpush2.msra.mxu0 0.0
    %5246 = vmatprep.subr.mxu0 0.0
    %5247 = vmatpush2.msra.mxu0 0.0
    %5248 = vmatprep.subr.mxu0 0.0
    %5249 = vmatpush2.msra.mxu0 0.0
    %5250 = vmatprep.subr.mxu0 0.0
    %5251 = vmatpush2.msra.mxu0 0.0
    %5252 = vmatprep.mubr.f32.mxu0 0.0
    %5253 = vmatmul.mubr.f32.gmra.mxu0 %v5183
    %v5254 = vpop.f32.mrf.mxu0
    %v5255 = vadd.f32 0.0, %v5254
    %v5256 = vpop.f32.mrf.mxu0
    %5257 = vmatprep.mubr.f32.mxu0 0.0
    %5258 = vmatmul.mubr.f32.gmra.mxu0 %v5186
    %v5259 = vpop.f32.mrf.mxu0
    %v5260 = vadd.f32 0.0, %v5259
    %v5261 = vpop.f32.mrf.mxu0
    %5262 = vdwg.mxu0
    %v5264 = vsel %vm2772, %v3113, 0
    %v5267 = vsel %vm2772, %v3114, 0
    %5269 = vmatprep.subr.mxu0 0.0
    %5270 = vmatpush1.msra.mxu0 0.0
    %5271 = vmatprep.subr.mxu0 0.0
    %5272 = vmatpush1.msra.mxu0 0.0
    %5273 = vmatprep.subr.mxu0 0.0
    %5274 = vmatpush1.msra.mxu0 0.0
    %5275 = vmatprep.subr.mxu0 0.0
    %5276 = vmatpush1.msra.mxu0 0.0
    %5277 = vmatprep.subr.mxu0 0.0
    %5278 = vmatpush1.msra.mxu0 0.0
    %5279 = vmatprep.subr.mxu0 0.0
    %5280 = vmatpush1.msra.mxu0 0.0
    %5281 = vmatprep.subr.mxu0 0.0
    %5282 = vmatpush1.msra.mxu0 0.0
    %5283 = vmatprep.subr.mxu0 0.0
    %5284 = vmatpush1.msra.mxu0 0.0
    %5285 = vmatprep.subr.mxu0 0.0
    %5286 = vmatpush1.msra.mxu0 0.0
    %5287 = vmatprep.subr.mxu0 0.0
    %5288 = vmatpush1.msra.mxu0 0.0
    %5289 = vmatprep.subr.mxu0 0.0
    %5290 = vmatpush1.msra.mxu0 0.0
    %5291 = vmatprep.subr.mxu0 0.0
    %5292 = vmatpush1.msra.mxu0 0.0
    %5293 = vmatprep.subr.mxu0 0.0
    %5294 = vmatpush1.msra.mxu0 0.0
    %5295 = vmatprep.subr.mxu0 0.0
    %5296 = vmatpush1.msra.mxu0 0.0
    %5297 = vmatprep.subr.mxu0 0.0
    %5298 = vmatpush1.msra.mxu0 %v4060
    %5299 = vmatprep.subr.mxu0 0.0
    %5300 = vmatpush1.msra.mxu0 %v4055
    %5301 = vmatprep.subr.mxu0 0.0
    %5302 = vmatpush2.msra.mxu0 0.0
    %5303 = vmatprep.subr.mxu0 0.0
    %5304 = vmatpush2.msra.mxu0 0.0
    %5305 = vmatprep.subr.mxu0 0.0
    %5306 = vmatpush2.msra.mxu0 0.0
    %5307 = vmatprep.subr.mxu0 0.0
    %5308 = vmatpush2.msra.mxu0 0.0
    %5309 = vmatprep.subr.mxu0 0.0
    %5310 = vmatpush2.msra.mxu0 0.0
    %5311 = vmatprep.subr.mxu0 0.0
    %5312 = vmatpush2.msra.mxu0 0.0
    %5313 = vmatprep.subr.mxu0 0.0
    %5314 = vmatpush2.msra.mxu0 0.0
    %5315 = vmatprep.subr.mxu0 0.0
    %5316 = vmatpush2.msra.mxu0 0.0
    %5317 = vmatprep.subr.mxu0 0.0
    %5318 = vmatpush2.msra.mxu0 0.0
    %5319 = vmatprep.subr.mxu0 0.0
    %5320 = vmatpush2.msra.mxu0 0.0
    %5321 = vmatprep.subr.mxu0 0.0
    %5322 = vmatpush2.msra.mxu0 0.0
    %5323 = vmatprep.subr.mxu0 0.0
    %5324 = vmatpush2.msra.mxu0 0.0
    %5325 = vmatprep.subr.mxu0 0.0
    %5326 = vmatpush2.msra.mxu0 0.0
    %5327 = vmatprep.subr.mxu0 0.0
    %5328 = vmatpush2.msra.mxu0 0.0
    %5329 = vmatprep.subr.mxu0 0.0
    %5330 = vmatpush2.msra.mxu0 0.0
    %5331 = vmatprep.subr.mxu0 0.0
    %5332 = vmatpush2.msra.mxu0 0.0
    %5333 = vmatprep.mubr.f32.mxu0 0.0
    %5334 = vmatmul.mubr.f32.gmra.mxu0 %v5264
    %v5335 = vpop.f32.mrf.mxu0
    %v5336 = vadd.f32 0.0, %v5335
    %v5337 = vpop.f32.mrf.mxu0
    %5338 = vmatprep.mubr.f32.mxu0 0.0
    %5339 = vmatmul.mubr.f32.gmra.mxu0 %v5267
    %v5340 = vpop.f32.mrf.mxu0
    %v5341 = vadd.f32 0.0, %v5340
    %v5342 = vpop.f32.mrf.mxu0
    %5343 = vdwg.mxu0
    %v5345 = vsel %vm2772, %v3115, 0
    %v5348 = vsel %vm2772, %v3116, 0
    %5350 = vmatprep.subr.mxu0 0.0
    %5351 = vmatpush1.msra.mxu0 0.0
    %5352 = vmatprep.subr.mxu0 0.0
    %5353 = vmatpush1.msra.mxu0 0.0
    %5354 = vmatprep.subr.mxu0 0.0
    %5355 = vmatpush1.msra.mxu0 0.0
    %5356 = vmatprep.subr.mxu0 0.0
    %5357 = vmatpush1.msra.mxu0 0.0
    %5358 = vmatprep.subr.mxu0 0.0
    %5359 = vmatpush1.msra.mxu0 0.0
    %5360 = vmatprep.subr.mxu0 0.0
    %5361 = vmatpush1.msra.mxu0 0.0
    %5362 = vmatprep.subr.mxu0 0.0
    %5363 = vmatpush1.msra.mxu0 0.0
    %5364 = vmatprep.subr.mxu0 0.0
    %5365 = vmatpush1.msra.mxu0 0.0
    %5366 = vmatprep.subr.mxu0 0.0
    %5367 = vmatpush1.msra.mxu0 0.0
    %5368 = vmatprep.subr.mxu0 0.0
    %5369 = vmatpush1.msra.mxu0 0.0
    %5370 = vmatprep.subr.mxu0 0.0
    %5371 = vmatpush1.msra.mxu0 0.0
    %5372 = vmatprep.subr.mxu0 0.0
    %5373 = vmatpush1.msra.mxu0 0.0
    %5374 = vmatprep.subr.mxu0 0.0
    %5375 = vmatpush1.msra.mxu0 0.0
    %5376 = vmatprep.subr.mxu0 0.0
    %5377 = vmatpush1.msra.mxu0 0.0
    %5378 = vmatprep.subr.mxu0 0.0
    %5379 = vmatpush1.msra.mxu0 %v4138
    %5380 = vmatprep.subr.mxu0 0.0
    %5381 = vmatpush1.msra.mxu0 %v4133
    %5382 = vmatprep.subr.mxu0 0.0
    %5383 = vmatpush2.msra.mxu0 0.0
    %5384 = vmatprep.subr.mxu0 0.0
    %5385 = vmatpush2.msra.mxu0 0.0
    %5386 = vmatprep.subr.mxu0 0.0
    %5387 = vmatpush2.msra.mxu0 0.0
    %5388 = vmatprep.subr.mxu0 0.0
    %5389 = vmatpush2.msra.mxu0 0.0
    %5390 = vmatprep.subr.mxu0 0.0
    %5391 = vmatpush2.msra.mxu0 0.0
    %5392 = vmatprep.subr.mxu0 0.0
    %5393 = vmatpush2.msra.mxu0 0.0
    %5394 = vmatprep.subr.mxu0 0.0
    %5395 = vmatpush2.msra.mxu0 0.0
    %5396 = vmatprep.subr.mxu0 0.0
    %5397 = vmatpush2.msra.mxu0 0.0
    %5398 = vmatprep.subr.mxu0 0.0
    %5399 = vmatpush2.msra.mxu0 0.0
    %5400 = vmatprep.subr.mxu0 0.0
    %5401 = vmatpush2.msra.mxu0 0.0
    %5402 = vmatprep.subr.mxu0 0.0
    %5403 = vmatpush2.msra.mxu0 0.0
    %5404 = vmatprep.subr.mxu0 0.0
    %5405 = vmatpush2.msra.mxu0 0.0
    %5406 = vmatprep.subr.mxu0 0.0
    %5407 = vmatpush2.msra.mxu0 0.0
    %5408 = vmatprep.subr.mxu0 0.0
    %5409 = vmatpush2.msra.mxu0 0.0
    %5410 = vmatprep.subr.mxu0 0.0
    %5411 = vmatpush2.msra.mxu0 0.0
    %5412 = vmatprep.subr.mxu0 0.0
    %5413 = vmatpush2.msra.mxu0 0.0
    %5414 = vmatprep.mubr.f32.mxu0 0.0
    %5415 = vmatmul.mubr.f32.gmra.mxu0 %v5345
    %v5416 = vpop.f32.mrf.mxu0
    %v5417 = vadd.f32 0.0, %v5416
    %v5418 = vpop.f32.mrf.mxu0
    %5419 = vmatprep.mubr.f32.mxu0 0.0
    %5420 = vmatmul.mubr.f32.gmra.mxu0 %v5348
    %v5421 = vpop.f32.mrf.mxu0
    %v5422 = vadd.f32 0.0, %v5421
    %v5423 = vpop.f32.mrf.mxu0
    %5424 = vdwg.mxu0
    %v5426 = vsel %vm2772, %v3117, 0
    %v5429 = vsel %vm2772, %v3118, 0
    %5431 = vmatprep.subr.mxu0 0.0
    %5432 = vmatpush1.msra.mxu0 0.0
    %5433 = vmatprep.subr.mxu0 0.0
    %5434 = vmatpush1.msra.mxu0 0.0
    %5435 = vmatprep.subr.mxu0 0.0
    %5436 = vmatpush1.msra.mxu0 0.0
    %5437 = vmatprep.subr.mxu0 0.0
    %5438 = vmatpush1.msra.mxu0 0.0
    %5439 = vmatprep.subr.mxu0 0.0
    %5440 = vmatpush1.msra.mxu0 0.0
    %5441 = vmatprep.subr.mxu0 0.0
    %5442 = vmatpush1.msra.mxu0 0.0
    %5443 = vmatprep.subr.mxu0 0.0
    %5444 = vmatpush1.msra.mxu0 0.0
    %5445 = vmatprep.subr.mxu0 0.0
    %5446 = vmatpush1.msra.mxu0 0.0
    %5447 = vmatprep.subr.mxu0 0.0
    %5448 = vmatpush1.msra.mxu0 0.0
    %5449 = vmatprep.subr.mxu0 0.0
    %5450 = vmatpush1.msra.mxu0 0.0
    %5451 = vmatprep.subr.mxu0 0.0
    %5452 = vmatpush1.msra.mxu0 0.0
    %5453 = vmatprep.subr.mxu0 0.0
    %5454 = vmatpush1.msra.mxu0 0.0
    %5455 = vmatprep.subr.mxu0 0.0
    %5456 = vmatpush1.msra.mxu0 0.0
    %5457 = vmatprep.subr.mxu0 0.0
    %5458 = vmatpush1.msra.mxu0 0.0
    %5459 = vmatprep.subr.mxu0 0.0
    %5460 = vmatpush1.msra.mxu0 %v4216
    %5461 = vmatprep.subr.mxu0 0.0
    %5462 = vmatpush1.msra.mxu0 %v4211
    %5463 = vmatprep.subr.mxu0 0.0
    %5464 = vmatpush2.msra.mxu0 0.0
    %5465 = vmatprep.subr.mxu0 0.0
    %5466 = vmatpush2.msra.mxu0 0.0
    %5467 = vmatprep.subr.mxu0 0.0
    %5468 = vmatpush2.msra.mxu0 0.0
    %5469 = vmatprep.subr.mxu0 0.0
    %5470 = vmatpush2.msra.mxu0 0.0
    %5471 = vmatprep.subr.mxu0 0.0
    %5472 = vmatpush2.msra.mxu0 0.0
    %5473 = vmatprep.subr.mxu0 0.0
    %5474 = vmatpush2.msra.mxu0 0.0
    %5475 = vmatprep.subr.mxu0 0.0
    %5476 = vmatpush2.msra.mxu0 0.0
    %5477 = vmatprep.subr.mxu0 0.0
    %5478 = vmatpush2.msra.mxu0 0.0
    %5479 = vmatprep.subr.mxu0 0.0
    %5480 = vmatpush2.msra.mxu0 0.0
    %5481 = vmatprep.subr.mxu0 0.0
    %5482 = vmatpush2.msra.mxu0 0.0
    %5483 = vmatprep.subr.mxu0 0.0
    %5484 = vmatpush2.msra.mxu0 0.0
    %5485 = vmatprep.subr.mxu0 0.0
    %5486 = vmatpush2.msra.mxu0 0.0
    %5487 = vmatprep.subr.mxu0 0.0
    %5488 = vmatpush2.msra.mxu0 0.0
    %5489 = vmatprep.subr.mxu0 0.0
    %5490 = vmatpush2.msra.mxu0 0.0
    %5491 = vmatprep.subr.mxu0 0.0
    %5492 = vmatpush2.msra.mxu0 0.0
    %5493 = vmatprep.subr.mxu0 0.0
    %5494 = vmatpush2.msra.mxu0 0.0
    %5495 = vmatprep.mubr.f32.mxu0 0.0
    %5496 = vmatmul.mubr.f32.gmra.mxu0 %v5426
    %v5497 = vpop.f32.mrf.mxu0
    %v5498 = vadd.f32 0.0, %v5497
    %v5499 = vpop.f32.mrf.mxu0
    %5500 = vmatprep.mubr.f32.mxu0 0.0
    %5501 = vmatmul.mubr.f32.gmra.mxu0 %v5429
    %v5502 = vpop.f32.mrf.mxu0
    %v5503 = vadd.f32 0.0, %v5502
    %v5504 = vpop.f32.mrf.mxu0
    %5505 = vdwg.mxu0
    %v5507 = vsel %vm2772, %v3119, 0
    %v5510 = vsel %vm2772, %v3120, 0
    %5512 = vmatprep.subr.mxu0 0.0
    %5513 = vmatpush1.msra.mxu0 0.0
    %5514 = vmatprep.subr.mxu0 0.0
    %5515 = vmatpush1.msra.mxu0 0.0
    %5516 = vmatprep.subr.mxu0 0.0
    %5517 = vmatpush1.msra.mxu0 0.0
    %5518 = vmatprep.subr.mxu0 0.0
    %5519 = vmatpush1.msra.mxu0 0.0
    %5520 = vmatprep.subr.mxu0 0.0
    %5521 = vmatpush1.msra.mxu0 0.0
    %5522 = vmatprep.subr.mxu0 0.0
    %5523 = vmatpush1.msra.mxu0 0.0
    %5524 = vmatprep.subr.mxu0 0.0
    %5525 = vmatpush1.msra.mxu0 0.0
    %5526 = vmatprep.subr.mxu0 0.0
    %5527 = vmatpush1.msra.mxu0 0.0
    %5528 = vmatprep.subr.mxu0 0.0
    %5529 = vmatpush1.msra.mxu0 0.0
    %5530 = vmatprep.subr.mxu0 0.0
    %5531 = vmatpush1.msra.mxu0 0.0
    %5532 = vmatprep.subr.mxu0 0.0
    %5533 = vmatpush1.msra.mxu0 0.0
    %5534 = vmatprep.subr.mxu0 0.0
    %5535 = vmatpush1.msra.mxu0 0.0
    %5536 = vmatprep.subr.mxu0 0.0
    %5537 = vmatpush1.msra.mxu0 0.0
    %5538 = vmatprep.subr.mxu0 0.0
    %5539 = vmatpush1.msra.mxu0 0.0
    %5540 = vmatprep.subr.mxu0 0.0
    %5541 = vmatpush1.msra.mxu0 %v4294
    %5542 = vmatprep.subr.mxu0 0.0
    %5543 = vmatpush1.msra.mxu0 %v4289
    %5544 = vmatprep.subr.mxu0 0.0
    %5545 = vmatpush2.msra.mxu0 0.0
    %5546 = vmatprep.subr.mxu0 0.0
    %5547 = vmatpush2.msra.mxu0 0.0
    %5548 = vmatprep.subr.mxu0 0.0
    %5549 = vmatpush2.msra.mxu0 0.0
    %5550 = vmatprep.subr.mxu0 0.0
    %5551 = vmatpush2.msra.mxu0 0.0
    %5552 = vmatprep.subr.mxu0 0.0
    %5553 = vmatpush2.msra.mxu0 0.0
    %5554 = vmatprep.subr.mxu0 0.0
    %5555 = vmatpush2.msra.mxu0 0.0
    %5556 = vmatprep.subr.mxu0 0.0
    %5557 = vmatpush2.msra.mxu0 0.0
    %5558 = vmatprep.subr.mxu0 0.0
    %5559 = vmatpush2.msra.mxu0 0.0
    %5560 = vmatprep.subr.mxu0 0.0
    %5561 = vmatpush2.msra.mxu0 0.0
    %5562 = vmatprep.subr.mxu0 0.0
    %5563 = vmatpush2.msra.mxu0 0.0
    %5564 = vmatprep.subr.mxu0 0.0
    %5565 = vmatpush2.msra.mxu0 0.0
    %5566 = vmatprep.subr.mxu0 0.0
    %5567 = vmatpush2.msra.mxu0 0.0
    %5568 = vmatprep.subr.mxu0 0.0
    %5569 = vmatpush2.msra.mxu0 0.0
    %5570 = vmatprep.subr.mxu0 0.0
    %5571 = vmatpush2.msra.mxu0 0.0
    %5572 = vmatprep.subr.mxu0 0.0
    %5573 = vmatpush2.msra.mxu0 0.0
    %5574 = vmatprep.subr.mxu0 0.0
    %5575 = vmatpush2.msra.mxu0 0.0
    %5576 = vmatprep.mubr.f32.mxu0 0.0
    %5577 = vmatmul.mubr.f32.gmra.mxu0 %v5507
    %v5578 = vpop.f32.mrf.mxu0
    %v5579 = vadd.f32 0.0, %v5578
    %v5580 = vpop.f32.mrf.mxu0
    %5581 = vmatprep.mubr.f32.mxu0 0.0
    %5582 = vmatmul.mubr.f32.gmra.mxu0 %v5510
    %v5583 = vpop.f32.mrf.mxu0
    %v5584 = vadd.f32 0.0, %v5583
    %v5585 = vpop.f32.mrf.mxu0
    %5586 = vdwg.mxu0
    %v5588 = vsel %vm2772, %v3121, 0
    %v5591 = vsel %vm2772, %v3122, 0
    %5593 = vmatprep.subr.mxu0 0.0
    %5594 = vmatpush1.msra.mxu0 0.0
    %5595 = vmatprep.subr.mxu0 0.0
    %5596 = vmatpush1.msra.mxu0 0.0
    %5597 = vmatprep.subr.mxu0 0.0
    %5598 = vmatpush1.msra.mxu0 0.0
    %5599 = vmatprep.subr.mxu0 0.0
    %5600 = vmatpush1.msra.mxu0 0.0
    %5601 = vmatprep.subr.mxu0 0.0
    %5602 = vmatpush1.msra.mxu0 0.0
    %5603 = vmatprep.subr.mxu0 0.0
    %5604 = vmatpush1.msra.mxu0 0.0
    %5605 = vmatprep.subr.mxu0 0.0
    %5606 = vmatpush1.msra.mxu0 0.0
    %5607 = vmatprep.subr.mxu0 0.0
    %5608 = vmatpush1.msra.mxu0 0.0
    %5609 = vmatprep.subr.mxu0 0.0
    %5610 = vmatpush1.msra.mxu0 0.0
    %5611 = vmatprep.subr.mxu0 0.0
    %5612 = vmatpush1.msra.mxu0 0.0
    %5613 = vmatprep.subr.mxu0 0.0
    %5614 = vmatpush1.msra.mxu0 0.0
    %5615 = vmatprep.subr.mxu0 0.0
    %5616 = vmatpush1.msra.mxu0 0.0
    %5617 = vmatprep.subr.mxu0 0.0
    %5618 = vmatpush1.msra.mxu0 0.0
    %5619 = vmatprep.subr.mxu0 0.0
    %5620 = vmatpush1.msra.mxu0 0.0
    %5621 = vmatprep.subr.mxu0 0.0
    %5622 = vmatpush1.msra.mxu0 %v4372
    %5623 = vmatprep.subr.mxu0 0.0
    %5624 = vmatpush1.msra.mxu0 %v4367
    %5625 = vmatprep.subr.mxu0 0.0
    %5626 = vmatpush2.msra.mxu0 0.0
    %5627 = vmatprep.subr.mxu0 0.0
    %5628 = vmatpush2.msra.mxu0 0.0
    %5629 = vmatprep.subr.mxu0 0.0
    %5630 = vmatpush2.msra.mxu0 0.0
    %5631 = vmatprep.subr.mxu0 0.0
    %5632 = vmatpush2.msra.mxu0 0.0
    %5633 = vmatprep.subr.mxu0 0.0
    %5634 = vmatpush2.msra.mxu0 0.0
    %5635 = vmatprep.subr.mxu0 0.0
    %5636 = vmatpush2.msra.mxu0 0.0
    %5637 = vmatprep.subr.mxu0 0.0
    %5638 = vmatpush2.msra.mxu0 0.0
    %5639 = vmatprep.subr.mxu0 0.0
    %5640 = vmatpush2.msra.mxu0 0.0
    %5641 = vmatprep.subr.mxu0 0.0
    %5642 = vmatpush2.msra.mxu0 0.0
    %5643 = vmatprep.subr.mxu0 0.0
    %5644 = vmatpush2.msra.mxu0 0.0
    %5645 = vmatprep.subr.mxu0 0.0
    %5646 = vmatpush2.msra.mxu0 0.0
    %5647 = vmatprep.subr.mxu0 0.0
    %5648 = vmatpush2.msra.mxu0 0.0
    %5649 = vmatprep.subr.mxu0 0.0
    %5650 = vmatpush2.msra.mxu0 0.0
    %5651 = vmatprep.subr.mxu0 0.0
    %5652 = vmatpush2.msra.mxu0 0.0
    %5653 = vmatprep.subr.mxu0 0.0
    %5654 = vmatpush2.msra.mxu0 0.0
    %5655 = vmatprep.subr.mxu0 0.0
    %5656 = vmatpush2.msra.mxu0 0.0
    %5657 = vmatprep.mubr.f32.mxu0 0.0
    %5658 = vmatmul.mubr.f32.gmra.mxu0 %v5588
    %v5659 = vpop.f32.mrf.mxu0
    %v5660 = vadd.f32 0.0, %v5659
    %v5661 = vpop.f32.mrf.mxu0
    %5662 = vmatprep.mubr.f32.mxu0 0.0
    %5663 = vmatmul.mubr.f32.gmra.mxu0 %v5591
    %v5664 = vpop.f32.mrf.mxu0
    %v5665 = vadd.f32 0.0, %v5664
    %v5666 = vpop.f32.mrf.mxu0
    %5667 = vdwg.mxu0
    %v5669 = vsel %vm2772, %v3123, 0
    %v5672 = vsel %vm2772, %v3124, 0
    %5674 = vmatprep.subr.mxu0 0.0
    %5675 = vmatpush1.msra.mxu0 0.0
    %5676 = vmatprep.subr.mxu0 0.0
    %5677 = vmatpush1.msra.mxu0 0.0
    %5678 = vmatprep.subr.mxu0 0.0
    %5679 = vmatpush1.msra.mxu0 0.0
    %5680 = vmatprep.subr.mxu0 0.0
    %5681 = vmatpush1.msra.mxu0 0.0
    %5682 = vmatprep.subr.mxu0 0.0
    %5683 = vmatpush1.msra.mxu0 0.0
    %5684 = vmatprep.subr.mxu0 0.0
    %5685 = vmatpush1.msra.mxu0 0.0
    %5686 = vmatprep.subr.mxu0 0.0
    %5687 = vmatpush1.msra.mxu0 0.0
    %5688 = vmatprep.subr.mxu0 0.0
    %5689 = vmatpush1.msra.mxu0 0.0
    %5690 = vmatprep.subr.mxu0 0.0
    %5691 = vmatpush1.msra.mxu0 0.0
    %5692 = vmatprep.subr.mxu0 0.0
    %5693 = vmatpush1.msra.mxu0 0.0
    %5694 = vmatprep.subr.mxu0 0.0
    %5695 = vmatpush1.msra.mxu0 0.0
    %5696 = vmatprep.subr.mxu0 0.0
    %5697 = vmatpush1.msra.mxu0 0.0
    %5698 = vmatprep.subr.mxu0 0.0
    %5699 = vmatpush1.msra.mxu0 0.0
    %5700 = vmatprep.subr.mxu0 0.0
    %5701 = vmatpush1.msra.mxu0 0.0
    %5702 = vmatprep.subr.mxu0 0.0
    %5703 = vmatpush1.msra.mxu0 %v4450
    %5704 = vmatprep.subr.mxu0 0.0
    %5705 = vmatpush1.msra.mxu0 %v4445
    %5706 = vmatprep.subr.mxu0 0.0
    %5707 = vmatpush2.msra.mxu0 0.0
    %5708 = vmatprep.subr.mxu0 0.0
    %5709 = vmatpush2.msra.mxu0 0.0
    %5710 = vmatprep.subr.mxu0 0.0
    %5711 = vmatpush2.msra.mxu0 0.0
    %5712 = vmatprep.subr.mxu0 0.0
    %5713 = vmatpush2.msra.mxu0 0.0
    %5714 = vmatprep.subr.mxu0 0.0
    %5715 = vmatpush2.msra.mxu0 0.0
    %5716 = vmatprep.subr.mxu0 0.0
    %5717 = vmatpush2.msra.mxu0 0.0
    %5718 = vmatprep.subr.mxu0 0.0
    %5719 = vmatpush2.msra.mxu0 0.0
    %5720 = vmatprep.subr.mxu0 0.0
    %5721 = vmatpush2.msra.mxu0 0.0
    %5722 = vmatprep.subr.mxu0 0.0
    %5723 = vmatpush2.msra.mxu0 0.0
    %5724 = vmatprep.subr.mxu0 0.0
    %5725 = vmatpush2.msra.mxu0 0.0
    %5726 = vmatprep.subr.mxu0 0.0
    %5727 = vmatpush2.msra.mxu0 0.0
    %5728 = vmatprep.subr.mxu0 0.0
    %5729 = vmatpush2.msra.mxu0 0.0
    %5730 = vmatprep.subr.mxu0 0.0
    %5731 = vmatpush2.msra.mxu0 0.0
    %5732 = vmatprep.subr.mxu0 0.0
    %5733 = vmatpush2.msra.mxu0 0.0
    %5734 = vmatprep.subr.mxu0 0.0
    %5735 = vmatpush2.msra.mxu0 0.0
    %5736 = vmatprep.subr.mxu0 0.0
    %5737 = vmatpush2.msra.mxu0 0.0
    %5738 = vmatprep.mubr.f32.mxu0 0.0
    %5739 = vmatmul.mubr.f32.gmra.mxu0 %v5669
    %v5740 = vpop.f32.mrf.mxu0
    %v5741 = vadd.f32 0.0, %v5740
    %v5742 = vpop.f32.mrf.mxu0
    %5743 = vmatprep.mubr.f32.mxu0 0.0
    %5744 = vmatmul.mubr.f32.gmra.mxu0 %v5672
    %v5745 = vpop.f32.mrf.mxu0
    %v5746 = vadd.f32 0.0, %v5745
    %v5747 = vpop.f32.mrf.mxu0
    %5748 = vdwg.mxu0
    %v5749 = vld [vmem:[%s3] sm:$0xf]
    %v5750 = vadd.f32 %v4526, %v4607
    %v5751 = vadd.f32 %v4531, %v4612
    %v5752 = vadd.f32 %v5750, %v4688
    %v5753 = vadd.f32 %v5751, %v4693
    %v5754 = vadd.f32 %v5752, %v4769
    %v5755 = vadd.f32 %v5753, %v4774
    %5757 = vset.pattern.permute.xlu0 0
    %5758 = vperm.xlu0 %5757, %v144
    %v5759 = vpop.permute.xlu0 %5758
    %5762 = vset.pattern.permute.xlu0 0
    %5763 = vperm.xlu0 %5762, %v145
    %v5764 = vpop.permute.xlu0 %5763
    %v5766 = vmul.f32 %v5759, %v5754
    %v5767 = vmul.f32 %v5764, %v5755
    %v5768 = vsel %vm123, %v144, 0
    %v5770 = vsel %vm123, %v145, 0
    %vm5772 = vcmask 1043456
    %v5774 = vsel %vm5772, %v5749, 0
    %5776 = vmatprep.subr.mxu0 0.0
    %5777 = vmatpush1.msra.mxu0 0.0
    %5778 = vmatprep.subr.mxu0 0.0
    %5779 = vmatpush1.msra.mxu0 0.0
    %5780 = vmatprep.subr.mxu0 0.0
    %5781 = vmatpush1.msra.mxu0 0.0
    %5782 = vmatprep.subr.mxu0 0.0
    %5783 = vmatpush1.msra.mxu0 0.0
    %5784 = vmatprep.subr.mxu0 0.0
    %5785 = vmatpush1.msra.mxu0 0.0
    %5786 = vmatprep.subr.mxu0 0.0
    %5787 = vmatpush1.msra.mxu0 0.0
    %5788 = vmatprep.subr.mxu0 0.0
    %5789 = vmatpush1.msra.mxu0 0.0
    %5790 = vmatprep.subr.mxu0 0.0
    %5791 = vmatpush1.msra.mxu0 0.0
    %5792 = vmatprep.subr.mxu0 0.0
    %5793 = vmatpush1.msra.mxu0 0.0
    %5794 = vmatprep.subr.mxu0 0.0
    %5795 = vmatpush1.msra.mxu0 0.0
    %5796 = vmatprep.subr.mxu0 0.0
    %5797 = vmatpush1.msra.mxu0 0.0
    %5798 = vmatprep.subr.mxu0 0.0
    %5799 = vmatpush1.msra.mxu0 0.0
    %5800 = vmatprep.subr.mxu0 0.0
    %5801 = vmatpush1.msra.mxu0 0.0
    %5802 = vmatprep.subr.mxu0 0.0
    %5803 = vmatpush1.msra.mxu0 0.0
    %5804 = vmatprep.subr.mxu0 0.0
    %5805 = vmatpush1.msra.mxu0 0.0
    %5806 = vmatprep.subr.mxu0 0.0
    %5807 = vmatpush1.msra.mxu0 %v5774
    %5808 = vmatprep.subr.mxu0 0.0
    %5809 = vmatpush2.msra.mxu0 0.0
    %5810 = vmatprep.subr.mxu0 0.0
    %5811 = vmatpush2.msra.mxu0 0.0
    %5812 = vmatprep.subr.mxu0 0.0
    %5813 = vmatpush2.msra.mxu0 0.0
    %5814 = vmatprep.subr.mxu0 0.0
    %5815 = vmatpush2.msra.mxu0 0.0
    %5816 = vmatprep.subr.mxu0 0.0
    %5817 = vmatpush2.msra.mxu0 0.0
    %5818 = vmatprep.subr.mxu0 0.0
    %5819 = vmatpush2.msra.mxu0 0.0
    %5820 = vmatprep.subr.mxu0 0.0
    %5821 = vmatpush2.msra.mxu0 0.0
    %5822 = vmatprep.subr.mxu0 0.0
    %5823 = vmatpush2.msra.mxu0 0.0
    %5824 = vmatprep.subr.mxu0 0.0
    %5825 = vmatpush2.msra.mxu0 0.0
    %5826 = vmatprep.subr.mxu0 0.0
    %5827 = vmatpush2.msra.mxu0 0.0
    %5828 = vmatprep.subr.mxu0 0.0
    %5829 = vmatpush2.msra.mxu0 0.0
    %5830 = vmatprep.subr.mxu0 0.0
    %5831 = vmatpush2.msra.mxu0 0.0
    %5832 = vmatprep.subr.mxu0 0.0
    %5833 = vmatpush2.msra.mxu0 0.0
    %5834 = vmatprep.subr.mxu0 0.0
    %5835 = vmatpush2.msra.mxu0 0.0
    %5836 = vmatprep.subr.mxu0 0.0
    %5837 = vmatpush2.msra.mxu0 0.0
    %5838 = vmatprep.subr.mxu0 0.0
    %5839 = vmatpush2.msra.mxu0 0.0
    %5840 = vmatprep.mubr.f32.mxu0 0.0
    %5841 = vmatmul.mubr.f32.gmra.mxu0 %v5768
    %v5842 = vpop.f32.mrf.mxu0
    %v5843 = vadd.f32 %v5766, %v5842
    %v5844 = vpop.f32.mrf.mxu0
    %5845 = vmatprep.mubr.f32.mxu0 0.0
    %5846 = vmatmul.mubr.f32.gmra.mxu0 %v5770
    %v5847 = vpop.f32.mrf.mxu0
    %v5848 = vadd.f32 %v5767, %v5847
    %v5849 = vpop.f32.mrf.mxu0
    %5850 = vdwg.mxu0
    %v5851 = vadd.f32 %v4850, %v4931
    %v5852 = vadd.f32 %v4855, %v4936
    %v5853 = vadd.f32 %v5851, %v5012
    %v5854 = vadd.f32 %v5852, %v5017
    %v5855 = vadd.f32 %v5853, %v5093
    %v5856 = vadd.f32 %v5854, %v5098
    %5857 = vset.pattern.permute.xlu0 1
    %5858 = vperm.xlu0 %5857, %v144
    %v5859 = vpop.permute.xlu0 %5858
    %5861 = vset.pattern.permute.xlu0 1
    %5862 = vperm.xlu0 %5861, %v145
    %v5863 = vpop.permute.xlu0 %5862
    %v5865 = vmul.f32 %v5859, %v5855
    %v5866 = vmul.f32 %v5863, %v5856
    %v5867 = vadd.f32 %v5843, %v5865
    %v5868 = vadd.f32 %v5848, %v5866
    %v5869 = vadd.f32 %v5174, %v5255
    %v5870 = vadd.f32 %v5179, %v5260
    %v5871 = vadd.f32 %v5869, %v5336
    %v5872 = vadd.f32 %v5870, %v5341
    %v5873 = vadd.f32 %v5871, %v5417
    %v5874 = vadd.f32 %v5872, %v5422
    %5875 = vset.pattern.permute.xlu0 2
    %5876 = vperm.xlu0 %5875, %v144
    %v5877 = vpop.permute.xlu0 %5876
    %5879 = vset.pattern.permute.xlu0 2
    %5880 = vperm.xlu0 %5879, %v145
    %v5881 = vpop.permute.xlu0 %5880
    %v5883 = vmul.f32 %v5877, %v5873
    %v5884 = vmul.f32 %v5881, %v5874
    %v5885 = vadd.f32 %v5867, %v5883
    %v5886 = vadd.f32 %v5868, %v5884
    %v5887 = vadd.f32 %v5498, %v5579
    %v5888 = vadd.f32 %v5503, %v5584
    %v5889 = vadd.f32 %v5887, %v5660
    %v5890 = vadd.f32 %v5888, %v5665
    %v5891 = vadd.f32 %v5889, %v5741
    %v5892 = vadd.f32 %v5890, %v5746
    %5893 = vset.pattern.permute.xlu0 3
    %5894 = vperm.xlu0 %5893, %v144
    %v5895 = vpop.permute.xlu0 %5894
    %5897 = vset.pattern.permute.xlu0 3
    %5898 = vperm.xlu0 %5897, %v145
    %v5899 = vpop.permute.xlu0 %5898
    %v5901 = vmul.f32 %v5895, %v5891
    %v5902 = vmul.f32 %v5899, %v5892
    %v5903 = vadd.f32 %v5885, %v5901
    %v5904 = vadd.f32 %v5886, %v5902
    %v5905 = vld [vmem:[%s7 + $0x10] sm:$0x3]
    %v5907 = vsel %vm2772, %v5905, 0
    %5909 = vmatprep.subr.mxu0 0.0
    %5910 = vmatpush1.msra.mxu0 0.0
    %5911 = vmatprep.subr.mxu0 0.0
    %5912 = vmatpush1.msra.mxu0 0.0
    %5913 = vmatprep.subr.mxu0 0.0
    %5914 = vmatpush1.msra.mxu0 0.0
    %5915 = vmatprep.subr.mxu0 0.0
    %5916 = vmatpush1.msra.mxu0 0.0
    %5917 = vmatprep.subr.mxu0 0.0
    %5918 = vmatpush1.msra.mxu0 0.0
    %5919 = vmatprep.subr.mxu0 0.0
    %5920 = vmatpush1.msra.mxu0 0.0
    %5921 = vmatprep.subr.mxu0 0.0
    %5922 = vmatpush1.msra.mxu0 0.0
    %5923 = vmatprep.subr.mxu0 0.0
    %5924 = vmatpush1.msra.mxu0 0.0
    %5925 = vmatprep.subr.mxu0 0.0
    %5926 = vmatpush1.msra.mxu0 0.0
    %5927 = vmatprep.subr.mxu0 0.0
    %5928 = vmatpush1.msra.mxu0 0.0
    %5929 = vmatprep.subr.mxu0 0.0
    %5930 = vmatpush1.msra.mxu0 0.0
    %5931 = vmatprep.subr.mxu0 0.0
    %5932 = vmatpush1.msra.mxu0 0.0
    %5933 = vmatprep.subr.mxu0 0.0
    %5934 = vmatpush1.msra.mxu0 0.0
    %5935 = vmatprep.subr.mxu0 0.0
    %5936 = vmatpush1.msra.mxu0 0.0
    %5937 = vmatprep.subr.mxu0 0.0
    %5938 = vmatpush1.msra.mxu0 %v5904
    %5939 = vmatprep.subr.mxu0 0.0
    %5940 = vmatpush1.msra.mxu0 %v5903
    %5941 = vmatprep.subr.mxu0 0.0
    %5942 = vmatpush2.msra.mxu0 0.0
    %5943 = vmatprep.subr.mxu0 0.0
    %5944 = vmatpush2.msra.mxu0 0.0
    %5945 = vmatprep.subr.mxu0 0.0
    %5946 = vmatpush2.msra.mxu0 0.0
    %5947 = vmatprep.subr.mxu0 0.0
    %5948 = vmatpush2.msra.mxu0 0.0
    %5949 = vmatprep.subr.mxu0 0.0
    %5950 = vmatpush2.msra.mxu0 0.0
    %5951 = vmatprep.subr.mxu0 0.0
    %5952 = vmatpush2.msra.mxu0 0.0
    %5953 = vmatprep.subr.mxu0 0.0
    %5954 = vmatpush2.msra.mxu0 0.0
    %5955 = vmatprep.subr.mxu0 0.0
    %5956 = vmatpush2.msra.mxu0 0.0
    %5957 = vmatprep.subr.mxu0 0.0
    %5958 = vmatpush2.msra.mxu0 0.0
    %5959 = vmatprep.subr.mxu0 0.0
    %5960 = vmatpush2.msra.mxu0 0.0
    %5961 = vmatprep.subr.mxu0 0.0
    %5962 = vmatpush2.msra.mxu0 0.0
    %5963 = vmatprep.subr.mxu0 0.0
    %5964 = vmatpush2.msra.mxu0 0.0
    %5965 = vmatprep.subr.mxu0 0.0
    %5966 = vmatpush2.msra.mxu0 0.0
    %5967 = vmatprep.subr.mxu0 0.0
    %5968 = vmatpush2.msra.mxu0 0.0
    %5969 = vmatprep.subr.mxu0 0.0
    %5970 = vmatpush2.msra.mxu0 0.0
    %5971 = vmatprep.subr.mxu0 0.0
    %5972 = vmatpush2.msra.mxu0 0.0
    %5973 = vmatprep.mubr.f32.mxu0 0.0
    %5974 = vmatmul.mubr.f32.gmra.mxu0 %v5907
    %v5975 = vpop.f32.mrf.mxu0
    %v5976 = vadd.f32 0.0, %v5975
    %v5977 = vpop.f32.mrf.mxu0
    %5978 = vdwg.mxu0
    %v5979 = vld [vmem:[%s5] sm:$0xff]
    %v5980 = vld [vmem:[%s5 + $0x8] sm:$0xff]
    %v5981 = vld [vmem:[%s5 + $0x10] sm:$0xff]
    %v5982 = vld [vmem:[%s5 + $0x18] sm:$0xff]
    %v5983 = vld [vmem:[%s5 + $0x20] sm:$0xff]
    %v5984 = vld [vmem:[%s5 + $0x28] sm:$0xff]
    %v5985 = vld [vmem:[%s5 + $0x30] sm:$0xff]
    %v5986 = vld [vmem:[%s5 + $0x38] sm:$0xff]
    %s5987 = scalar_lea.vmem %s5, 64
    %v5988 = vld [vmem:[%s5987] ss:$8 sm:$0x3]
    %v5990 = vlaneseq
    %v5991 = vshrl.u32 %v5990, 7
    %v5992 = vsub.s32 0, %v5991
    %v5993 = vrot.slane %v5988, %v5992
    %v5994 = vlaneseq
    %v5995 = vshrl.u32 %v5994, 7
    %v5996 = vsub.s32 1, %v5995
    %v5997 = vrot.slane %v5988, %v5996
    %vm6000 = vcmask 261120
    %v6002 = vsel %vm6000, %v5976, 0
    %6004 = vmatprep.subr.mxu0 0.0
    %6005 = vmatpush1.msra.mxu0 0.0
    %6006 = vmatprep.subr.mxu0 0.0
    %6007 = vmatpush1.msra.mxu0 0.0
    %6008 = vmatprep.subr.mxu0 0.0
    %6009 = vmatpush1.msra.mxu0 0.0
    %6010 = vmatprep.subr.mxu0 0.0
    %6011 = vmatpush1.msra.mxu0 0.0
    %6012 = vmatprep.subr.mxu0 0.0
    %6013 = vmatpush1.msra.mxu0 0.0
    %6014 = vmatprep.subr.mxu0 0.0
    %6015 = vmatpush1.msra.mxu0 0.0
    %6016 = vmatprep.subr.mxu0 0.0
    %6017 = vmatpush1.msra.mxu0 0.0
    %6018 = vmatprep.subr.mxu0 0.0
    %6019 = vmatpush1.msra.mxu0 0.0
    %6020 = vmatprep.subr.mxu0 0.0
    %6021 = vmatpush1.msra.mxu0 0.0
    %6022 = vmatprep.subr.mxu0 0.0
    %6023 = vmatpush1.msra.mxu0 0.0
    %6024 = vmatprep.subr.mxu0 0.0
    %6025 = vmatpush1.msra.mxu0 0.0
    %6026 = vmatprep.subr.mxu0 0.0
    %6027 = vmatpush1.msra.mxu0 0.0
    %6028 = vmatprep.subr.mxu0 %v5986
    %6029 = vmatpush1.msra.mxu0 %v5985
    %6030 = vmatprep.subr.mxu0 %v5984
    %6031 = vmatpush1.msra.mxu0 %v5983
    %6032 = vmatprep.subr.mxu0 %v5982
    %6033 = vmatpush1.msra.mxu0 %v5981
    %6034 = vmatprep.subr.mxu0 %v5980
    %6035 = vmatpush1.msra.mxu0 %v5979
    %6036 = vmatprep.subr.mxu0 0.0
    %6037 = vmatpush2.msra.mxu0 0.0
    %6038 = vmatprep.subr.mxu0 0.0
    %6039 = vmatpush2.msra.mxu0 0.0
    %6040 = vmatprep.subr.mxu0 0.0
    %6041 = vmatpush2.msra.mxu0 0.0
    %6042 = vmatprep.subr.mxu0 0.0
    %6043 = vmatpush2.msra.mxu0 0.0
    %6044 = vmatprep.subr.mxu0 0.0
    %6045 = vmatpush2.msra.mxu0 0.0
    %6046 = vmatprep.subr.mxu0 0.0
    %6047 = vmatpush2.msra.mxu0 0.0
    %6048 = vmatprep.subr.mxu0 0.0
    %6049 = vmatpush2.msra.mxu0 0.0
    %6050 = vmatprep.subr.mxu0 0.0
    %6051 = vmatpush2.msra.mxu0 0.0
    %6052 = vmatprep.subr.mxu0 0.0
    %6053 = vmatpush2.msra.mxu0 0.0
    %6054 = vmatprep.subr.mxu0 0.0
    %6055 = vmatpush2.msra.mxu0 0.0
    %6056 = vmatprep.subr.mxu0 0.0
    %6057 = vmatpush2.msra.mxu0 0.0
    %6058 = vmatprep.subr.mxu0 0.0
    %6059 = vmatpush2.msra.mxu0 0.0
    %6060 = vmatprep.subr.mxu0 0.0
    %6061 = vmatpush2.msra.mxu0 0.0
    %6062 = vmatprep.subr.mxu0 0.0
    %6063 = vmatpush2.msra.mxu0 0.0
    %6064 = vmatprep.subr.mxu0 0.0
    %6065 = vmatpush2.msra.mxu0 0.0
    %6066 = vmatprep.subr.mxu0 0.0
    %6067 = vmatpush2.msra.mxu0 0.0
    %6068 = vmatprep.mubr.f32.mxu0 0.0
    %6069 = vmatmul.mubr.f32.gmra.mxu0 %v6002
    %v6070 = vpop.f32.mrf.mxu0
    %v6071 = vadd.f32 %v5993, %v6070
    %v6072 = vpop.f32.mrf.mxu0
    %v6073 = vadd.f32 %v5997, %v6072
    %6074 = vdwg.mxu0
    %v6075 = vmax.f32 %v6071, 0.0
    %v6076 = vmax.f32 %v6073, 0.0
    %v6077 = vld [vmem:[%s6] sm:$0xff]
    %v6078 = vld [vmem:[%s6 + $0x8] sm:$0xff]
    %v6079 = vld [vmem:[%s6 + $0x10] sm:$0xff]
    %v6080 = vld [vmem:[%s6 + $0x18] sm:$0xff]
    %v6081 = vld [vmem:[%s6 + $0x20] sm:$0xff]
    %v6082 = vld [vmem:[%s6 + $0x28] sm:$0xff]
    %v6083 = vld [vmem:[%s6 + $0x30] sm:$0xff]
    %v6084 = vld [vmem:[%s6 + $0x38] sm:$0xff]
    %v6085 = vld [vmem:[%s6 + $0x40] sm:$0xff]
    %v6086 = vld [vmem:[%s6 + $0x48] sm:$0xff]
    %v6087 = vld [vmem:[%s6 + $0x50] sm:$0xff]
    %v6088 = vld [vmem:[%s6 + $0x58] sm:$0xff]
    %v6089 = vld [vmem:[%s6 + $0x60] sm:$0xff]
    %v6090 = vld [vmem:[%s6 + $0x68] sm:$0xff]
    %v6091 = vld [vmem:[%s6 + $0x70] sm:$0xff]
    %v6092 = vld [vmem:[%s6 + $0x78] sm:$0xff]
    %v6093 = vld [vmem:[%s6 + $0x80] sm:$0xff]
    %v6094 = vld [vmem:[%s6 + $0x88] sm:$0xff]
    %v6095 = vld [vmem:[%s6 + $0x90] sm:$0xff]
    %v6096 = vld [vmem:[%s6 + $0x98] sm:$0xff]
    %v6097 = vld [vmem:[%s6 + $0xa0] sm:$0xff]
    %v6098 = vld [vmem:[%s6 + $0xa8] sm:$0xff]
    %v6099 = vld [vmem:[%s6 + $0xb0] sm:$0xff]
    %v6100 = vld [vmem:[%s6 + $0xb8] sm:$0xff]
    %v6101 = vld [vmem:[%s6 + $0xc0] sm:$0xff]
    %v6102 = vld [vmem:[%s6 + $0xc8] sm:$0xff]
    %v6103 = vld [vmem:[%s6 + $0xd0] sm:$0xff]
    %v6104 = vld [vmem:[%s6 + $0xd8] sm:$0xff]
    %v6105 = vld [vmem:[%s6 + $0xe0] sm:$0xff]
    %v6106 = vld [vmem:[%s6 + $0xe8] sm:$0xff]
    %v6107 = vld [vmem:[%s6 + $0xf0] sm:$0xff]
    %v6108 = vld [vmem:[%s6 + $0xf8] sm:$0xff]
    %v6109 = vld [vmem:[%s6 + $0x100] sm:$0x1]
    %v6110 = vlaneseq
    %v6111 = vshrl.u32 %v6110, 7
    %v6112 = vsub.s32 0, %v6111
    %v6113 = vrot.slane %v6109, %v6112
    %6114 = vmatprep.subr.mxu0 0.0
    %6115 = vmatpush1.msra.mxu0 %v6092
    %6116 = vmatprep.subr.mxu0 0.0
    %6117 = vmatpush1.msra.mxu0 %v6091
    %6118 = vmatprep.subr.mxu0 0.0
    %6119 = vmatpush1.msra.mxu0 %v6090
    %6120 = vmatprep.subr.mxu0 0.0
    %6121 = vmatpush1.msra.mxu0 %v6089
    %6122 = vmatprep.subr.mxu0 0.0
    %6123 = vmatpush1.msra.mxu0 %v6088
    %6124 = vmatprep.subr.mxu0 0.0
    %6125 = vmatpush1.msra.mxu0 %v6087
    %6126 = vmatprep.subr.mxu0 0.0
    %6127 = vmatpush1.msra.mxu0 %v6086
    %6128 = vmatprep.subr.mxu0 0.0
    %6129 = vmatpush1.msra.mxu0 %v6085
    %6130 = vmatprep.subr.mxu0 0.0
    %6131 = vmatpush1.msra.mxu0 %v6084
    %6132 = vmatprep.subr.mxu0 0.0
    %6133 = vmatpush1.msra.mxu0 %v6083
    %6134 = vmatprep.subr.mxu0 0.0
    %6135 = vmatpush1.msra.mxu0 %v6082
    %6136 = vmatprep.subr.mxu0 0.0
    %6137 = vmatpush1.msra.mxu0 %v6081
    %6138 = vmatprep.subr.mxu0 0.0
    %6139 = vmatpush1.msra.mxu0 %v6080
    %6140 = vmatprep.subr.mxu0 0.0
    %6141 = vmatpush1.msra.mxu0 %v6079
    %6142 = vmatprep.subr.mxu0 0.0
    %6143 = vmatpush1.msra.mxu0 %v6078
    %6144 = vmatprep.subr.mxu0 0.0
    %6145 = vmatpush1.msra.mxu0 %v6077
    %6146 = vmatprep.subr.mxu0 0.0
    %6147 = vmatpush2.msra.mxu0 %v6108
    %6148 = vmatprep.subr.mxu0 0.0
    %6149 = vmatpush2.msra.mxu0 %v6107
    %6150 = vmatprep.subr.mxu0 0.0
    %6151 = vmatpush2.msra.mxu0 %v6106
    %6152 = vmatprep.subr.mxu0 0.0
    %6153 = vmatpush2.msra.mxu0 %v6105
    %6154 = vmatprep.subr.mxu0 0.0
    %6155 = vmatpush2.msra.mxu0 %v6104
    %6156 = vmatprep.subr.mxu0 0.0
    %6157 = vmatpush2.msra.mxu0 %v6103
    %6158 = vmatprep.subr.mxu0 0.0
    %6159 = vmatpush2.msra.mxu0 %v6102
    %6160 = vmatprep.subr.mxu0 0.0
    %6161 = vmatpush2.msra.mxu0 %v6101
    %6162 = vmatprep.subr.mxu0 0.0
    %6163 = vmatpush2.msra.mxu0 %v6100
    %6164 = vmatprep.subr.mxu0 0.0
    %6165 = vmatpush2.msra.mxu0 %v6099
    %6166 = vmatprep.subr.mxu0 0.0
    %6167 = vmatpush2.msra.mxu0 %v6098
    %6168 = vmatprep.subr.mxu0 0.0
    %6169 = vmatpush2.msra.mxu0 %v6097
    %6170 = vmatprep.subr.mxu0 0.0
    %6171 = vmatpush2.msra.mxu0 %v6096
    %6172 = vmatprep.subr.mxu0 0.0
    %6173 = vmatpush2.msra.mxu0 %v6095
    %6174 = vmatprep.subr.mxu0 0.0
    %6175 = vmatpush2.msra.mxu0 %v6094
    %6176 = vmatprep.subr.mxu0 0.0
    %6177 = vmatpush2.msra.mxu0 %v6093
    %6178 = vmatprep.mubr.f32.mxu0 %v6076
    %6179 = vmatmul.mubr.f32.gmra.mxu0 %v6075
    %v6180 = vpop.f32.mrf.mxu0
    %v6181 = vadd.f32 %v6113, %v6180
    %v6182 = vpop.f32.mrf.mxu0
    %6183 = vdwg.mxu0
    %6184 = vst [vmem:[#allocation2] sm:$0x3] %v6181
    // Predicated region
    $region34: #{sentimixture_forward.1} parent=1 // pred_check
      _
    $region35: #{sentimixture_forward.1} parent=1 // pred_check_branch
      %6186 = sbr.rel (0) target = $region37
    $region36: #{sentimixture_forward.1} parent=1 // pred_region
      %s6188 = ssub.s32 32, 32
      %6189 = vsyncadd [#allocation3], %s6188
      %s6191 = sshll.u32 [#allocation2], 4
      %s6192 = int_to_ptr.vmem [resolvable:$true] %s6191
      %6194 = dma.vmem_to_hbm [thread:$0]  %s6192, 32, %s8, [#allocation3]
    $region37: #{sentimixture_forward.1} parent=1 // pred_fallthru
      _
    // Predicated region
    $region38: #{sentimixture_forward.1} parent=1 // pred_check
      _
    $region39: #{sentimixture_forward.1} parent=1 // pred_check_branch
      %6196 = sbr.rel (0) target = $region41
    $region40: #{sentimixture_forward.1} parent=1 // pred_region
      %6197 = dma.done [#allocation3], 32
    $region41: #{sentimixture_forward.1} parent=1 // pred_fallthru
      _
    %6198 = vsyncpa [#allocation3], 1

</llo_original>
